<compile_context>
chip_gen: v6e
topology: v6e:2x2x1
jax: 0.10.0
libtpu: 0.0.40
codegen_flags: <defaults>
</compile_context>

<pallas_src>
import functools
import math

import jax
import jax.numpy as jnp
from jax.experimental import pallas as pl
from jax.experimental.pallas import tpu as pltpu

IN_DIM = 28 * 28                      # 784
H1, H2, H3, OUT = 400, 200, 100, 10   # logical widths (PyTorch module)
P_H1, P_H2, P_H3, P_OUT = 512, 256, 128, 128   # lane-aligned padded widths

MAX_TILE = 1024                       # max batch rows per grid step


def mlp_kernel(x_ref, w1_ref, b1_ref, w2_ref, b2_ref, w3_ref, b3_ref,
               w4_ref, b4_ref, o_ref):
    """Fused 4-layer MLP forward on one batch tile.

    x arrives as f32 and is cast to bf16 in-vreg at the first dot (weights are
    already bf16); accumulation, bias adds and ReLUs stay in f32.
    """
    x = x_ref[...].astype(jnp.bfloat16)                       # (bt, 784)
    h = jnp.dot(x, w1_ref[...], preferred_element_type=jnp.float32)
    h = jnp.maximum(h + b1_ref[...], 0.0)                     # (bt, 512) f32
    h = jnp.dot(h.astype(jnp.bfloat16), w2_ref[...],
                preferred_element_type=jnp.float32)
    h = jnp.maximum(h + b2_ref[...], 0.0)                     # (bt, 256) f32
    h = jnp.dot(h.astype(jnp.bfloat16), w3_ref[...],
                preferred_element_type=jnp.float32)
    h = jnp.maximum(h + b3_ref[...], 0.0)                     # (bt, 128) f32
    y = jnp.dot(h.astype(jnp.bfloat16), w4_ref[...],
                preferred_element_type=jnp.float32) + b4_ref[...]
    o_ref[...] = y.astype(o_ref.dtype)                        # lane-dense (bt, 128)


def _round_up(x, m):
    return ((x + m - 1) // m) * m


def _choose_tiling(B):
    """Pick (batch_tile, n_tiles) from the static batch size."""
    if B <= MAX_TILE:
        # Single tile covering the (sublane-rounded) batch: no zero-row
        # padding waste on the serial grid of v5e/v6e.
        return _round_up(max(B, 8), 8), 1
    # Large B: even number of tiles (>= 4) so v7x's two TensorCores each get
    # >= 2 pipeline steps; each tile <= 1024 rows and a multiple of 8.
    n_tiles = max(4, 2 * pl.cdiv(B, 2 * MAX_TILE))
    batch_tile = _round_up(pl.cdiv(B, n_tiles), 8)
    return batch_tile, n_tiles


@functools.partial(jax.jit, static_argnames=("batch_tile", "n_tiles"))
def _forward_impl(x, packed_params, *, batch_tile, n_tiles):
    (w1, b1), (w2, b2), (w3, b3), (w4, b4) = packed_params
    B = x.shape[0]
    B_pad = batch_tile * n_tiles
    if B_pad != B:
        x = jnp.pad(x, ((0, B_pad - B), (0, 0)))   # fused under this jit

    def full_spec(arr):
        # Constant block index across the grid -> the block stays resident.
        return pl.BlockSpec(arr.shape, lambda i: (0, 0))

    out = pl.pallas_call(
        mlp_kernel,
        out_shape=jax.ShapeDtypeStruct((B_pad, P_OUT), jnp.float32),
        grid_spec=pltpu.PrefetchScalarGridSpec(
            num_scalar_prefetch=0,
            grid=(n_tiles,),
            in_specs=[
                pl.BlockSpec((batch_tile, IN_DIM), lambda i: (i, 0)),
                full_spec(w1), full_spec(b1),
                full_spec(w2), full_spec(b2),
                full_spec(w3), full_spec(b3),
                full_spec(w4), full_spec(b4),
            ],
            out_specs=pl.BlockSpec((batch_tile, P_OUT), lambda i: (i, 0)),
        ),
        compiler_params=pltpu.CompilerParams(
            dimension_semantics=("parallel",),
            vmem_limit_bytes=32 << 20,
        ),
    )(x, w1, b1, w2, b2, w3, b3, w4, b4)

    # Padded batch rows and padded output lanes are sliced away here (fused).
    return out[:B, :OUT]


def net_forward(x, packed_params, *, batch_tile=None):
    """x: (B, 784) float32 -> (B, 10) float32."""
    B = x.shape[0]
    if batch_tile is None:
        bt, n_tiles = _choose_tiling(B)
    else:
        bt = _round_up(int(batch_tile), 8)
        n_tiles = pl.cdiv(B, bt)
    return _forward_impl(x, packed_params, batch_tile=bt, n_tiles=n_tiles)


def init_params(key):
    """PyTorch nn.Linear-style init: U(-1/sqrt(fan_in), +1/sqrt(fan_in)).

    Weights stored as (in_features, out_features) so forward is y = x @ W + b.
    """
    dims = [(IN_DIM, H1), (H1, H2), (H2, H3), (H3, OUT)]
    params = []
    for fan_in, fan_out in dims:
        key, kw, kb = jax.random.split(key, 3)
        bound = 1.0 / math.sqrt(fan_in)
        w = jax.random.uniform(kw, (fan_in, fan_out), jnp.float32, -bound, bound)
        b = jax.random.uniform(kb, (1, fan_out), jnp.float32, -bound, bound)
        params.append((w, b))
    return params


def pack_params(params):
    """Zero-pad widths to multiples of 128; cast weights to bf16 (biases stay f32).

    Zero padding is exact: padded ReLU outputs are 0 and padded weight rows are
    0, so padded lanes never contribute to the logical outputs.
    """
    padded = [(IN_DIM, P_H1), (P_H1, P_H2), (P_H2, P_H3), (P_H3, P_OUT)]
    packed = []
    for (w, b), (p_in, p_out) in zip(params, padded):
        wp = jnp.zeros((p_in, p_out), jnp.float32)
        wp = wp.at[: w.shape[0], : w.shape[1]].set(w)
        bp = jnp.zeros((1, p_out), jnp.float32)
        bp = bp.at[:, : b.shape[1]].set(b)
        packed.append((wp.astype(jnp.bfloat16), bp))
    return tuple(packed)


def reference_forward(x, params):
    """Plain-JAX f32 reference for correctness checking."""
    (w1, b1), (w2, b2), (w3, b3), (w4, b4) = params
    h = jnp.maximum(x @ w1 + b1, 0.0)
    h = jnp.maximum(h @ w2 + b2, 0.0)
    h = jnp.maximum(h @ w3 + b3, 0.0)
    return h @ w4 + b4


if __name__ == "__main__":
    key = jax.random.PRNGKey(0)
    key, kx = jax.random.split(key)

    B = 300  # adaptive tiling -> single 304-row tile (no 256->512 padding waste)
    x = jax.random.normal(kx, (B, IN_DIM), jnp.float32)

    params = init_params(key)            # logical f32 params (reference)
    packed = pack_params(params)         # padded bf16 params (kernel)

    out = jax.block_until_ready(net_forward(x, packed))

    ref = reference_forward(x, params)
    assert out.shape == (B, OUT), out.shape
    max_err = float(jnp.max(jnp.abs(out - ref)))
    # bf16 MXU inputs with f32 accumulation: allow bf16-level rounding.
    assert max_err < 3e-2, f"mismatch vs reference: max abs err = {max_err}"

    print("KERNEL_OK")
</pallas_src>

<mosaic_0001>
module attributes {stable_mosaic.version = 11 : i64} {
  func.func @mlp_kernel(%arg0: i32, %arg1: memref<304x784xf32, #tpu.memory_space<vmem>>, %arg2: memref<784x512xbf16, #tpu.memory_space<vmem>>, %arg3: memref<1x512xf32, #tpu.memory_space<vmem>>, %arg4: memref<512x256xbf16, #tpu.memory_space<vmem>>, %arg5: memref<1x256xf32, #tpu.memory_space<vmem>>, %arg6: memref<256x128xbf16, #tpu.memory_space<vmem>>, %arg7: memref<1x128xf32, #tpu.memory_space<vmem>>, %arg8: memref<128x128xbf16, #tpu.memory_space<vmem>>, %arg9: memref<1x128xf32, #tpu.memory_space<vmem>>, %arg10: memref<304x128xf32, #tpu.memory_space<vmem>>) attributes {dimension_semantics = [#tpu.dimension_semantics<parallel>], iteration_bounds = array<i64: 1>, scalar_prefetch = 0 : i64, scratch_operands = 0 : i64, tpu.core_type = #tpu.core_type<tc>, window_params = [{transform_indices = @transform_0, window_bounds = array<i64: 304, 784>}, {pipeline_mode = #tpu.pipeline_mode<synchronous>, transform_indices = @transform_1, window_bounds = array<i64: 784, 512>}, {pipeline_mode = #tpu.pipeline_mode<synchronous>, transform_indices = @transform_2, window_bounds = array<i64: 1, 512>}, {pipeline_mode = #tpu.pipeline_mode<synchronous>, transform_indices = @transform_3, window_bounds = array<i64: 512, 256>}, {pipeline_mode = #tpu.pipeline_mode<synchronous>, transform_indices = @transform_4, window_bounds = array<i64: 1, 256>}, {pipeline_mode = #tpu.pipeline_mode<synchronous>, transform_indices = @transform_5, window_bounds = array<i64: 256, 128>}, {pipeline_mode = #tpu.pipeline_mode<synchronous>, transform_indices = @transform_6, window_bounds = array<i64: 1, 128>}, {pipeline_mode = #tpu.pipeline_mode<synchronous>, transform_indices = @transform_7, window_bounds = array<i64: 128, 128>}, {pipeline_mode = #tpu.pipeline_mode<synchronous>, transform_indices = @transform_8, window_bounds = array<i64: 1, 128>}, {transform_indices = @transform_9, window_bounds = array<i64: 304, 128>}]} {
    %c0 = arith.constant 0 : index
    %c0_0 = arith.constant 0 : index
    %0 = vector.load %arg1[%c0, %c0_0] : memref<304x784xf32, #tpu.memory_space<vmem>>, vector<304x784xf32>
    %1 = arith.truncf %0 : vector<304x784xf32> to vector<304x784xbf16>
    %c0_1 = arith.constant 0 : index
    %c0_2 = arith.constant 0 : index
    %2 = vector.load %arg2[%c0_1, %c0_2] : memref<784x512xbf16, #tpu.memory_space<vmem>>, vector<784x512xbf16>
    %cst = arith.constant dense<0.000000e+00> : vector<304x512xf32>
    %3 = tpu.matmul %1, %2, %cst {dimension_numbers = #tpu.dot_dimension_numbers<[1], [0], [0], [1], [0, 0, 1, 1], [], []>} : vector<304x784xbf16>, vector<784x512xbf16>, vector<304x512xf32> -> vector<304x512xf32>
    %c0_3 = arith.constant 0 : index
    %c0_4 = arith.constant 0 : index
    %4 = vector.load %arg3[%c0_3, %c0_4] : memref<1x512xf32, #tpu.memory_space<vmem>>, vector<1x512xf32>
    %5 = vector.broadcast %4 : vector<1x512xf32> to vector<304x512xf32>
    %6 = arith.addf %3, %5 : vector<304x512xf32>
    %cst_5 = arith.constant 0.000000e+00 : f32
    %7 = vector.broadcast %cst_5 : f32 to vector<304x512xf32>
    %8 = arith.maximumf %6, %7 : vector<304x512xf32>
    %9 = arith.truncf %8 : vector<304x512xf32> to vector<304x512xbf16>
    %c0_6 = arith.constant 0 : index
    %c0_7 = arith.constant 0 : index
    %10 = vector.load %arg4[%c0_6, %c0_7] : memref<512x256xbf16, #tpu.memory_space<vmem>>, vector<512x256xbf16>
    %cst_8 = arith.constant dense<0.000000e+00> : vector<304x256xf32>
    %11 = tpu.matmul %9, %10, %cst_8 {dimension_numbers = #tpu.dot_dimension_numbers<[1], [0], [0], [1], [0, 0, 1, 1], [], []>} : vector<304x512xbf16>, vector<512x256xbf16>, vector<304x256xf32> -> vector<304x256xf32>
    %c0_9 = arith.constant 0 : index
    %c0_10 = arith.constant 0 : index
    %12 = vector.load %arg5[%c0_9, %c0_10] : memref<1x256xf32, #tpu.memory_space<vmem>>, vector<1x256xf32>
    %13 = vector.broadcast %12 : vector<1x256xf32> to vector<304x256xf32>
    %14 = arith.addf %11, %13 : vector<304x256xf32>
    %cst_11 = arith.constant 0.000000e+00 : f32
    %15 = vector.broadcast %cst_11 : f32 to vector<304x256xf32>
    %16 = arith.maximumf %14, %15 : vector<304x256xf32>
    %17 = arith.truncf %16 : vector<304x256xf32> to vector<304x256xbf16>
    %c0_12 = arith.constant 0 : index
    %c0_13 = arith.constant 0 : index
    %18 = vector.load %arg6[%c0_12, %c0_13] : memref<256x128xbf16, #tpu.memory_space<vmem>>, vector<256x128xbf16>
    %cst_14 = arith.constant dense<0.000000e+00> : vector<304x128xf32>
    %19 = tpu.matmul %17, %18, %cst_14 {dimension_numbers = #tpu.dot_dimension_numbers<[1], [0], [0], [1], [0, 0, 1, 1], [], []>} : vector<304x256xbf16>, vector<256x128xbf16>, vector<304x128xf32> -> vector<304x128xf32>
    %c0_15 = arith.constant 0 : index
    %c0_16 = arith.constant 0 : index
    %20 = vector.load %arg7[%c0_15, %c0_16] : memref<1x128xf32, #tpu.memory_space<vmem>>, vector<1x128xf32>
    %21 = vector.broadcast %20 : vector<1x128xf32> to vector<304x128xf32>
    %22 = arith.addf %19, %21 : vector<304x128xf32>
    %cst_17 = arith.constant 0.000000e+00 : f32
    %23 = vector.broadcast %cst_17 : f32 to vector<304x128xf32>
    %24 = arith.maximumf %22, %23 : vector<304x128xf32>
    %25 = arith.truncf %24 : vector<304x128xf32> to vector<304x128xbf16>
    %c0_18 = arith.constant 0 : index
    %c0_19 = arith.constant 0 : index
    %26 = vector.load %arg8[%c0_18, %c0_19] : memref<128x128xbf16, #tpu.memory_space<vmem>>, vector<128x128xbf16>
    %cst_20 = arith.constant dense<0.000000e+00> : vector<304x128xf32>
    %27 = tpu.matmul %25, %26, %cst_20 {dimension_numbers = #tpu.dot_dimension_numbers<[1], [0], [0], [1], [0, 0, 1, 1], [], []>} : vector<304x128xbf16>, vector<128x128xbf16>, vector<304x128xf32> -> vector<304x128xf32>
    %c0_21 = arith.constant 0 : index
    %c0_22 = arith.constant 0 : index
    %28 = vector.load %arg9[%c0_21, %c0_22] : memref<1x128xf32, #tpu.memory_space<vmem>>, vector<1x128xf32>
    %29 = vector.broadcast %28 : vector<1x128xf32> to vector<304x128xf32>
    %30 = arith.addf %27, %29 : vector<304x128xf32>
    %c0_23 = arith.constant 0 : index
    %c0_24 = arith.constant 0 : index
    %31 = vector.load %arg10[%c0_23, %c0_24] : memref<304x128xf32, #tpu.memory_space<vmem>>, vector<304x128xf32>
    tpu.vector_store %arg10[%c0_23, %c0_24], %30 {strides = array<i32>} : memref<304x128xf32, #tpu.memory_space<vmem>>, vector<304x128xf32>,
    return
  }
  func.func @transform_0(%arg0: i32) -> (i32, i32) {
    %c0_i32 = arith.constant 0 : i32
    %c0_i32_0 = arith.constant 0 : i32
    return %arg0, %c0_i32 : i32, i32
  }
  func.func @transform_1(%arg0: i32) -> (i32, i32) {
    %c0_i32 = arith.constant 0 : i32
    %c0_i32_0 = arith.constant 0 : i32
    %c0_i32_1 = arith.constant 0 : i32
    return %c0_i32, %c0_i32_0 : i32, i32
  }
  func.func @transform_2(%arg0: i32) -> (i32, i32) {
    %c0_i32 = arith.constant 0 : i32
    %c0_i32_0 = arith.constant 0 : i32
    %c0_i32_1 = arith.constant 0 : i32
    return %c0_i32, %c0_i32_0 : i32, i32
  }
  func.func @transform_3(%arg0: i32) -> (i32, i32) {
    %c0_i32 = arith.constant 0 : i32
    %c0_i32_0 = arith.constant 0 : i32
    %c0_i32_1 = arith.constant 0 : i32
    return %c0_i32, %c0_i32_0 : i32, i32
  }
  func.func @transform_4(%arg0: i32) -> (i32, i32) {
    %c0_i32 = arith.constant 0 : i32
    %c0_i32_0 = arith.constant 0 : i32
    %c0_i32_1 = arith.constant 0 : i32
    return %c0_i32, %c0_i32_0 : i32, i32
  }
  func.func @transform_5(%arg0: i32) -> (i32, i32) {
    %c0_i32 = arith.constant 0 : i32
    %c0_i32_0 = arith.constant 0 : i32
    %c0_i32_1 = arith.constant 0 : i32
    return %c0_i32, %c0_i32_0 : i32, i32
  }
  func.func @transform_6(%arg0: i32) -> (i32, i32) {
    %c0_i32 = arith.constant 0 : i32
    %c0_i32_0 = arith.constant 0 : i32
    %c0_i32_1 = arith.constant 0 : i32
    return %c0_i32, %c0_i32_0 : i32, i32
  }
  func.func @transform_7(%arg0: i32) -> (i32, i32) {
    %c0_i32 = arith.constant 0 : i32
    %c0_i32_0 = arith.constant 0 : i32
    %c0_i32_1 = arith.constant 0 : i32
    return %c0_i32, %c0_i32_0 : i32, i32
  }
  func.func @transform_8(%arg0: i32) -> (i32, i32) {
    %c0_i32 = arith.constant 0 : i32
    %c0_i32_0 = arith.constant 0 : i32
    %c0_i32_1 = arith.constant 0 : i32
    return %c0_i32, %c0_i32_0 : i32, i32
  }
  func.func @transform_9(%arg0: i32) -> (i32, i32) {
    %c0_i32 = arith.constant 0 : i32
    %c0_i32_0 = arith.constant 0 : i32
    return %arg0, %c0_i32 : i32, i32
  }
}

</mosaic_0001>

<llo_original>
// kernel: _forward_impl.1
$region0: #{_forward_impl.1}
  #allocation0 [shape = 'u32[]', space=smem, size = 0x4, offset = 0x4, fixed_abs, tag = 'smem constant byte address 0x4 - core index']
  #allocation1 [shape = 'u32[144,128]{1,0:T(1,128)}', space=vmem, size = 0x12000, scoped, tag = 'internal scratch']
  %s0 = inlined_call_operand.vmem [shape: f32[304,784], index: 0, kind: input, shape index: {}]
  %s1 = inlined_call_operand.vmem [shape: bf16[784,512], index: 1, kind: input, shape index: {}]
  %s2 = inlined_call_operand.vmem [shape: f32[1,512], index: 2, kind: input, shape index: {}]
  %s3 = inlined_call_operand.vmem [shape: bf16[512,256], index: 3, kind: input, shape index: {}]
  %s4 = inlined_call_operand.vmem [shape: f32[1,256], index: 4, kind: input, shape index: {}]
  %s5 = inlined_call_operand.vmem [shape: bf16[256,128], index: 5, kind: input, shape index: {}]
  %s6 = inlined_call_operand.vmem [shape: f32[1,128], index: 6, kind: input, shape index: {}]
  %s7 = inlined_call_operand.vmem [shape: bf16[128,128], index: 7, kind: input, shape index: {}]
  %s8 = inlined_call_operand.vmem [shape: f32[1,128], index: 8, kind: input, shape index: {}]
  %s9 = inlined_call_operand.vmem [shape: f32[304,128], index: 9, kind: output, shape index: {}]
  %s10 = sld [smem:[#allocation0]]
  $region46: #{_forward_impl.1} parent=0
    _
  %s12 = ssub.s32 1, %s10
  %s13 = scalar_select 0, %s12, %s10
  // Predicated region
  $region2: #{_forward_impl.1} parent=0 // pred_check
    _
  $region3: #{_forward_impl.1} parent=0 // pred_check_branch
    %15 = sbr.rel (0) target = $region5
  $region4: #{_forward_impl.1} parent=0 // pred_region
    _
  $region5: #{_forward_impl.1} parent=0 // pred_fallthru
    _
  // Predicated region
  $region6: #{_forward_impl.1} parent=0 // pred_check
    _
  $region7: #{_forward_impl.1} parent=0 // pred_check_branch
    %17 = sbr.rel (0) target = $region9
  $region8: #{_forward_impl.1} parent=0 // pred_region
    _
  $region9: #{_forward_impl.1} parent=0 // pred_fallthru
    _
  // Predicated region
  $region10: #{_forward_impl.1} parent=0 // pred_check
    _
  $region11: #{_forward_impl.1} parent=0 // pred_check_branch
    %19 = sbr.rel (0) target = $region13
  $region12: #{_forward_impl.1} parent=0 // pred_region
    _
  $region13: #{_forward_impl.1} parent=0 // pred_fallthru
    _
  // Predicated region
  $region14: #{_forward_impl.1} parent=0 // pred_check
    _
  $region15: #{_forward_impl.1} parent=0 // pred_check_branch
    %21 = sbr.rel (0) target = $region17
  $region16: #{_forward_impl.1} parent=0 // pred_region
    _
  $region17: #{_forward_impl.1} parent=0 // pred_fallthru
    _
  // Predicated region
  $region18: #{_forward_impl.1} parent=0 // pred_check
    _
  $region19: #{_forward_impl.1} parent=0 // pred_check_branch
    %23 = sbr.rel (0) target = $region21
  $region20: #{_forward_impl.1} parent=0 // pred_region
    _
  $region21: #{_forward_impl.1} parent=0 // pred_fallthru
    _
  // Predicated region
  $region22: #{_forward_impl.1} parent=0 // pred_check
    _
  $region23: #{_forward_impl.1} parent=0 // pred_check_branch
    %25 = sbr.rel (0) target = $region25
  $region24: #{_forward_impl.1} parent=0 // pred_region
    _
  $region25: #{_forward_impl.1} parent=0 // pred_fallthru
    _
  // Predicated region
  $region26: #{_forward_impl.1} parent=0 // pred_check
    _
  $region27: #{_forward_impl.1} parent=0 // pred_check_branch
    %27 = sbr.rel (0) target = $region29
  $region28: #{_forward_impl.1} parent=0 // pred_region
    _
  $region29: #{_forward_impl.1} parent=0 // pred_fallthru
    _
  // Predicated region
  $region30: #{_forward_impl.1} parent=0 // pred_check
    _
  $region31: #{_forward_impl.1} parent=0 // pred_check_branch
    %29 = sbr.rel (0) target = $region33
  $region32: #{_forward_impl.1} parent=0 // pred_region
    _
  $region33: #{_forward_impl.1} parent=0 // pred_fallthru
    _
  // Predicated region
  $region34: #{_forward_impl.1} parent=0 // pred_check
    _
  $region35: #{_forward_impl.1} parent=0 // pred_check_branch
    %31 = sbr.rel (0) target = $region37
  $region36: #{_forward_impl.1} parent=0 // pred_region
    _
  $region37: #{_forward_impl.1} parent=0 // pred_fallthru
    _
  %v33 = vld [vmem:[%s0] sm:$0xff]
  %v34 = vld [vmem:[%s0 + $0x8] sm:$0xff]
  %v35 = vld [vmem:[%s0 + $0x10] sm:$0xff]
  %v36 = vld [vmem:[%s0 + $0x18] sm:$0xff]
  %v37 = vld [vmem:[%s0 + $0x20] sm:$0xff]
  %v38 = vld [vmem:[%s0 + $0x28] sm:$0xff]
  %v39 = vld [vmem:[%s0 + $0x30] sm:$0xff]
  %v40 = vld [vmem:[%s0 + $0x38] sm:$0xff]
  %v41 = vld [vmem:[%s0 + $0x40] sm:$0xff]
  %v42 = vld [vmem:[%s0 + $0x48] sm:$0xff]
  %v43 = vld [vmem:[%s0 + $0x50] sm:$0xff]
  %v44 = vld [vmem:[%s0 + $0x58] sm:$0xff]
  %v45 = vld [vmem:[%s0 + $0x60] sm:$0xff]
  %v46 = vld [vmem:[%s0 + $0x68] sm:$0xff]
  %v47 = vld [vmem:[%s0 + $0x70] sm:$0xff]
  %v48 = vld [vmem:[%s0 + $0x78] sm:$0xff]
  %v49 = vld [vmem:[%s0 + $0x80] sm:$0xff]
  %v50 = vld [vmem:[%s0 + $0x88] sm:$0xff]
  %v51 = vld [vmem:[%s0 + $0x90] sm:$0xff]
  %v52 = vld [vmem:[%s0 + $0x98] sm:$0xff]
  %v53 = vld [vmem:[%s0 + $0xa0] sm:$0xff]
  %v54 = vld [vmem:[%s0 + $0xa8] sm:$0xff]
  %v55 = vld [vmem:[%s0 + $0xb0] sm:$0xff]
  %v56 = vld [vmem:[%s0 + $0xb8] sm:$0xff]
  %v57 = vld [vmem:[%s0 + $0xc0] sm:$0xff]
  %v58 = vld [vmem:[%s0 + $0xc8] sm:$0xff]
  %v59 = vld [vmem:[%s0 + $0xd0] sm:$0xff]
  %v60 = vld [vmem:[%s0 + $0xd8] sm:$0xff]
  %v61 = vld [vmem:[%s0 + $0xe0] sm:$0xff]
  %v62 = vld [vmem:[%s0 + $0xe8] sm:$0xff]
  %v63 = vld [vmem:[%s0 + $0xf0] sm:$0xff]
  %v64 = vld [vmem:[%s0 + $0xf8] sm:$0xff]
  %v65 = vld [vmem:[%s0 + $0x100] sm:$0xff]
  %v66 = vld [vmem:[%s0 + $0x108] sm:$0xff]
  %v67 = vld [vmem:[%s0 + $0x110] sm:$0xff]
  %v68 = vld [vmem:[%s0 + $0x118] sm:$0xff]
  %v69 = vld [vmem:[%s0 + $0x120] sm:$0xff]
  %v70 = vld [vmem:[%s0 + $0x128] sm:$0xff]
  %v71 = vld [vmem:[%s0 + $0x130] sm:$0xff]
  %v72 = vld [vmem:[%s0 + $0x138] sm:$0xff]
  %v73 = vld [vmem:[%s0 + $0x140] sm:$0xff]
  %v74 = vld [vmem:[%s0 + $0x148] sm:$0xff]
  %v75 = vld [vmem:[%s0 + $0x150] sm:$0xff]
  %v76 = vld [vmem:[%s0 + $0x158] sm:$0xff]
  %v77 = vld [vmem:[%s0 + $0x160] sm:$0xff]
  %v78 = vld [vmem:[%s0 + $0x168] sm:$0xff]
  %v79 = vld [vmem:[%s0 + $0x170] sm:$0xff]
  %v80 = vld [vmem:[%s0 + $0x178] sm:$0xff]
  %v81 = vld [vmem:[%s0 + $0x180] sm:$0xff]
  %v82 = vld [vmem:[%s0 + $0x188] sm:$0xff]
  %v83 = vld [vmem:[%s0 + $0x190] sm:$0xff]
  %v84 = vld [vmem:[%s0 + $0x198] sm:$0xff]
  %v85 = vld [vmem:[%s0 + $0x1a0] sm:$0xff]
  %v86 = vld [vmem:[%s0 + $0x1a8] sm:$0xff]
  %v87 = vld [vmem:[%s0 + $0x1b0] sm:$0xff]
  %v88 = vld [vmem:[%s0 + $0x1b8] sm:$0xff]
  %v89 = vld [vmem:[%s0 + $0x1c0] sm:$0xff]
  %v90 = vld [vmem:[%s0 + $0x1c8] sm:$0xff]
  %v91 = vld [vmem:[%s0 + $0x1d0] sm:$0xff]
  %v92 = vld [vmem:[%s0 + $0x1d8] sm:$0xff]
  %v93 = vld [vmem:[%s0 + $0x1e0] sm:$0xff]
  %v94 = vld [vmem:[%s0 + $0x1e8] sm:$0xff]
  %v95 = vld [vmem:[%s0 + $0x1f0] sm:$0xff]
  %v96 = vld [vmem:[%s0 + $0x1f8] sm:$0xff]
  %v97 = vld [vmem:[%s0 + $0x200] sm:$0xff]
  %v98 = vld [vmem:[%s0 + $0x208] sm:$0xff]
  %v99 = vld [vmem:[%s0 + $0x210] sm:$0xff]
  %v100 = vld [vmem:[%s0 + $0x218] sm:$0xff]
  %v101 = vld [vmem:[%s0 + $0x220] sm:$0xff]
  %v102 = vld [vmem:[%s0 + $0x228] sm:$0xff]
  %v103 = vld [vmem:[%s0 + $0x230] sm:$0xff]
  %v104 = vld [vmem:[%s0 + $0x238] sm:$0xff]
  %v105 = vld [vmem:[%s0 + $0x240] sm:$0xff]
  %v106 = vld [vmem:[%s0 + $0x248] sm:$0xff]
  %v107 = vld [vmem:[%s0 + $0x250] sm:$0xff]
  %v108 = vld [vmem:[%s0 + $0x258] sm:$0xff]
  %v109 = vld [vmem:[%s0 + $0x260] sm:$0xff]
  %v110 = vld [vmem:[%s0 + $0x268] sm:$0xff]
  %v111 = vld [vmem:[%s0 + $0x270] sm:$0xff]
  %v112 = vld [vmem:[%s0 + $0x278] sm:$0xff]
  %v113 = vld [vmem:[%s0 + $0x280] sm:$0xff]
  %v114 = vld [vmem:[%s0 + $0x288] sm:$0xff]
  %v115 = vld [vmem:[%s0 + $0x290] sm:$0xff]
  %v116 = vld [vmem:[%s0 + $0x298] sm:$0xff]
  %v117 = vld [vmem:[%s0 + $0x2a0] sm:$0xff]
  %v118 = vld [vmem:[%s0 + $0x2a8] sm:$0xff]
  %v119 = vld [vmem:[%s0 + $0x2b0] sm:$0xff]
  %v120 = vld [vmem:[%s0 + $0x2b8] sm:$0xff]
  %v121 = vld [vmem:[%s0 + $0x2c0] sm:$0xff]
  %v122 = vld [vmem:[%s0 + $0x2c8] sm:$0xff]
  %v123 = vld [vmem:[%s0 + $0x2d0] sm:$0xff]
  %v124 = vld [vmem:[%s0 + $0x2d8] sm:$0xff]
  %v125 = vld [vmem:[%s0 + $0x2e0] sm:$0xff]
  %v126 = vld [vmem:[%s0 + $0x2e8] sm:$0xff]
  %v127 = vld [vmem:[%s0 + $0x2f0] sm:$0xff]
  %v128 = vld [vmem:[%s0 + $0x2f8] sm:$0xff]
  %v129 = vld [vmem:[%s0 + $0x300] sm:$0xff]
  %v130 = vld [vmem:[%s0 + $0x308] sm:$0xff]
  %v131 = vld [vmem:[%s0 + $0x310] sm:$0xff]
  %v132 = vld [vmem:[%s0 + $0x318] sm:$0xff]
  %v133 = vld [vmem:[%s0 + $0x320] sm:$0xff]
  %v134 = vld [vmem:[%s0 + $0x328] sm:$0xff]
  %v135 = vld [vmem:[%s0 + $0x330] sm:$0xff]
  %v136 = vld [vmem:[%s0 + $0x338] sm:$0xff]
  %v137 = vld [vmem:[%s0 + $0x340] sm:$0xff]
  %v138 = vld [vmem:[%s0 + $0x348] sm:$0xff]
  %v139 = vld [vmem:[%s0 + $0x350] sm:$0xff]
  %v140 = vld [vmem:[%s0 + $0x358] sm:$0xff]
  %v141 = vld [vmem:[%s0 + $0x360] sm:$0xff]
  %v142 = vld [vmem:[%s0 + $0x368] sm:$0xff]
  %v143 = vld [vmem:[%s0 + $0x370] sm:$0xff]
  %v144 = vld [vmem:[%s0 + $0x378] sm:$0xff]
  %v145 = vld [vmem:[%s0 + $0x380] sm:$0xff]
  %v146 = vld [vmem:[%s0 + $0x388] sm:$0xff]
  %v147 = vld [vmem:[%s0 + $0x390] sm:$0xff]
  %v148 = vld [vmem:[%s0 + $0x398] sm:$0xff]
  %v149 = vld [vmem:[%s0 + $0x3a0] sm:$0xff]
  %v150 = vld [vmem:[%s0 + $0x3a8] sm:$0xff]
  %v151 = vld [vmem:[%s0 + $0x3b0] sm:$0xff]
  %v152 = vld [vmem:[%s0 + $0x3b8] sm:$0xff]
  %v153 = vld [vmem:[%s0 + $0x3c0] sm:$0xff]
  %v154 = vld [vmem:[%s0 + $0x3c8] sm:$0xff]
  %v155 = vld [vmem:[%s0 + $0x3d0] sm:$0xff]
  %v156 = vld [vmem:[%s0 + $0x3d8] sm:$0xff]
  %v157 = vld [vmem:[%s0 + $0x3e0] sm:$0xff]
  %v158 = vld [vmem:[%s0 + $0x3e8] sm:$0xff]
  %v159 = vld [vmem:[%s0 + $0x3f0] sm:$0xff]
  %v160 = vld [vmem:[%s0 + $0x3f8] sm:$0xff]
  %v161 = vld [vmem:[%s0 + $0x400] sm:$0xff]
  %v162 = vld [vmem:[%s0 + $0x408] sm:$0xff]
  %v163 = vld [vmem:[%s0 + $0x410] sm:$0xff]
  %v164 = vld [vmem:[%s0 + $0x418] sm:$0xff]
  %v165 = vld [vmem:[%s0 + $0x420] sm:$0xff]
  %v166 = vld [vmem:[%s0 + $0x428] sm:$0xff]
  %v167 = vld [vmem:[%s0 + $0x430] sm:$0xff]
  %v168 = vld [vmem:[%s0 + $0x438] sm:$0xff]
  %v169 = vld [vmem:[%s0 + $0x440] sm:$0xff]
  %v170 = vld [vmem:[%s0 + $0x448] sm:$0xff]
  %v171 = vld [vmem:[%s0 + $0x450] sm:$0xff]
  %v172 = vld [vmem:[%s0 + $0x458] sm:$0xff]
  %v173 = vld [vmem:[%s0 + $0x460] sm:$0xff]
  %v174 = vld [vmem:[%s0 + $0x468] sm:$0xff]
  %v175 = vld [vmem:[%s0 + $0x470] sm:$0xff]
  %v176 = vld [vmem:[%s0 + $0x478] sm:$0xff]
  %v177 = vld [vmem:[%s0 + $0x480] sm:$0xff]
  %v178 = vld [vmem:[%s0 + $0x488] sm:$0xff]
  %v179 = vld [vmem:[%s0 + $0x490] sm:$0xff]
  %v180 = vld [vmem:[%s0 + $0x498] sm:$0xff]
  %v181 = vld [vmem:[%s0 + $0x4a0] sm:$0xff]
  %v182 = vld [vmem:[%s0 + $0x4a8] sm:$0xff]
  %v183 = vld [vmem:[%s0 + $0x4b0] sm:$0xff]
  %v184 = vld [vmem:[%s0 + $0x4b8] sm:$0xff]
  %v185 = vld [vmem:[%s0 + $0x4c0] sm:$0xff]
  %v186 = vld [vmem:[%s0 + $0x4c8] sm:$0xff]
  %v187 = vld [vmem:[%s0 + $0x4d0] sm:$0xff]
  %v188 = vld [vmem:[%s0 + $0x4d8] sm:$0xff]
  %v189 = vld [vmem:[%s0 + $0x4e0] sm:$0xff]
  %v190 = vld [vmem:[%s0 + $0x4e8] sm:$0xff]
  %v191 = vld [vmem:[%s0 + $0x4f0] sm:$0xff]
  %v192 = vld [vmem:[%s0 + $0x4f8] sm:$0xff]
  %v193 = vld [vmem:[%s0 + $0x500] sm:$0xff]
  %v194 = vld [vmem:[%s0 + $0x508] sm:$0xff]
  %v195 = vld [vmem:[%s0 + $0x510] sm:$0xff]
  %v196 = vld [vmem:[%s0 + $0x518] sm:$0xff]
  %v197 = vld [vmem:[%s0 + $0x520] sm:$0xff]
  %v198 = vld [vmem:[%s0 + $0x528] sm:$0xff]
  %v199 = vld [vmem:[%s0 + $0x530] sm:$0xff]
  %v200 = vld [vmem:[%s0 + $0x538] sm:$0xff]
  %v201 = vld [vmem:[%s0 + $0x540] sm:$0xff]
  %v202 = vld [vmem:[%s0 + $0x548] sm:$0xff]
  %v203 = vld [vmem:[%s0 + $0x550] sm:$0xff]
  %v204 = vld [vmem:[%s0 + $0x558] sm:$0xff]
  %v205 = vld [vmem:[%s0 + $0x560] sm:$0xff]
  %v206 = vld [vmem:[%s0 + $0x568] sm:$0xff]
  %v207 = vld [vmem:[%s0 + $0x570] sm:$0xff]
  %v208 = vld [vmem:[%s0 + $0x578] sm:$0xff]
  %v209 = vld [vmem:[%s0 + $0x580] sm:$0xff]
  %v210 = vld [vmem:[%s0 + $0x588] sm:$0xff]
  %v211 = vld [vmem:[%s0 + $0x590] sm:$0xff]
  %v212 = vld [vmem:[%s0 + $0x598] sm:$0xff]
  %v213 = vld [vmem:[%s0 + $0x5a0] sm:$0xff]
  %v214 = vld [vmem:[%s0 + $0x5a8] sm:$0xff]
  %v215 = vld [vmem:[%s0 + $0x5b0] sm:$0xff]
  %v216 = vld [vmem:[%s0 + $0x5b8] sm:$0xff]
  %v217 = vld [vmem:[%s0 + $0x5c0] sm:$0xff]
  %v218 = vld [vmem:[%s0 + $0x5c8] sm:$0xff]
  %v219 = vld [vmem:[%s0 + $0x5d0] sm:$0xff]
  %v220 = vld [vmem:[%s0 + $0x5d8] sm:$0xff]
  %v221 = vld [vmem:[%s0 + $0x5e0] sm:$0xff]
  %v222 = vld [vmem:[%s0 + $0x5e8] sm:$0xff]
  %v223 = vld [vmem:[%s0 + $0x5f0] sm:$0xff]
  %v224 = vld [vmem:[%s0 + $0x5f8] sm:$0xff]
  %v225 = vld [vmem:[%s0 + $0x600] sm:$0xff]
  %v226 = vld [vmem:[%s0 + $0x608] sm:$0xff]
  %v227 = vld [vmem:[%s0 + $0x610] sm:$0xff]
  %v228 = vld [vmem:[%s0 + $0x618] sm:$0xff]
  %v229 = vld [vmem:[%s0 + $0x620] sm:$0xff]
  %v230 = vld [vmem:[%s0 + $0x628] sm:$0xff]
  %v231 = vld [vmem:[%s0 + $0x630] sm:$0xff]
  %v232 = vld [vmem:[%s0 + $0x638] sm:$0xff]
  %v233 = vld [vmem:[%s0 + $0x640] sm:$0xff]
  %v234 = vld [vmem:[%s0 + $0x648] sm:$0xff]
  %v235 = vld [vmem:[%s0 + $0x650] sm:$0xff]
  %v236 = vld [vmem:[%s0 + $0x658] sm:$0xff]
  %v237 = vld [vmem:[%s0 + $0x660] sm:$0xff]
  %v238 = vld [vmem:[%s0 + $0x668] sm:$0xff]
  %v239 = vld [vmem:[%s0 + $0x670] sm:$0xff]
  %v240 = vld [vmem:[%s0 + $0x678] sm:$0xff]
  %v241 = vld [vmem:[%s0 + $0x680] sm:$0xff]
  %v242 = vld [vmem:[%s0 + $0x688] sm:$0xff]
  %v243 = vld [vmem:[%s0 + $0x690] sm:$0xff]
  %v244 = vld [vmem:[%s0 + $0x698] sm:$0xff]
  %v245 = vld [vmem:[%s0 + $0x6a0] sm:$0xff]
  %v246 = vld [vmem:[%s0 + $0x6a8] sm:$0xff]
  %v247 = vld [vmem:[%s0 + $0x6b0] sm:$0xff]
  %v248 = vld [vmem:[%s0 + $0x6b8] sm:$0xff]
  %v249 = vld [vmem:[%s0 + $0x6c0] sm:$0xff]
  %v250 = vld [vmem:[%s0 + $0x6c8] sm:$0xff]
  %v251 = vld [vmem:[%s0 + $0x6d0] sm:$0xff]
  %v252 = vld [vmem:[%s0 + $0x6d8] sm:$0xff]
  %v253 = vld [vmem:[%s0 + $0x6e0] sm:$0xff]
  %v254 = vld [vmem:[%s0 + $0x6e8] sm:$0xff]
  %v255 = vld [vmem:[%s0 + $0x6f0] sm:$0xff]
  %v256 = vld [vmem:[%s0 + $0x6f8] sm:$0xff]
  %v257 = vld [vmem:[%s0 + $0x700] sm:$0xff]
  %v258 = vld [vmem:[%s0 + $0x708] sm:$0xff]
  %v259 = vld [vmem:[%s0 + $0x710] sm:$0xff]
  %v260 = vld [vmem:[%s0 + $0x718] sm:$0xff]
  %v261 = vld [vmem:[%s0 + $0x720] sm:$0xff]
  %v262 = vld [vmem:[%s0 + $0x728] sm:$0xff]
  %v263 = vld [vmem:[%s0 + $0x730] sm:$0xff]
  %v264 = vld [vmem:[%s0 + $0x738] sm:$0xff]
  %v265 = vld [vmem:[%s0 + $0x740] sm:$0xff]
  %v266 = vld [vmem:[%s0 + $0x748] sm:$0xff]
  %v267 = vld [vmem:[%s0 + $0x750] sm:$0xff]
  %v268 = vld [vmem:[%s0 + $0x758] sm:$0xff]
  %v269 = vld [vmem:[%s0 + $0x760] sm:$0xff]
  %v270 = vld [vmem:[%s0 + $0x768] sm:$0xff]
  %v271 = vld [vmem:[%s0 + $0x770] sm:$0xff]
  %v272 = vld [vmem:[%s0 + $0x778] sm:$0xff]
  %v273 = vld [vmem:[%s0 + $0x780] sm:$0xff]
  %v274 = vld [vmem:[%s0 + $0x788] sm:$0xff]
  %v275 = vld [vmem:[%s0 + $0x790] sm:$0xff]
  %v276 = vld [vmem:[%s0 + $0x798] sm:$0xff]
  %v277 = vld [vmem:[%s0 + $0x7a0] sm:$0xff]
  %v278 = vld [vmem:[%s0 + $0x7a8] sm:$0xff]
  %v279 = vld [vmem:[%s0 + $0x7b0] sm:$0xff]
  %v280 = vld [vmem:[%s0 + $0x7b8] sm:$0xff]
  %v281 = vld [vmem:[%s0 + $0x7c0] sm:$0xff]
  %v282 = vld [vmem:[%s0 + $0x7c8] sm:$0xff]
  %v283 = vld [vmem:[%s0 + $0x7d0] sm:$0xff]
  %v284 = vld [vmem:[%s0 + $0x7d8] sm:$0xff]
  %v285 = vld [vmem:[%s0 + $0x7e0] sm:$0xff]
  %v286 = vld [vmem:[%s0 + $0x7e8] sm:$0xff]
  %v287 = vld [vmem:[%s0 + $0x7f0] sm:$0xff]
  %v288 = vld [vmem:[%s0 + $0x7f8] sm:$0xff]
  %v289 = vld [vmem:[%s0 + $0x800] sm:$0xff]
  %v290 = vld [vmem:[%s0 + $0x808] sm:$0xff]
  %v291 = vld [vmem:[%s0 + $0x810] sm:$0xff]
  %v292 = vld [vmem:[%s0 + $0x818] sm:$0xff]
  %v293 = vld [vmem:[%s0 + $0x820] sm:$0xff]
  %v294 = vld [vmem:[%s0 + $0x828] sm:$0xff]
  %v295 = vld [vmem:[%s0 + $0x830] sm:$0xff]
  %v296 = vld [vmem:[%s0 + $0x838] sm:$0xff]
  %v297 = vld [vmem:[%s0 + $0x840] sm:$0xff]
  %v298 = vld [vmem:[%s0 + $0x848] sm:$0xff]
  %v299 = vpack.c.bf16 %v40, %v33
  %v300 = vpack.c.bf16 %v41, %v34
  %v301 = vpack.c.bf16 %v42, %v35
  %v302 = vpack.c.bf16 %v43, %v36
  %v303 = vpack.c.bf16 %v44, %v37
  %v304 = vpack.c.bf16 %v45, %v38
  %v305 = vpack.c.bf16 %v46, %v39
  %v306 = vpack.c.bf16 %v54, %v47
  %v307 = vpack.c.bf16 %v55, %v48
  %v308 = vpack.c.bf16 %v56, %v49
  %v309 = vpack.c.bf16 %v57, %v50
  %v310 = vpack.c.bf16 %v58, %v51
  %v311 = vpack.c.bf16 %v59, %v52
  %v312 = vpack.c.bf16 %v60, %v53
  %v313 = vpack.c.bf16 %v68, %v61
  %v314 = vpack.c.bf16 %v69, %v62
  %v315 = vpack.c.bf16 %v70, %v63
  %v316 = vpack.c.bf16 %v71, %v64
  %v317 = vpack.c.bf16 %v72, %v65
  %v318 = vpack.c.bf16 %v73, %v66
  %v319 = vpack.c.bf16 %v74, %v67
  %v320 = vpack.c.bf16 %v82, %v75
  %v321 = vpack.c.bf16 %v83, %v76
  %v322 = vpack.c.bf16 %v84, %v77
  %v323 = vpack.c.bf16 %v85, %v78
  %v324 = vpack.c.bf16 %v86, %v79
  %v325 = vpack.c.bf16 %v87, %v80
  %v326 = vpack.c.bf16 %v88, %v81
  %v327 = vpack.c.bf16 %v96, %v89
  %v328 = vpack.c.bf16 %v97, %v90
  %v329 = vpack.c.bf16 %v98, %v91
  %v330 = vpack.c.bf16 %v99, %v92
  %v331 = vpack.c.bf16 %v100, %v93
  %v332 = vpack.c.bf16 %v101, %v94
  %v333 = vpack.c.bf16 %v102, %v95
  %v334 = vpack.c.bf16 %v110, %v103
  %v335 = vpack.c.bf16 %v111, %v104
  %v336 = vpack.c.bf16 %v112, %v105
  %v337 = vpack.c.bf16 %v113, %v106
  %v338 = vpack.c.bf16 %v114, %v107
  %v339 = vpack.c.bf16 %v115, %v108
  %v340 = vpack.c.bf16 %v116, %v109
  %v341 = vpack.c.bf16 %v124, %v117
  %v342 = vpack.c.bf16 %v125, %v118
  %v343 = vpack.c.bf16 %v126, %v119
  %v344 = vpack.c.bf16 %v127, %v120
  %v345 = vpack.c.bf16 %v128, %v121
  %v346 = vpack.c.bf16 %v129, %v122
  %v347 = vpack.c.bf16 %v130, %v123
  %v348 = vpack.c.bf16 %v138, %v131
  %v349 = vpack.c.bf16 %v139, %v132
  %v350 = vpack.c.bf16 %v140, %v133
  %v351 = vpack.c.bf16 %v141, %v134
  %v352 = vpack.c.bf16 %v142, %v135
  %v353 = vpack.c.bf16 %v143, %v136
  %v354 = vpack.c.bf16 %v144, %v137
  %v355 = vpack.c.bf16 %v152, %v145
  %v356 = vpack.c.bf16 %v153, %v146
  %v357 = vpack.c.bf16 %v154, %v147
  %v358 = vpack.c.bf16 %v155, %v148
  %v359 = vpack.c.bf16 %v156, %v149
  %v360 = vpack.c.bf16 %v157, %v150
  %v361 = vpack.c.bf16 %v158, %v151
  %v362 = vpack.c.bf16 %v166, %v159
  %v363 = vpack.c.bf16 %v167, %v160
  %v364 = vpack.c.bf16 %v168, %v161
  %v365 = vpack.c.bf16 %v169, %v162
  %v366 = vpack.c.bf16 %v170, %v163
  %v367 = vpack.c.bf16 %v171, %v164
  %v368 = vpack.c.bf16 %v172, %v165
  %v369 = vpack.c.bf16 %v180, %v173
  %v370 = vpack.c.bf16 %v181, %v174
  %v371 = vpack.c.bf16 %v182, %v175
  %v372 = vpack.c.bf16 %v183, %v176
  %v373 = vpack.c.bf16 %v184, %v177
  %v374 = vpack.c.bf16 %v185, %v178
  %v375 = vpack.c.bf16 %v186, %v179
  %v376 = vpack.c.bf16 %v194, %v187
  %v377 = vpack.c.bf16 %v195, %v188
  %v378 = vpack.c.bf16 %v196, %v189
  %v379 = vpack.c.bf16 %v197, %v190
  %v380 = vpack.c.bf16 %v198, %v191
  %v381 = vpack.c.bf16 %v199, %v192
  %v382 = vpack.c.bf16 %v200, %v193
  %v383 = vpack.c.bf16 %v208, %v201
  %v384 = vpack.c.bf16 %v209, %v202
  %v385 = vpack.c.bf16 %v210, %v203
  %v386 = vpack.c.bf16 %v211, %v204
  %v387 = vpack.c.bf16 %v212, %v205
  %v388 = vpack.c.bf16 %v213, %v206
  %v389 = vpack.c.bf16 %v214, %v207
  %v390 = vpack.c.bf16 %v222, %v215
  %v391 = vpack.c.bf16 %v223, %v216
  %v392 = vpack.c.bf16 %v224, %v217
  %v393 = vpack.c.bf16 %v225, %v218
  %v394 = vpack.c.bf16 %v226, %v219
  %v395 = vpack.c.bf16 %v227, %v220
  %v396 = vpack.c.bf16 %v228, %v221
  %v397 = vpack.c.bf16 %v236, %v229
  %v398 = vpack.c.bf16 %v237, %v230
  %v399 = vpack.c.bf16 %v238, %v231
  %v400 = vpack.c.bf16 %v239, %v232
  %v401 = vpack.c.bf16 %v240, %v233
  %v402 = vpack.c.bf16 %v241, %v234
  %v403 = vpack.c.bf16 %v242, %v235
  %v404 = vpack.c.bf16 %v250, %v243
  %v405 = vpack.c.bf16 %v251, %v244
  %v406 = vpack.c.bf16 %v252, %v245
  %v407 = vpack.c.bf16 %v253, %v246
  %v408 = vpack.c.bf16 %v254, %v247
  %v409 = vpack.c.bf16 %v255, %v248
  %v410 = vpack.c.bf16 %v256, %v249
  %v411 = vpack.c.bf16 %v264, %v257
  %v412 = vpack.c.bf16 %v265, %v258
  %v413 = vpack.c.bf16 %v266, %v259
  %v414 = vpack.c.bf16 %v267, %v260
  %v415 = vpack.c.bf16 %v268, %v261
  %v416 = vpack.c.bf16 %v269, %v262
  %v417 = vpack.c.bf16 %v270, %v263
  %v418 = vpack.c.bf16 %v278, %v271
  %v419 = vpack.c.bf16 %v279, %v272
  %v420 = vpack.c.bf16 %v280, %v273
  %v421 = vpack.c.bf16 %v281, %v274
  %v422 = vpack.c.bf16 %v282, %v275
  %v423 = vpack.c.bf16 %v283, %v276
  %v424 = vpack.c.bf16 %v284, %v277
  %v425 = vpack.c.bf16 %v292, %v285
  %v426 = vpack.c.bf16 %v293, %v286
  %v427 = vpack.c.bf16 %v294, %v287
  %v428 = vpack.c.bf16 %v295, %v288
  %v429 = vpack.c.bf16 %v296, %v289
  %v430 = vpack.c.bf16 %v297, %v290
  %v431 = vpack.c.bf16 %v298, %v291
  %v432 = vld [vmem:[%s1] sm:$0xff]
  %v433 = vld [vmem:[%s1 + $0x8] sm:$0xff]
  %v434 = vld [vmem:[%s1 + $0x10] sm:$0xff]
  %v435 = vld [vmem:[%s1 + $0x18] sm:$0xff]
  %v436 = vld [vmem:[%s1 + $0x20] sm:$0xff]
  %v437 = vld [vmem:[%s1 + $0x28] sm:$0xff]
  %v438 = vld [vmem:[%s1 + $0x30] sm:$0xff]
  %v439 = vld [vmem:[%s1 + $0x38] sm:$0xff]
  %v440 = vld [vmem:[%s1 + $0x40] sm:$0xff]
  %v441 = vld [vmem:[%s1 + $0x48] sm:$0xff]
  %v442 = vld [vmem:[%s1 + $0x50] sm:$0xff]
  %v443 = vld [vmem:[%s1 + $0x58] sm:$0xff]
  %v444 = vld [vmem:[%s1 + $0x60] sm:$0xff]
  %v445 = vld [vmem:[%s1 + $0x68] sm:$0xff]
  %v446 = vld [vmem:[%s1 + $0x70] sm:$0xff]
  %v447 = vld [vmem:[%s1 + $0x78] sm:$0xff]
  %v448 = vld [vmem:[%s1 + $0x80] sm:$0xff]
  %v449 = vld [vmem:[%s1 + $0x88] sm:$0xff]
  %v450 = vld [vmem:[%s1 + $0x90] sm:$0xff]
  %v451 = vld [vmem:[%s1 + $0x98] sm:$0xff]
  %v452 = vld [vmem:[%s1 + $0xa0] sm:$0xff]
  %v453 = vld [vmem:[%s1 + $0xa8] sm:$0xff]
  %v454 = vld [vmem:[%s1 + $0xb0] sm:$0xff]
  %v455 = vld [vmem:[%s1 + $0xb8] sm:$0xff]
  %v456 = vld [vmem:[%s1 + $0xc0] sm:$0xff]
  %v457 = vld [vmem:[%s1 + $0xc8] sm:$0xff]
  %v458 = vld [vmem:[%s1 + $0xd0] sm:$0xff]
  %v459 = vld [vmem:[%s1 + $0xd8] sm:$0xff]
  %v460 = vld [vmem:[%s1 + $0xe0] sm:$0xff]
  %v461 = vld [vmem:[%s1 + $0xe8] sm:$0xff]
  %v462 = vld [vmem:[%s1 + $0xf0] sm:$0xff]
  %v463 = vld [vmem:[%s1 + $0xf8] sm:$0xff]
  %v464 = vld [vmem:[%s1 + $0x100] sm:$0xff]
  %v465 = vld [vmem:[%s1 + $0x108] sm:$0xff]
  %v466 = vld [vmem:[%s1 + $0x110] sm:$0xff]
  %v467 = vld [vmem:[%s1 + $0x118] sm:$0xff]
  %v468 = vld [vmem:[%s1 + $0x120] sm:$0xff]
  %v469 = vld [vmem:[%s1 + $0x128] sm:$0xff]
  %v470 = vld [vmem:[%s1 + $0x130] sm:$0xff]
  %v471 = vld [vmem:[%s1 + $0x138] sm:$0xff]
  %v472 = vld [vmem:[%s1 + $0x140] sm:$0xff]
  %v473 = vld [vmem:[%s1 + $0x148] sm:$0xff]
  %v474 = vld [vmem:[%s1 + $0x150] sm:$0xff]
  %v475 = vld [vmem:[%s1 + $0x158] sm:$0xff]
  %v476 = vld [vmem:[%s1 + $0x160] sm:$0xff]
  %v477 = vld [vmem:[%s1 + $0x168] sm:$0xff]
  %v478 = vld [vmem:[%s1 + $0x170] sm:$0xff]
  %v479 = vld [vmem:[%s1 + $0x178] sm:$0xff]
  %v480 = vld [vmem:[%s1 + $0x180] sm:$0xff]
  %v481 = vld [vmem:[%s1 + $0x188] sm:$0xff]
  %v482 = vld [vmem:[%s1 + $0x190] sm:$0xff]
  %v483 = vld [vmem:[%s1 + $0x198] sm:$0xff]
  %v484 = vld [vmem:[%s1 + $0x1a0] sm:$0xff]
  %v485 = vld [vmem:[%s1 + $0x1a8] sm:$0xff]
  %v486 = vld [vmem:[%s1 + $0x1b0] sm:$0xff]
  %v487 = vld [vmem:[%s1 + $0x1b8] sm:$0xff]
  %v488 = vld [vmem:[%s1 + $0x1c0] sm:$0xff]
  %v489 = vld [vmem:[%s1 + $0x1c8] sm:$0xff]
  %v490 = vld [vmem:[%s1 + $0x1d0] sm:$0xff]
  %v491 = vld [vmem:[%s1 + $0x1d8] sm:$0xff]
  %v492 = vld [vmem:[%s1 + $0x1e0] sm:$0xff]
  %v493 = vld [vmem:[%s1 + $0x1e8] sm:$0xff]
  %v494 = vld [vmem:[%s1 + $0x1f0] sm:$0xff]
  %v495 = vld [vmem:[%s1 + $0x1f8] sm:$0xff]
  %v496 = vld [vmem:[%s1 + $0x200] sm:$0xff]
  %v497 = vld [vmem:[%s1 + $0x208] sm:$0xff]
  %v498 = vld [vmem:[%s1 + $0x210] sm:$0xff]
  %v499 = vld [vmem:[%s1 + $0x218] sm:$0xff]
  %v500 = vld [vmem:[%s1 + $0x220] sm:$0xff]
  %v501 = vld [vmem:[%s1 + $0x228] sm:$0xff]
  %v502 = vld [vmem:[%s1 + $0x230] sm:$0xff]
  %v503 = vld [vmem:[%s1 + $0x238] sm:$0xff]
  %v504 = vld [vmem:[%s1 + $0x240] sm:$0xff]
  %v505 = vld [vmem:[%s1 + $0x248] sm:$0xff]
  %v506 = vld [vmem:[%s1 + $0x250] sm:$0xff]
  %v507 = vld [vmem:[%s1 + $0x258] sm:$0xff]
  %v508 = vld [vmem:[%s1 + $0x260] sm:$0xff]
  %v509 = vld [vmem:[%s1 + $0x268] sm:$0xff]
  %v510 = vld [vmem:[%s1 + $0x270] sm:$0xff]
  %v511 = vld [vmem:[%s1 + $0x278] sm:$0xff]
  %v512 = vld [vmem:[%s1 + $0x280] sm:$0xff]
  %v513 = vld [vmem:[%s1 + $0x288] sm:$0xff]
  %v514 = vld [vmem:[%s1 + $0x290] sm:$0xff]
  %v515 = vld [vmem:[%s1 + $0x298] sm:$0xff]
  %v516 = vld [vmem:[%s1 + $0x2a0] sm:$0xff]
  %v517 = vld [vmem:[%s1 + $0x2a8] sm:$0xff]
  %v518 = vld [vmem:[%s1 + $0x2b0] sm:$0xff]
  %v519 = vld [vmem:[%s1 + $0x2b8] sm:$0xff]
  %v520 = vld [vmem:[%s1 + $0x2c0] sm:$0xff]
  %v521 = vld [vmem:[%s1 + $0x2c8] sm:$0xff]
  %v522 = vld [vmem:[%s1 + $0x2d0] sm:$0xff]
  %v523 = vld [vmem:[%s1 + $0x2d8] sm:$0xff]
  %v524 = vld [vmem:[%s1 + $0x2e0] sm:$0xff]
  %v525 = vld [vmem:[%s1 + $0x2e8] sm:$0xff]
  %v526 = vld [vmem:[%s1 + $0x2f0] sm:$0xff]
  %v527 = vld [vmem:[%s1 + $0x2f8] sm:$0xff]
  %v528 = vld [vmem:[%s1 + $0x300] sm:$0xff]
  %v529 = vld [vmem:[%s1 + $0x308] sm:$0xff]
  %v530 = vld [vmem:[%s1 + $0x310] sm:$0xff]
  %v531 = vld [vmem:[%s1 + $0x318] sm:$0xff]
  %v532 = vld [vmem:[%s1 + $0x320] sm:$0xff]
  %v533 = vld [vmem:[%s1 + $0x328] sm:$0xff]
  %v534 = vld [vmem:[%s1 + $0x330] sm:$0xff]
  %v535 = vld [vmem:[%s1 + $0x338] sm:$0xff]
  %v536 = vld [vmem:[%s1 + $0x340] sm:$0xff]
  %v537 = vld [vmem:[%s1 + $0x348] sm:$0xff]
  %v538 = vld [vmem:[%s1 + $0x350] sm:$0xff]
  %v539 = vld [vmem:[%s1 + $0x358] sm:$0xff]
  %v540 = vld [vmem:[%s1 + $0x360] sm:$0xff]
  %v541 = vld [vmem:[%s1 + $0x368] sm:$0xff]
  %v542 = vld [vmem:[%s1 + $0x370] sm:$0xff]
  %v543 = vld [vmem:[%s1 + $0x378] sm:$0xff]
  %v544 = vld [vmem:[%s1 + $0x380] sm:$0xff]
  %v545 = vld [vmem:[%s1 + $0x388] sm:$0xff]
  %v546 = vld [vmem:[%s1 + $0x390] sm:$0xff]
  %v547 = vld [vmem:[%s1 + $0x398] sm:$0xff]
  %v548 = vld [vmem:[%s1 + $0x3a0] sm:$0xff]
  %v549 = vld [vmem:[%s1 + $0x3a8] sm:$0xff]
  %v550 = vld [vmem:[%s1 + $0x3b0] sm:$0xff]
  %v551 = vld [vmem:[%s1 + $0x3b8] sm:$0xff]
  %v552 = vld [vmem:[%s1 + $0x3c0] sm:$0xff]
  %v553 = vld [vmem:[%s1 + $0x3c8] sm:$0xff]
  %v554 = vld [vmem:[%s1 + $0x3d0] sm:$0xff]
  %v555 = vld [vmem:[%s1 + $0x3d8] sm:$0xff]
  %v556 = vld [vmem:[%s1 + $0x3e0] sm:$0xff]
  %v557 = vld [vmem:[%s1 + $0x3e8] sm:$0xff]
  %v558 = vld [vmem:[%s1 + $0x3f0] sm:$0xff]
  %v559 = vld [vmem:[%s1 + $0x3f8] sm:$0xff]
  %v560 = vld [vmem:[%s1 + $0x400] sm:$0xff]
  %v561 = vld [vmem:[%s1 + $0x408] sm:$0xff]
  %v562 = vld [vmem:[%s1 + $0x410] sm:$0xff]
  %v563 = vld [vmem:[%s1 + $0x418] sm:$0xff]
  %v564 = vld [vmem:[%s1 + $0x420] sm:$0xff]
  %v565 = vld [vmem:[%s1 + $0x428] sm:$0xff]
  %v566 = vld [vmem:[%s1 + $0x430] sm:$0xff]
  %v567 = vld [vmem:[%s1 + $0x438] sm:$0xff]
  %v568 = vld [vmem:[%s1 + $0x440] sm:$0xff]
  %v569 = vld [vmem:[%s1 + $0x448] sm:$0xff]
  %v570 = vld [vmem:[%s1 + $0x450] sm:$0xff]
  %v571 = vld [vmem:[%s1 + $0x458] sm:$0xff]
  %v572 = vld [vmem:[%s1 + $0x460] sm:$0xff]
  %v573 = vld [vmem:[%s1 + $0x468] sm:$0xff]
  %v574 = vld [vmem:[%s1 + $0x470] sm:$0xff]
  %v575 = vld [vmem:[%s1 + $0x478] sm:$0xff]
  %v576 = vld [vmem:[%s1 + $0x480] sm:$0xff]
  %v577 = vld [vmem:[%s1 + $0x488] sm:$0xff]
  %v578 = vld [vmem:[%s1 + $0x490] sm:$0xff]
  %v579 = vld [vmem:[%s1 + $0x498] sm:$0xff]
  %v580 = vld [vmem:[%s1 + $0x4a0] sm:$0xff]
  %v581 = vld [vmem:[%s1 + $0x4a8] sm:$0xff]
  %v582 = vld [vmem:[%s1 + $0x4b0] sm:$0xff]
  %v583 = vld [vmem:[%s1 + $0x4b8] sm:$0xff]
  %v584 = vld [vmem:[%s1 + $0x4c0] sm:$0xff]
  %v585 = vld [vmem:[%s1 + $0x4c8] sm:$0xff]
  %v586 = vld [vmem:[%s1 + $0x4d0] sm:$0xff]
  %v587 = vld [vmem:[%s1 + $0x4d8] sm:$0xff]
  %v588 = vld [vmem:[%s1 + $0x4e0] sm:$0xff]
  %v589 = vld [vmem:[%s1 + $0x4e8] sm:$0xff]
  %v590 = vld [vmem:[%s1 + $0x4f0] sm:$0xff]
  %v591 = vld [vmem:[%s1 + $0x4f8] sm:$0xff]
  %v592 = vld [vmem:[%s1 + $0x500] sm:$0xff]
  %v593 = vld [vmem:[%s1 + $0x508] sm:$0xff]
  %v594 = vld [vmem:[%s1 + $0x510] sm:$0xff]
  %v595 = vld [vmem:[%s1 + $0x518] sm:$0xff]
  %v596 = vld [vmem:[%s1 + $0x520] sm:$0xff]
  %v597 = vld [vmem:[%s1 + $0x528] sm:$0xff]
  %v598 = vld [vmem:[%s1 + $0x530] sm:$0xff]
  %v599 = vld [vmem:[%s1 + $0x538] sm:$0xff]
  %v600 = vld [vmem:[%s1 + $0x540] sm:$0xff]
  %v601 = vld [vmem:[%s1 + $0x548] sm:$0xff]
  %v602 = vld [vmem:[%s1 + $0x550] sm:$0xff]
  %v603 = vld [vmem:[%s1 + $0x558] sm:$0xff]
  %v604 = vld [vmem:[%s1 + $0x560] sm:$0xff]
  %v605 = vld [vmem:[%s1 + $0x568] sm:$0xff]
  %v606 = vld [vmem:[%s1 + $0x570] sm:$0xff]
  %v607 = vld [vmem:[%s1 + $0x578] sm:$0xff]
  %v608 = vld [vmem:[%s1 + $0x580] sm:$0xff]
  %v609 = vld [vmem:[%s1 + $0x588] sm:$0xff]
  %v610 = vld [vmem:[%s1 + $0x590] sm:$0xff]
  %v611 = vld [vmem:[%s1 + $0x598] sm:$0xff]
  %v612 = vld [vmem:[%s1 + $0x5a0] sm:$0xff]
  %v613 = vld [vmem:[%s1 + $0x5a8] sm:$0xff]
  %v614 = vld [vmem:[%s1 + $0x5b0] sm:$0xff]
  %v615 = vld [vmem:[%s1 + $0x5b8] sm:$0xff]
  %v616 = vld [vmem:[%s1 + $0x5c0] sm:$0xff]
  %v617 = vld [vmem:[%s1 + $0x5c8] sm:$0xff]
  %v618 = vld [vmem:[%s1 + $0x5d0] sm:$0xff]
  %v619 = vld [vmem:[%s1 + $0x5d8] sm:$0xff]
  %v620 = vld [vmem:[%s1 + $0x5e0] sm:$0xff]
  %v621 = vld [vmem:[%s1 + $0x5e8] sm:$0xff]
  %v622 = vld [vmem:[%s1 + $0x5f0] sm:$0xff]
  %v623 = vld [vmem:[%s1 + $0x5f8] sm:$0xff]
  %v624 = vld [vmem:[%s1 + $0x600] sm:$0xff]
  %v625 = vld [vmem:[%s1 + $0x608] sm:$0xff]
  %v626 = vld [vmem:[%s1 + $0x610] sm:$0xff]
  %v627 = vld [vmem:[%s1 + $0x618] sm:$0xff]
  %v628 = vld [vmem:[%s2] sm:$0xf]
  %v630 = vlaneseq
  %v631 = vshrl.u32 %v630, 7
  %v632 = vsub.s32 0, %v631
  %v633 = vrot.slane %v628, %v632
  %v634 = vlaneseq
  %v635 = vshrl.u32 %v634, 7
  %v636 = vsub.s32 1, %v635
  %v637 = vrot.slane %v628, %v636
  %v638 = vlaneseq
  %v639 = vshrl.u32 %v638, 7
  %v640 = vsub.s32 2, %v639
  %v641 = vrot.slane %v628, %v640
  %v642 = vlaneseq
  %v643 = vshrl.u32 %v642, 7
  %v644 = vsub.s32 3, %v643
  %v645 = vrot.slane %v628, %v644
  %v846 = vunpack.c.l.b16 %v432
  %v847 = vunpack.c.h.b16 %v432
  %v848 = vunpack.c.l.b16 %v433
  %v849 = vunpack.c.h.b16 %v433
  %v850 = vunpack.c.l.b16 %v434
  %v851 = vunpack.c.h.b16 %v434
  %v852 = vunpack.c.l.b16 %v435
  %v853 = vunpack.c.h.b16 %v435
  %v854 = vunpack.c.l.b16 %v436
  %v855 = vunpack.c.h.b16 %v436
  %v856 = vunpack.c.l.b16 %v437
  %v857 = vunpack.c.h.b16 %v437
  %v858 = vunpack.c.l.b16 %v438
  %v859 = vunpack.c.h.b16 %v438
  %v860 = vunpack.c.l.b16 %v439
  %v861 = vunpack.c.h.b16 %v439
  %v862 = vunpack.c.l.b16 %v440
  %v863 = vunpack.c.h.b16 %v440
  %v864 = vunpack.c.l.b16 %v441
  %v865 = vunpack.c.h.b16 %v441
  %v866 = vunpack.c.l.b16 %v442
  %v867 = vunpack.c.h.b16 %v442
  %v868 = vunpack.c.l.b16 %v443
  %v869 = vunpack.c.h.b16 %v443
  %v870 = vunpack.c.l.b16 %v444
  %v871 = vunpack.c.h.b16 %v444
  %v872 = vunpack.c.l.b16 %v445
  %v873 = vunpack.c.h.b16 %v445
  %v874 = vunpack.c.l.b16 %v446
  %v875 = vunpack.c.h.b16 %v446
  %v876 = vunpack.c.l.b16 %v447
  %v877 = vunpack.c.h.b16 %v447
  %v878 = vunpack.c.l.b16 %v448
  %v879 = vunpack.c.h.b16 %v448
  %v880 = vunpack.c.l.b16 %v449
  %v881 = vunpack.c.h.b16 %v449
  %v882 = vunpack.c.l.b16 %v450
  %v883 = vunpack.c.h.b16 %v450
  %v884 = vunpack.c.l.b16 %v451
  %v885 = vunpack.c.h.b16 %v451
  %v886 = vunpack.c.l.b16 %v452
  %v887 = vunpack.c.h.b16 %v452
  %v888 = vunpack.c.l.b16 %v453
  %v889 = vunpack.c.h.b16 %v453
  %v890 = vunpack.c.l.b16 %v454
  %v891 = vunpack.c.h.b16 %v454
  %v892 = vunpack.c.l.b16 %v455
  %v893 = vunpack.c.h.b16 %v455
  %v894 = vunpack.c.l.b16 %v456
  %v895 = vunpack.c.h.b16 %v456
  %v896 = vunpack.c.l.b16 %v457
  %v897 = vunpack.c.h.b16 %v457
  %v898 = vunpack.c.l.b16 %v458
  %v899 = vunpack.c.h.b16 %v458
  %v900 = vunpack.c.l.b16 %v459
  %v901 = vunpack.c.h.b16 %v459
  %v902 = vunpack.c.l.b16 %v460
  %v903 = vunpack.c.h.b16 %v460
  %v904 = vunpack.c.l.b16 %v461
  %v905 = vunpack.c.h.b16 %v461
  %v906 = vunpack.c.l.b16 %v462
  %v907 = vunpack.c.h.b16 %v462
  %v908 = vunpack.c.l.b16 %v463
  %v909 = vunpack.c.h.b16 %v463
  %v910 = vunpack.c.l.b16 %v464
  %v911 = vunpack.c.h.b16 %v464
  %v912 = vunpack.c.l.b16 %v465
  %v913 = vunpack.c.h.b16 %v465
  %v914 = vunpack.c.l.b16 %v466
  %v915 = vunpack.c.h.b16 %v466
  %v916 = vunpack.c.l.b16 %v467
  %v917 = vunpack.c.h.b16 %v467
  %v918 = vunpack.c.l.b16 %v468
  %v919 = vunpack.c.h.b16 %v468
  %v920 = vunpack.c.l.b16 %v469
  %v921 = vunpack.c.h.b16 %v469
  %v922 = vunpack.c.l.b16 %v470
  %v923 = vunpack.c.h.b16 %v470
  %v924 = vunpack.c.l.b16 %v471
  %v925 = vunpack.c.h.b16 %v471
  %v926 = vunpack.c.l.b16 %v472
  %v927 = vunpack.c.h.b16 %v472
  %v928 = vunpack.c.l.b16 %v473
  %v929 = vunpack.c.h.b16 %v473
  %v930 = vunpack.c.l.b16 %v474
  %v931 = vunpack.c.h.b16 %v474
  %v932 = vunpack.c.l.b16 %v475
  %v933 = vunpack.c.h.b16 %v475
  %v934 = vunpack.c.l.b16 %v476
  %v935 = vunpack.c.h.b16 %v476
  %v936 = vunpack.c.l.b16 %v477
  %v937 = vunpack.c.h.b16 %v477
  %v938 = vunpack.c.l.b16 %v478
  %v939 = vunpack.c.h.b16 %v478
  %v940 = vunpack.c.l.b16 %v479
  %v941 = vunpack.c.h.b16 %v479
  %v942 = vunpack.c.l.b16 %v480
  %v943 = vunpack.c.h.b16 %v480
  %v944 = vunpack.c.l.b16 %v481
  %v945 = vunpack.c.h.b16 %v481
  %v946 = vunpack.c.l.b16 %v482
  %v947 = vunpack.c.h.b16 %v482
  %v948 = vunpack.c.l.b16 %v483
  %v949 = vunpack.c.h.b16 %v483
  %v950 = vunpack.c.l.b16 %v484
  %v951 = vunpack.c.h.b16 %v484
  %v952 = vunpack.c.l.b16 %v485
  %v953 = vunpack.c.h.b16 %v485
  %v954 = vunpack.c.l.b16 %v486
  %v955 = vunpack.c.h.b16 %v486
  %v956 = vunpack.c.l.b16 %v487
  %v957 = vunpack.c.h.b16 %v487
  %v958 = vunpack.c.l.b16 %v488
  %v959 = vunpack.c.h.b16 %v488
  %v960 = vunpack.c.l.b16 %v489
  %v961 = vunpack.c.h.b16 %v489
  %v962 = vunpack.c.l.b16 %v490
  %v963 = vunpack.c.h.b16 %v490
  %v964 = vunpack.c.l.b16 %v491
  %v965 = vunpack.c.h.b16 %v491
  %v966 = vunpack.c.l.b16 %v492
  %v967 = vunpack.c.h.b16 %v492
  %v968 = vunpack.c.l.b16 %v493
  %v969 = vunpack.c.h.b16 %v493
  %v970 = vunpack.c.l.b16 %v494
  %v971 = vunpack.c.h.b16 %v494
  %v972 = vunpack.c.l.b16 %v495
  %v973 = vunpack.c.h.b16 %v495
  %v974 = vunpack.c.l.b16 %v496
  %v975 = vunpack.c.h.b16 %v496
  %v976 = vunpack.c.l.b16 %v497
  %v977 = vunpack.c.h.b16 %v497
  %v978 = vunpack.c.l.b16 %v498
  %v979 = vunpack.c.h.b16 %v498
  %v980 = vunpack.c.l.b16 %v499
  %v981 = vunpack.c.h.b16 %v499
  %v982 = vunpack.c.l.b16 %v500
  %v983 = vunpack.c.h.b16 %v500
  %v984 = vunpack.c.l.b16 %v501
  %v985 = vunpack.c.h.b16 %v501
  %v986 = vunpack.c.l.b16 %v502
  %v987 = vunpack.c.h.b16 %v502
  %v988 = vunpack.c.l.b16 %v503
  %v989 = vunpack.c.h.b16 %v503
  %v990 = vunpack.c.l.b16 %v504
  %v991 = vunpack.c.h.b16 %v504
  %v992 = vunpack.c.l.b16 %v505
  %v993 = vunpack.c.h.b16 %v505
  %v994 = vunpack.c.l.b16 %v506
  %v995 = vunpack.c.h.b16 %v506
  %v996 = vunpack.c.l.b16 %v507
  %v997 = vunpack.c.h.b16 %v507
  %v998 = vunpack.c.l.b16 %v508
  %v999 = vunpack.c.h.b16 %v508
  %v1000 = vunpack.c.l.b16 %v509
  %v1001 = vunpack.c.h.b16 %v509
  %v1002 = vunpack.c.l.b16 %v510
  %v1003 = vunpack.c.h.b16 %v510
  %v1004 = vunpack.c.l.b16 %v511
  %v1005 = vunpack.c.h.b16 %v511
  %v1006 = vunpack.c.l.b16 %v512
  %v1007 = vunpack.c.h.b16 %v512
  %v1008 = vunpack.c.l.b16 %v513
  %v1009 = vunpack.c.h.b16 %v513
  %v1010 = vunpack.c.l.b16 %v514
  %v1011 = vunpack.c.h.b16 %v514
  %v1012 = vunpack.c.l.b16 %v515
  %v1013 = vunpack.c.h.b16 %v515
  %v1014 = vunpack.c.l.b16 %v516
  %v1015 = vunpack.c.h.b16 %v516
  %v1016 = vunpack.c.l.b16 %v517
  %v1017 = vunpack.c.h.b16 %v517
  %v1018 = vunpack.c.l.b16 %v518
  %v1019 = vunpack.c.h.b16 %v518
  %v1020 = vunpack.c.l.b16 %v519
  %v1021 = vunpack.c.h.b16 %v519
  %v1022 = vunpack.c.l.b16 %v520
  %v1023 = vunpack.c.h.b16 %v520
  %v1024 = vunpack.c.l.b16 %v521
  %v1025 = vunpack.c.h.b16 %v521
  %v1026 = vunpack.c.l.b16 %v522
  %v1027 = vunpack.c.h.b16 %v522
  %v1028 = vunpack.c.l.b16 %v523
  %v1029 = vunpack.c.h.b16 %v523
  %v1030 = vunpack.c.l.b16 %v524
  %v1031 = vunpack.c.h.b16 %v524
  %v1032 = vunpack.c.l.b16 %v525
  %v1033 = vunpack.c.h.b16 %v525
  %v1034 = vunpack.c.l.b16 %v526
  %v1035 = vunpack.c.h.b16 %v526
  %v1036 = vunpack.c.l.b16 %v527
  %v1037 = vunpack.c.h.b16 %v527
  %v1038 = vunpack.c.l.b16 %v528
  %v1039 = vunpack.c.h.b16 %v528
  %v1040 = vunpack.c.l.b16 %v529
  %v1041 = vunpack.c.h.b16 %v529
  %v1042 = vunpack.c.l.b16 %v530
  %v1043 = vunpack.c.h.b16 %v530
  %v1044 = vunpack.c.l.b16 %v531
  %v1045 = vunpack.c.h.b16 %v531
  %v1046 = vunpack.c.l.b16 %v532
  %v1047 = vunpack.c.h.b16 %v532
  %v1048 = vunpack.c.l.b16 %v533
  %v1049 = vunpack.c.h.b16 %v533
  %v1050 = vunpack.c.l.b16 %v534
  %v1051 = vunpack.c.h.b16 %v534
  %v1052 = vunpack.c.l.b16 %v535
  %v1053 = vunpack.c.h.b16 %v535
  %v1054 = vunpack.c.l.b16 %v536
  %v1055 = vunpack.c.h.b16 %v536
  %v1056 = vunpack.c.l.b16 %v537
  %v1057 = vunpack.c.h.b16 %v537
  %v1058 = vunpack.c.l.b16 %v538
  %v1059 = vunpack.c.h.b16 %v538
  %v1060 = vunpack.c.l.b16 %v539
  %v1061 = vunpack.c.h.b16 %v539
  %v1062 = vunpack.c.l.b16 %v540
  %v1063 = vunpack.c.h.b16 %v540
  %v1064 = vunpack.c.l.b16 %v541
  %v1065 = vunpack.c.h.b16 %v541
  %v1066 = vunpack.c.l.b16 %v542
  %v1067 = vunpack.c.h.b16 %v542
  %v1068 = vunpack.c.l.b16 %v543
  %v1069 = vunpack.c.h.b16 %v543
  %v1070 = vunpack.c.l.b16 %v544
  %v1071 = vunpack.c.h.b16 %v544
  %v1072 = vunpack.c.l.b16 %v545
  %v1073 = vunpack.c.h.b16 %v545
  %v1074 = vunpack.c.l.b16 %v546
  %v1075 = vunpack.c.h.b16 %v546
  %v1076 = vunpack.c.l.b16 %v547
  %v1077 = vunpack.c.h.b16 %v547
  %v1078 = vunpack.c.l.b16 %v548
  %v1079 = vunpack.c.h.b16 %v548
  %v1080 = vunpack.c.l.b16 %v549
  %v1081 = vunpack.c.h.b16 %v549
  %v1082 = vunpack.c.l.b16 %v550
  %v1083 = vunpack.c.h.b16 %v550
  %v1084 = vunpack.c.l.b16 %v551
  %v1085 = vunpack.c.h.b16 %v551
  %v1086 = vunpack.c.l.b16 %v552
  %v1087 = vunpack.c.h.b16 %v552
  %v1088 = vunpack.c.l.b16 %v553
  %v1089 = vunpack.c.h.b16 %v553
  %v1090 = vunpack.c.l.b16 %v554
  %v1091 = vunpack.c.h.b16 %v554
  %v1092 = vunpack.c.l.b16 %v555
  %v1093 = vunpack.c.h.b16 %v555
  %v1094 = vunpack.c.l.b16 %v556
  %v1095 = vunpack.c.h.b16 %v556
  %v1096 = vunpack.c.l.b16 %v557
  %v1097 = vunpack.c.h.b16 %v557
  %v1098 = vunpack.c.l.b16 %v558
  %v1099 = vunpack.c.h.b16 %v558
  %v1100 = vunpack.c.l.b16 %v559
  %v1101 = vunpack.c.h.b16 %v559
  %v1102 = vunpack.c.l.b16 %v560
  %v1103 = vunpack.c.h.b16 %v560
  %v1104 = vunpack.c.l.b16 %v561
  %v1105 = vunpack.c.h.b16 %v561
  %v1106 = vunpack.c.l.b16 %v562
  %v1107 = vunpack.c.h.b16 %v562
  %v1108 = vunpack.c.l.b16 %v563
  %v1109 = vunpack.c.h.b16 %v563
  %v1110 = vunpack.c.l.b16 %v564
  %v1111 = vunpack.c.h.b16 %v564
  %v1112 = vunpack.c.l.b16 %v565
  %v1113 = vunpack.c.h.b16 %v565
  %v1114 = vunpack.c.l.b16 %v566
  %v1115 = vunpack.c.h.b16 %v566
  %v1116 = vunpack.c.l.b16 %v567
  %v1117 = vunpack.c.h.b16 %v567
  %v1118 = vunpack.c.l.b16 %v568
  %v1119 = vunpack.c.h.b16 %v568
  %v1120 = vunpack.c.l.b16 %v569
  %v1121 = vunpack.c.h.b16 %v569
  %v1122 = vunpack.c.l.b16 %v570
  %v1123 = vunpack.c.h.b16 %v570
  %v1124 = vunpack.c.l.b16 %v571
  %v1125 = vunpack.c.h.b16 %v571
  %v1126 = vunpack.c.l.b16 %v572
  %v1127 = vunpack.c.h.b16 %v572
  %v1128 = vunpack.c.l.b16 %v573
  %v1129 = vunpack.c.h.b16 %v573
  %v1130 = vunpack.c.l.b16 %v574
  %v1131 = vunpack.c.h.b16 %v574
  %v1132 = vunpack.c.l.b16 %v575
  %v1133 = vunpack.c.h.b16 %v575
  %v1134 = vunpack.c.l.b16 %v576
  %v1135 = vunpack.c.h.b16 %v576
  %v1136 = vunpack.c.l.b16 %v577
  %v1137 = vunpack.c.h.b16 %v577
  %v1138 = vunpack.c.l.b16 %v578
  %v1139 = vunpack.c.h.b16 %v578
  %v1140 = vunpack.c.l.b16 %v579
  %v1141 = vunpack.c.h.b16 %v579
  %v1142 = vunpack.c.l.b16 %v580
  %v1143 = vunpack.c.h.b16 %v580
  %v1144 = vunpack.c.l.b16 %v581
  %v1145 = vunpack.c.h.b16 %v581
  %v1146 = vunpack.c.l.b16 %v582
  %v1147 = vunpack.c.h.b16 %v582
  %v1148 = vunpack.c.l.b16 %v583
  %v1149 = vunpack.c.h.b16 %v583
  %v1150 = vunpack.c.l.b16 %v584
  %v1151 = vunpack.c.h.b16 %v584
  %v1152 = vunpack.c.l.b16 %v585
  %v1153 = vunpack.c.h.b16 %v585
  %v1154 = vunpack.c.l.b16 %v586
  %v1155 = vunpack.c.h.b16 %v586
  %v1156 = vunpack.c.l.b16 %v587
  %v1157 = vunpack.c.h.b16 %v587
  %v1158 = vunpack.c.l.b16 %v588
  %v1159 = vunpack.c.h.b16 %v588
  %v1160 = vunpack.c.l.b16 %v589
  %v1161 = vunpack.c.h.b16 %v589
  %v1162 = vunpack.c.l.b16 %v590
  %v1163 = vunpack.c.h.b16 %v590
  %v1164 = vunpack.c.l.b16 %v591
  %v1165 = vunpack.c.h.b16 %v591
  %v1166 = vunpack.c.l.b16 %v592
  %v1167 = vunpack.c.h.b16 %v592
  %v1168 = vunpack.c.l.b16 %v593
  %v1169 = vunpack.c.h.b16 %v593
  %v1170 = vunpack.c.l.b16 %v594
  %v1171 = vunpack.c.h.b16 %v594
  %v1172 = vunpack.c.l.b16 %v595
  %v1173 = vunpack.c.h.b16 %v595
  %v1174 = vunpack.c.l.b16 %v596
  %v1175 = vunpack.c.h.b16 %v596
  %v1176 = vunpack.c.l.b16 %v597
  %v1177 = vunpack.c.h.b16 %v597
  %v1178 = vunpack.c.l.b16 %v598
  %v1179 = vunpack.c.h.b16 %v598
  %v1180 = vunpack.c.l.b16 %v599
  %v1181 = vunpack.c.h.b16 %v599
  %v1182 = vunpack.c.l.b16 %v600
  %v1183 = vunpack.c.h.b16 %v600
  %v1184 = vunpack.c.l.b16 %v601
  %v1185 = vunpack.c.h.b16 %v601
  %v1186 = vunpack.c.l.b16 %v602
  %v1187 = vunpack.c.h.b16 %v602
  %v1188 = vunpack.c.l.b16 %v603
  %v1189 = vunpack.c.h.b16 %v603
  %v1190 = vunpack.c.l.b16 %v604
  %v1191 = vunpack.c.h.b16 %v604
  %v1192 = vunpack.c.l.b16 %v605
  %v1193 = vunpack.c.h.b16 %v605
  %v1194 = vunpack.c.l.b16 %v606
  %v1195 = vunpack.c.h.b16 %v606
  %v1196 = vunpack.c.l.b16 %v607
  %v1197 = vunpack.c.h.b16 %v607
  %v1198 = vunpack.c.l.b16 %v608
  %v1199 = vunpack.c.h.b16 %v608
  %v1200 = vunpack.c.l.b16 %v609
  %v1201 = vunpack.c.h.b16 %v609
  %v1202 = vunpack.c.l.b16 %v610
  %v1203 = vunpack.c.h.b16 %v610
  %v1204 = vunpack.c.l.b16 %v611
  %v1205 = vunpack.c.h.b16 %v611
  %v1206 = vunpack.c.l.b16 %v612
  %v1207 = vunpack.c.h.b16 %v612
  %v1208 = vunpack.c.l.b16 %v613
  %v1209 = vunpack.c.h.b16 %v613
  %v1210 = vunpack.c.l.b16 %v614
  %v1211 = vunpack.c.h.b16 %v614
  %v1212 = vunpack.c.l.b16 %v615
  %v1213 = vunpack.c.h.b16 %v615
  %v1214 = vunpack.c.l.b16 %v616
  %v1215 = vunpack.c.h.b16 %v616
  %v1216 = vunpack.c.l.b16 %v617
  %v1217 = vunpack.c.h.b16 %v617
  %v1218 = vunpack.c.l.b16 %v618
  %v1219 = vunpack.c.h.b16 %v618
  %v1220 = vunpack.c.l.b16 %v619
  %v1221 = vunpack.c.h.b16 %v619
  %v1222 = vunpack.c.l.b16 %v620
  %v1223 = vunpack.c.h.b16 %v620
  %v1224 = vunpack.c.l.b16 %v621
  %v1225 = vunpack.c.h.b16 %v621
  %v1226 = vunpack.c.l.b16 %v622
  %v1227 = vunpack.c.h.b16 %v622
  %v1228 = vunpack.c.l.b16 %v623
  %v1229 = vunpack.c.h.b16 %v623
  %v1230 = vunpack.c.l.b16 %v624
  %v1231 = vunpack.c.h.b16 %v624
  %v1232 = vunpack.c.l.b16 %v625
  %v1233 = vunpack.c.h.b16 %v625
  %v1234 = vunpack.c.l.b16 %v626
  %v1235 = vunpack.c.h.b16 %v626
  %v1236 = vunpack.c.l.b16 %v627
  %v1237 = vunpack.c.h.b16 %v627
  %v1238 = vpack.c.b16 %v850, %v846
  %v1239 = vpack.c.b16 %v851, %v847
  %v1240 = vpack.c.b16 %v852, %v848
  %v1241 = vpack.c.b16 %v853, %v849
  %v1242 = vpack.c.b16 %v858, %v854
  %v1243 = vpack.c.b16 %v859, %v855
  %v1244 = vpack.c.b16 %v860, %v856
  %v1245 = vpack.c.b16 %v861, %v857
  %v1246 = vpack.c.b16 %v866, %v862
  %v1247 = vpack.c.b16 %v867, %v863
  %v1248 = vpack.c.b16 %v868, %v864
  %v1249 = vpack.c.b16 %v869, %v865
  %v1250 = vpack.c.b16 %v874, %v870
  %v1251 = vpack.c.b16 %v875, %v871
  %v1252 = vpack.c.b16 %v876, %v872
  %v1253 = vpack.c.b16 %v877, %v873
  %v1254 = vpack.c.b16 %v882, %v878
  %v1255 = vpack.c.b16 %v883, %v879
  %v1256 = vpack.c.b16 %v884, %v880
  %v1257 = vpack.c.b16 %v885, %v881
  %v1258 = vpack.c.b16 %v890, %v886
  %v1259 = vpack.c.b16 %v891, %v887
  %v1260 = vpack.c.b16 %v892, %v888
  %v1261 = vpack.c.b16 %v893, %v889
  %v1262 = vpack.c.b16 %v898, %v894
  %v1263 = vpack.c.b16 %v899, %v895
  %v1264 = vpack.c.b16 %v900, %v896
  %v1265 = vpack.c.b16 %v901, %v897
  %v1266 = vpack.c.b16 %v906, %v902
  %v1267 = vpack.c.b16 %v907, %v903
  %v1268 = vpack.c.b16 %v908, %v904
  %v1269 = vpack.c.b16 %v909, %v905
  %v1270 = vpack.c.b16 %v914, %v910
  %v1271 = vpack.c.b16 %v915, %v911
  %v1272 = vpack.c.b16 %v916, %v912
  %v1273 = vpack.c.b16 %v917, %v913
  %v1274 = vpack.c.b16 %v922, %v918
  %v1275 = vpack.c.b16 %v923, %v919
  %v1276 = vpack.c.b16 %v924, %v920
  %v1277 = vpack.c.b16 %v925, %v921
  %v1278 = vpack.c.b16 %v930, %v926
  %v1279 = vpack.c.b16 %v931, %v927
  %v1280 = vpack.c.b16 %v932, %v928
  %v1281 = vpack.c.b16 %v933, %v929
  %v1282 = vpack.c.b16 %v938, %v934
  %v1283 = vpack.c.b16 %v939, %v935
  %v1284 = vpack.c.b16 %v940, %v936
  %v1285 = vpack.c.b16 %v941, %v937
  %v1286 = vpack.c.b16 %v946, %v942
  %v1287 = vpack.c.b16 %v947, %v943
  %v1288 = vpack.c.b16 %v948, %v944
  %v1289 = vpack.c.b16 %v949, %v945
  %v1290 = vpack.c.b16 %v954, %v950
  %v1291 = vpack.c.b16 %v955, %v951
  %v1292 = vpack.c.b16 %v956, %v952
  %v1293 = vpack.c.b16 %v957, %v953
  %v1294 = vpack.c.b16 %v962, %v958
  %v1295 = vpack.c.b16 %v963, %v959
  %v1296 = vpack.c.b16 %v964, %v960
  %v1297 = vpack.c.b16 %v965, %v961
  %v1298 = vpack.c.b16 %v970, %v966
  %v1299 = vpack.c.b16 %v971, %v967
  %v1300 = vpack.c.b16 %v972, %v968
  %v1301 = vpack.c.b16 %v973, %v969
  %v1302 = vpack.c.b16 %v978, %v974
  %v1303 = vpack.c.b16 %v979, %v975
  %v1304 = vpack.c.b16 %v980, %v976
  %v1305 = vpack.c.b16 %v981, %v977
  %v1306 = vpack.c.b16 %v986, %v982
  %v1307 = vpack.c.b16 %v987, %v983
  %v1308 = vpack.c.b16 %v988, %v984
  %v1309 = vpack.c.b16 %v989, %v985
  %v1310 = vpack.c.b16 %v994, %v990
  %v1311 = vpack.c.b16 %v995, %v991
  %v1312 = vpack.c.b16 %v996, %v992
  %v1313 = vpack.c.b16 %v997, %v993
  %v1314 = vpack.c.b16 %v1002, %v998
  %v1315 = vpack.c.b16 %v1003, %v999
  %v1316 = vpack.c.b16 %v1004, %v1000
  %v1317 = vpack.c.b16 %v1005, %v1001
  %v1318 = vpack.c.b16 %v1010, %v1006
  %v1319 = vpack.c.b16 %v1011, %v1007
  %v1320 = vpack.c.b16 %v1012, %v1008
  %v1321 = vpack.c.b16 %v1013, %v1009
  %v1322 = vpack.c.b16 %v1018, %v1014
  %v1323 = vpack.c.b16 %v1019, %v1015
  %v1324 = vpack.c.b16 %v1020, %v1016
  %v1325 = vpack.c.b16 %v1021, %v1017
  %v1326 = vpack.c.b16 %v1026, %v1022
  %v1327 = vpack.c.b16 %v1027, %v1023
  %v1328 = vpack.c.b16 %v1028, %v1024
  %v1329 = vpack.c.b16 %v1029, %v1025
  %v1330 = vpack.c.b16 %v1034, %v1030
  %v1331 = vpack.c.b16 %v1035, %v1031
  %v1332 = vpack.c.b16 %v1036, %v1032
  %v1333 = vpack.c.b16 %v1037, %v1033
  %v1334 = vpack.c.b16 %v1042, %v1038
  %v1335 = vpack.c.b16 %v1043, %v1039
  %v1336 = vpack.c.b16 %v1044, %v1040
  %v1337 = vpack.c.b16 %v1045, %v1041
  %v1338 = vpack.c.b16 %v1050, %v1046
  %v1339 = vpack.c.b16 %v1051, %v1047
  %v1340 = vpack.c.b16 %v1052, %v1048
  %v1341 = vpack.c.b16 %v1053, %v1049
  %v1342 = vpack.c.b16 %v1058, %v1054
  %v1343 = vpack.c.b16 %v1059, %v1055
  %v1344 = vpack.c.b16 %v1060, %v1056
  %v1345 = vpack.c.b16 %v1061, %v1057
  %v1346 = vpack.c.b16 %v1066, %v1062
  %v1347 = vpack.c.b16 %v1067, %v1063
  %v1348 = vpack.c.b16 %v1068, %v1064
  %v1349 = vpack.c.b16 %v1069, %v1065
  %v1350 = vpack.c.b16 %v1074, %v1070
  %v1351 = vpack.c.b16 %v1075, %v1071
  %v1352 = vpack.c.b16 %v1076, %v1072
  %v1353 = vpack.c.b16 %v1077, %v1073
  %v1354 = vpack.c.b16 %v1082, %v1078
  %v1355 = vpack.c.b16 %v1083, %v1079
  %v1356 = vpack.c.b16 %v1084, %v1080
  %v1357 = vpack.c.b16 %v1085, %v1081
  %v1358 = vpack.c.b16 %v1090, %v1086
  %v1359 = vpack.c.b16 %v1091, %v1087
  %v1360 = vpack.c.b16 %v1092, %v1088
  %v1361 = vpack.c.b16 %v1093, %v1089
  %v1362 = vpack.c.b16 %v1098, %v1094
  %v1363 = vpack.c.b16 %v1099, %v1095
  %v1364 = vpack.c.b16 %v1100, %v1096
  %v1365 = vpack.c.b16 %v1101, %v1097
  %v1366 = vpack.c.b16 %v1106, %v1102
  %v1367 = vpack.c.b16 %v1107, %v1103
  %v1368 = vpack.c.b16 %v1108, %v1104
  %v1369 = vpack.c.b16 %v1109, %v1105
  %v1370 = vpack.c.b16 %v1114, %v1110
  %v1371 = vpack.c.b16 %v1115, %v1111
  %v1372 = vpack.c.b16 %v1116, %v1112
  %v1373 = vpack.c.b16 %v1117, %v1113
  %v1374 = vpack.c.b16 %v1122, %v1118
  %v1375 = vpack.c.b16 %v1123, %v1119
  %v1376 = vpack.c.b16 %v1124, %v1120
  %v1377 = vpack.c.b16 %v1125, %v1121
  %v1378 = vpack.c.b16 %v1130, %v1126
  %v1379 = vpack.c.b16 %v1131, %v1127
  %v1380 = vpack.c.b16 %v1132, %v1128
  %v1381 = vpack.c.b16 %v1133, %v1129
  %v1382 = vpack.c.b16 %v1138, %v1134
  %v1383 = vpack.c.b16 %v1139, %v1135
  %v1384 = vpack.c.b16 %v1140, %v1136
  %v1385 = vpack.c.b16 %v1141, %v1137
  %v1386 = vpack.c.b16 %v1146, %v1142
  %v1387 = vpack.c.b16 %v1147, %v1143
  %v1388 = vpack.c.b16 %v1148, %v1144
  %v1389 = vpack.c.b16 %v1149, %v1145
  %v1390 = vpack.c.b16 %v1154, %v1150
  %v1391 = vpack.c.b16 %v1155, %v1151
  %v1392 = vpack.c.b16 %v1156, %v1152
  %v1393 = vpack.c.b16 %v1157, %v1153
  %v1394 = vpack.c.b16 %v1162, %v1158
  %v1395 = vpack.c.b16 %v1163, %v1159
  %v1396 = vpack.c.b16 %v1164, %v1160
  %v1397 = vpack.c.b16 %v1165, %v1161
  %v1398 = vpack.c.b16 %v1170, %v1166
  %v1399 = vpack.c.b16 %v1171, %v1167
  %v1400 = vpack.c.b16 %v1172, %v1168
  %v1401 = vpack.c.b16 %v1173, %v1169
  %v1402 = vpack.c.b16 %v1178, %v1174
  %v1403 = vpack.c.b16 %v1179, %v1175
  %v1404 = vpack.c.b16 %v1180, %v1176
  %v1405 = vpack.c.b16 %v1181, %v1177
  %v1406 = vpack.c.b16 %v1186, %v1182
  %v1407 = vpack.c.b16 %v1187, %v1183
  %v1408 = vpack.c.b16 %v1188, %v1184
  %v1409 = vpack.c.b16 %v1189, %v1185
  %v1410 = vpack.c.b16 %v1194, %v1190
  %v1411 = vpack.c.b16 %v1195, %v1191
  %v1412 = vpack.c.b16 %v1196, %v1192
  %v1413 = vpack.c.b16 %v1197, %v1193
  %v1414 = vpack.c.b16 %v1202, %v1198
  %v1415 = vpack.c.b16 %v1203, %v1199
  %v1416 = vpack.c.b16 %v1204, %v1200
  %v1417 = vpack.c.b16 %v1205, %v1201
  %v1418 = vpack.c.b16 %v1210, %v1206
  %v1419 = vpack.c.b16 %v1211, %v1207
  %v1420 = vpack.c.b16 %v1212, %v1208
  %v1421 = vpack.c.b16 %v1213, %v1209
  %v1422 = vpack.c.b16 %v1218, %v1214
  %v1423 = vpack.c.b16 %v1219, %v1215
  %v1424 = vpack.c.b16 %v1220, %v1216
  %v1425 = vpack.c.b16 %v1221, %v1217
  %v1426 = vpack.c.b16 %v1226, %v1222
  %v1427 = vpack.c.b16 %v1227, %v1223
  %v1428 = vpack.c.b16 %v1228, %v1224
  %v1429 = vpack.c.b16 %v1229, %v1225
  %v1430 = vpack.c.b16 %v1234, %v1230
  %v1431 = vpack.c.b16 %v1235, %v1231
  %v1432 = vpack.c.b16 %v1236, %v1232
  %v1433 = vpack.c.b16 %v1237, %v1233
  %vm1630 = vcmask 130048
  %v1632 = vsel %vm1630, %v305, 0
  %v1635 = vsel %vm1630, %v312, 0
  %v1638 = vsel %vm1630, %v319, 0
  %v1641 = vsel %vm1630, %v326, 0
  %v1644 = vsel %vm1630, %v333, 0
  %v1647 = vsel %vm1630, %v340, 0
  %v1650 = vsel %vm1630, %v347, 0
  %v1653 = vsel %vm1630, %v354, 0
  %v1656 = vsel %vm1630, %v361, 0
  %v1659 = vsel %vm1630, %v368, 0
  %v1662 = vsel %vm1630, %v375, 0
  %v1665 = vsel %vm1630, %v382, 0
  %v1668 = vsel %vm1630, %v389, 0
  %v1671 = vsel %vm1630, %v396, 0
  %v1674 = vsel %vm1630, %v403, 0
  %v1677 = vsel %vm1630, %v410, 0
  %v1680 = vsel %vm1630, %v417, 0
  %v1683 = vsel %vm1630, %v424, 0
  %v1686 = vsel %vm1630, %v431, 0
  %1688 = vmatprep.subr.bf16.mxu0 %v1267
  %1689 = vmatpush1.bf16.msra.mxu0 %v1266
  %1690 = vmatprep.subr.bf16.mxu0 %v1263
  %1691 = vmatpush1.bf16.msra.mxu0 %v1262
  %1692 = vmatprep.subr.bf16.mxu0 %v1259
  %1693 = vmatpush1.bf16.msra.mxu0 %v1258
  %1694 = vmatprep.subr.bf16.mxu0 %v1255
  %1695 = vmatpush1.bf16.msra.mxu0 %v1254
  %1696 = vmatprep.subr.bf16.mxu0 %v1251
  %1697 = vmatpush1.bf16.msra.mxu0 %v1250
  %1698 = vmatprep.subr.bf16.mxu0 %v1247
  %1699 = vmatpush1.bf16.msra.mxu0 %v1246
  %1700 = vmatprep.subr.bf16.mxu0 %v1243
  %1701 = vmatpush1.bf16.msra.mxu0 %v1242
  %1702 = vmatprep.subr.bf16.mxu0 %v1239
  %1703 = vmatpush1.bf16.msra.mxu0 %v1238
  %1704 = vmatprep.subr.bf16.mxu0 %v1299
  %1705 = vmatpush2.bf16.msra.mxu0 %v1298
  %1706 = vmatprep.subr.bf16.mxu0 %v1295
  %1707 = vmatpush2.bf16.msra.mxu0 %v1294
  %1708 = vmatprep.subr.bf16.mxu0 %v1291
  %1709 = vmatpush2.bf16.msra.mxu0 %v1290
  %1710 = vmatprep.subr.bf16.mxu0 %v1287
  %1711 = vmatpush2.bf16.msra.mxu0 %v1286
  %1712 = vmatprep.subr.bf16.mxu0 %v1283
  %1713 = vmatpush2.bf16.msra.mxu0 %v1282
  %1714 = vmatprep.subr.bf16.mxu0 %v1279
  %1715 = vmatpush2.bf16.msra.mxu0 %v1278
  %1716 = vmatprep.subr.bf16.mxu0 %v1275
  %1717 = vmatpush2.bf16.msra.mxu0 %v1274
  %1718 = vmatprep.subr.bf16.mxu0 %v1271
  %1719 = vmatpush2.bf16.msra.mxu0 %v1270
  %1720 = vmatprep.mubr.bf16.mxu0 %v300
  %1721 = vmatmul.mubr.bf16.gmra.mxu0 %v299
  %v1722 = vpop.f32.mrf.mxu0
  %v1723 = vadd.f32 %v633, %v1722
  %v1724 = vpop.f32.mrf.mxu0
  %v1725 = vadd.f32 %v637, %v1724
  %v1726 = vpop.f32.mrf.mxu0
  %v1727 = vadd.f32 %v633, %v1726
  %v1728 = vpop.f32.mrf.mxu0
  %v1729 = vadd.f32 %v637, %v1728
  %1730 = vmatprep.mubr.bf16.mxu0 %v307
  %1731 = vmatmul.mubr.bf16.gmra.mxu0 %v306
  %v1732 = vpop.f32.mrf.mxu0
  %v1733 = vadd.f32 %v633, %v1732
  %v1734 = vpop.f32.mrf.mxu0
  %v1735 = vadd.f32 %v637, %v1734
  %v1736 = vpop.f32.mrf.mxu0
  %v1737 = vadd.f32 %v633, %v1736
  %v1738 = vpop.f32.mrf.mxu0
  %v1739 = vadd.f32 %v637, %v1738
  %1740 = vmatprep.mubr.bf16.mxu0 %v314
  %1741 = vmatmul.mubr.bf16.gmra.mxu0 %v313
  %v1742 = vpop.f32.mrf.mxu0
  %v1743 = vadd.f32 %v633, %v1742
  %v1744 = vpop.f32.mrf.mxu0
  %v1745 = vadd.f32 %v637, %v1744
  %v1746 = vpop.f32.mrf.mxu0
  %v1747 = vadd.f32 %v633, %v1746
  %v1748 = vpop.f32.mrf.mxu0
  %v1749 = vadd.f32 %v637, %v1748
  %1750 = vmatprep.mubr.bf16.mxu0 %v321
  %1751 = vmatmul.mubr.bf16.gmra.mxu0 %v320
  %v1752 = vpop.f32.mrf.mxu0
  %v1753 = vadd.f32 %v633, %v1752
  %v1754 = vpop.f32.mrf.mxu0
  %v1755 = vadd.f32 %v637, %v1754
  %v1756 = vpop.f32.mrf.mxu0
  %v1757 = vadd.f32 %v633, %v1756
  %v1758 = vpop.f32.mrf.mxu0
  %v1759 = vadd.f32 %v637, %v1758
  %1760 = vmatprep.mubr.bf16.mxu0 %v328
  %1761 = vmatmul.mubr.bf16.gmra.mxu0 %v327
  %v1762 = vpop.f32.mrf.mxu0
  %v1763 = vadd.f32 %v633, %v1762
  %v1764 = vpop.f32.mrf.mxu0
  %v1765 = vadd.f32 %v637, %v1764
  %v1766 = vpop.f32.mrf.mxu0
  %v1767 = vadd.f32 %v633, %v1766
  %v1768 = vpop.f32.mrf.mxu0
  %v1769 = vadd.f32 %v637, %v1768
  %1770 = vmatprep.mubr.bf16.mxu0 %v335
  %1771 = vmatmul.mubr.bf16.gmra.mxu0 %v334
  %v1772 = vpop.f32.mrf.mxu0
  %v1773 = vadd.f32 %v633, %v1772
  %v1774 = vpop.f32.mrf.mxu0
  %v1775 = vadd.f32 %v637, %v1774
  %v1776 = vpop.f32.mrf.mxu0
  %v1777 = vadd.f32 %v633, %v1776
  %v1778 = vpop.f32.mrf.mxu0
  %v1779 = vadd.f32 %v637, %v1778
  %1780 = vmatprep.mubr.bf16.mxu0 %v342
  %1781 = vmatmul.mubr.bf16.gmra.mxu0 %v341
  %v1782 = vpop.f32.mrf.mxu0
  %v1783 = vadd.f32 %v633, %v1782
  %v1784 = vpop.f32.mrf.mxu0
  %v1785 = vadd.f32 %v637, %v1784
  %v1786 = vpop.f32.mrf.mxu0
  %v1787 = vadd.f32 %v633, %v1786
  %v1788 = vpop.f32.mrf.mxu0
  %v1789 = vadd.f32 %v637, %v1788
  %1790 = vmatprep.mubr.bf16.mxu0 %v349
  %1791 = vmatmul.mubr.bf16.gmra.mxu0 %v348
  %v1792 = vpop.f32.mrf.mxu0
  %v1793 = vadd.f32 %v633, %v1792
  %v1794 = vpop.f32.mrf.mxu0
  %v1795 = vadd.f32 %v637, %v1794
  %v1796 = vpop.f32.mrf.mxu0
  %v1797 = vadd.f32 %v633, %v1796
  %v1798 = vpop.f32.mrf.mxu0
  %v1799 = vadd.f32 %v637, %v1798
  %1800 = vmatprep.mubr.bf16.mxu0 %v356
  %1801 = vmatmul.mubr.bf16.gmra.mxu0 %v355
  %v1802 = vpop.f32.mrf.mxu0
  %v1803 = vadd.f32 %v633, %v1802
  %v1804 = vpop.f32.mrf.mxu0
  %v1805 = vadd.f32 %v637, %v1804
  %v1806 = vpop.f32.mrf.mxu0
  %v1807 = vadd.f32 %v633, %v1806
  %v1808 = vpop.f32.mrf.mxu0
  %v1809 = vadd.f32 %v637, %v1808
  %1810 = vmatprep.mubr.bf16.mxu0 %v363
  %1811 = vmatmul.mubr.bf16.gmra.mxu0 %v362
  %v1812 = vpop.f32.mrf.mxu0
  %v1813 = vadd.f32 %v633, %v1812
  %v1814 = vpop.f32.mrf.mxu0
  %v1815 = vadd.f32 %v637, %v1814
  %v1816 = vpop.f32.mrf.mxu0
  %v1817 = vadd.f32 %v633, %v1816
  %v1818 = vpop.f32.mrf.mxu0
  %v1819 = vadd.f32 %v637, %v1818
  %1820 = vmatprep.mubr.bf16.mxu0 %v370
  %1821 = vmatmul.mubr.bf16.gmra.mxu0 %v369
  %v1822 = vpop.f32.mrf.mxu0
  %v1823 = vadd.f32 %v633, %v1822
  %v1824 = vpop.f32.mrf.mxu0
  %v1825 = vadd.f32 %v637, %v1824
  %v1826 = vpop.f32.mrf.mxu0
  %v1827 = vadd.f32 %v633, %v1826
  %v1828 = vpop.f32.mrf.mxu0
  %v1829 = vadd.f32 %v637, %v1828
  %1830 = vmatprep.mubr.bf16.mxu0 %v377
  %1831 = vmatmul.mubr.bf16.gmra.mxu0 %v376
  %v1832 = vpop.f32.mrf.mxu0
  %v1833 = vadd.f32 %v633, %v1832
  %v1834 = vpop.f32.mrf.mxu0
  %v1835 = vadd.f32 %v637, %v1834
  %v1836 = vpop.f32.mrf.mxu0
  %v1837 = vadd.f32 %v633, %v1836
  %v1838 = vpop.f32.mrf.mxu0
  %v1839 = vadd.f32 %v637, %v1838
  %1840 = vmatprep.mubr.bf16.mxu0 %v384
  %1841 = vmatmul.mubr.bf16.gmra.mxu0 %v383
  %v1842 = vpop.f32.mrf.mxu0
  %v1843 = vadd.f32 %v633, %v1842
  %v1844 = vpop.f32.mrf.mxu0
  %v1845 = vadd.f32 %v637, %v1844
  %v1846 = vpop.f32.mrf.mxu0
  %v1847 = vadd.f32 %v633, %v1846
  %v1848 = vpop.f32.mrf.mxu0
  %v1849 = vadd.f32 %v637, %v1848
  %1850 = vmatprep.mubr.bf16.mxu0 %v391
  %1851 = vmatmul.mubr.bf16.gmra.mxu0 %v390
  %v1852 = vpop.f32.mrf.mxu0
  %v1853 = vadd.f32 %v633, %v1852
  %v1854 = vpop.f32.mrf.mxu0
  %v1855 = vadd.f32 %v637, %v1854
  %v1856 = vpop.f32.mrf.mxu0
  %v1857 = vadd.f32 %v633, %v1856
  %v1858 = vpop.f32.mrf.mxu0
  %v1859 = vadd.f32 %v637, %v1858
  %1860 = vmatprep.mubr.bf16.mxu0 %v398
  %1861 = vmatmul.mubr.bf16.gmra.mxu0 %v397
  %v1862 = vpop.f32.mrf.mxu0
  %v1863 = vadd.f32 %v633, %v1862
  %v1864 = vpop.f32.mrf.mxu0
  %v1865 = vadd.f32 %v637, %v1864
  %v1866 = vpop.f32.mrf.mxu0
  %v1867 = vadd.f32 %v633, %v1866
  %v1868 = vpop.f32.mrf.mxu0
  %v1869 = vadd.f32 %v637, %v1868
  %1870 = vmatprep.mubr.bf16.mxu0 %v405
  %1871 = vmatmul.mubr.bf16.gmra.mxu0 %v404
  %v1872 = vpop.f32.mrf.mxu0
  %v1873 = vadd.f32 %v633, %v1872
  %v1874 = vpop.f32.mrf.mxu0
  %v1875 = vadd.f32 %v637, %v1874
  %v1876 = vpop.f32.mrf.mxu0
  %v1877 = vadd.f32 %v633, %v1876
  %v1878 = vpop.f32.mrf.mxu0
  %v1879 = vadd.f32 %v637, %v1878
  %1880 = vmatprep.mubr.bf16.mxu0 %v412
  %1881 = vmatmul.mubr.bf16.gmra.mxu0 %v411
  %v1882 = vpop.f32.mrf.mxu0
  %v1883 = vadd.f32 %v633, %v1882
  %v1884 = vpop.f32.mrf.mxu0
  %v1885 = vadd.f32 %v637, %v1884
  %v1886 = vpop.f32.mrf.mxu0
  %v1887 = vadd.f32 %v633, %v1886
  %v1888 = vpop.f32.mrf.mxu0
  %v1889 = vadd.f32 %v637, %v1888
  %1890 = vmatprep.mubr.bf16.mxu0 %v419
  %1891 = vmatmul.mubr.bf16.gmra.mxu0 %v418
  %v1892 = vpop.f32.mrf.mxu0
  %v1893 = vadd.f32 %v633, %v1892
  %v1894 = vpop.f32.mrf.mxu0
  %v1895 = vadd.f32 %v637, %v1894
  %v1896 = vpop.f32.mrf.mxu0
  %v1897 = vadd.f32 %v633, %v1896
  %v1898 = vpop.f32.mrf.mxu0
  %v1899 = vadd.f32 %v637, %v1898
  %1900 = vmatprep.mubr.bf16.mxu0 %v426
  %1901 = vmatmul.mubr.bf16.gmra.mxu0 %v425
  %v1902 = vpop.f32.mrf.mxu0
  %v1903 = vadd.f32 %v633, %v1902
  %v1904 = vpop.f32.mrf.mxu0
  %v1905 = vadd.f32 %v637, %v1904
  %v1906 = vpop.f32.mrf.mxu0
  %v1907 = vadd.f32 %v633, %v1906
  %v1908 = vpop.f32.mrf.mxu0
  %v1909 = vadd.f32 %v637, %v1908
  %1910 = vdwg.mxu0
  %1911 = vmatprep.subr.bf16.mxu0 %v1331
  %1912 = vmatpush1.bf16.msra.mxu0 %v1330
  %1913 = vmatprep.subr.bf16.mxu0 %v1327
  %1914 = vmatpush1.bf16.msra.mxu0 %v1326
  %1915 = vmatprep.subr.bf16.mxu0 %v1323
  %1916 = vmatpush1.bf16.msra.mxu0 %v1322
  %1917 = vmatprep.subr.bf16.mxu0 %v1319
  %1918 = vmatpush1.bf16.msra.mxu0 %v1318
  %1919 = vmatprep.subr.bf16.mxu0 %v1315
  %1920 = vmatpush1.bf16.msra.mxu0 %v1314
  %1921 = vmatprep.subr.bf16.mxu0 %v1311
  %1922 = vmatpush1.bf16.msra.mxu0 %v1310
  %1923 = vmatprep.subr.bf16.mxu0 %v1307
  %1924 = vmatpush1.bf16.msra.mxu0 %v1306
  %1925 = vmatprep.subr.bf16.mxu0 %v1303
  %1926 = vmatpush1.bf16.msra.mxu0 %v1302
  %1927 = vmatprep.subr.bf16.mxu0 %v1363
  %1928 = vmatpush2.bf16.msra.mxu0 %v1362
  %1929 = vmatprep.subr.bf16.mxu0 %v1359
  %1930 = vmatpush2.bf16.msra.mxu0 %v1358
  %1931 = vmatprep.subr.bf16.mxu0 %v1355
  %1932 = vmatpush2.bf16.msra.mxu0 %v1354
  %1933 = vmatprep.subr.bf16.mxu0 %v1351
  %1934 = vmatpush2.bf16.msra.mxu0 %v1350
  %1935 = vmatprep.subr.bf16.mxu0 %v1347
  %1936 = vmatpush2.bf16.msra.mxu0 %v1346
  %1937 = vmatprep.subr.bf16.mxu0 %v1343
  %1938 = vmatpush2.bf16.msra.mxu0 %v1342
  %1939 = vmatprep.subr.bf16.mxu0 %v1339
  %1940 = vmatpush2.bf16.msra.mxu0 %v1338
  %1941 = vmatprep.subr.bf16.mxu0 %v1335
  %1942 = vmatpush2.bf16.msra.mxu0 %v1334
  %1943 = vmatprep.mubr.bf16.mxu0 %v302
  %1944 = vmatmul.mubr.bf16.gmra.mxu0 %v301
  %v1945 = vpop.f32.mrf.mxu0
  %v1946 = vadd.f32 %v1723, %v1945
  %v1947 = vpop.f32.mrf.mxu0
  %v1948 = vadd.f32 %v1725, %v1947
  %v1949 = vpop.f32.mrf.mxu0
  %v1950 = vadd.f32 %v1727, %v1949
  %v1951 = vpop.f32.mrf.mxu0
  %v1952 = vadd.f32 %v1729, %v1951
  %1953 = vmatprep.mubr.bf16.mxu0 %v309
  %1954 = vmatmul.mubr.bf16.gmra.mxu0 %v308
  %v1955 = vpop.f32.mrf.mxu0
  %v1956 = vadd.f32 %v1733, %v1955
  %v1957 = vpop.f32.mrf.mxu0
  %v1958 = vadd.f32 %v1735, %v1957
  %v1959 = vpop.f32.mrf.mxu0
  %v1960 = vadd.f32 %v1737, %v1959
  %v1961 = vpop.f32.mrf.mxu0
  %v1962 = vadd.f32 %v1739, %v1961
  %1963 = vmatprep.mubr.bf16.mxu0 %v316
  %1964 = vmatmul.mubr.bf16.gmra.mxu0 %v315
  %v1965 = vpop.f32.mrf.mxu0
  %v1966 = vadd.f32 %v1743, %v1965
  %v1967 = vpop.f32.mrf.mxu0
  %v1968 = vadd.f32 %v1745, %v1967
  %v1969 = vpop.f32.mrf.mxu0
  %v1970 = vadd.f32 %v1747, %v1969
  %v1971 = vpop.f32.mrf.mxu0
  %v1972 = vadd.f32 %v1749, %v1971
  %1973 = vmatprep.mubr.bf16.mxu0 %v323
  %1974 = vmatmul.mubr.bf16.gmra.mxu0 %v322
  %v1975 = vpop.f32.mrf.mxu0
  %v1976 = vadd.f32 %v1753, %v1975
  %v1977 = vpop.f32.mrf.mxu0
  %v1978 = vadd.f32 %v1755, %v1977
  %v1979 = vpop.f32.mrf.mxu0
  %v1980 = vadd.f32 %v1757, %v1979
  %v1981 = vpop.f32.mrf.mxu0
  %v1982 = vadd.f32 %v1759, %v1981
  %1983 = vmatprep.mubr.bf16.mxu0 %v330
  %1984 = vmatmul.mubr.bf16.gmra.mxu0 %v329
  %v1985 = vpop.f32.mrf.mxu0
  %v1986 = vadd.f32 %v1763, %v1985
  %v1987 = vpop.f32.mrf.mxu0
  %v1988 = vadd.f32 %v1765, %v1987
  %v1989 = vpop.f32.mrf.mxu0
  %v1990 = vadd.f32 %v1767, %v1989
  %v1991 = vpop.f32.mrf.mxu0
  %v1992 = vadd.f32 %v1769, %v1991
  %1993 = vmatprep.mubr.bf16.mxu0 %v337
  %1994 = vmatmul.mubr.bf16.gmra.mxu0 %v336
  %v1995 = vpop.f32.mrf.mxu0
  %v1996 = vadd.f32 %v1773, %v1995
  %v1997 = vpop.f32.mrf.mxu0
  %v1998 = vadd.f32 %v1775, %v1997
  %v1999 = vpop.f32.mrf.mxu0
  %v2000 = vadd.f32 %v1777, %v1999
  %v2001 = vpop.f32.mrf.mxu0
  %v2002 = vadd.f32 %v1779, %v2001
  %2003 = vmatprep.mubr.bf16.mxu0 %v344
  %2004 = vmatmul.mubr.bf16.gmra.mxu0 %v343
  %v2005 = vpop.f32.mrf.mxu0
  %v2006 = vadd.f32 %v1783, %v2005
  %v2007 = vpop.f32.mrf.mxu0
  %v2008 = vadd.f32 %v1785, %v2007
  %v2009 = vpop.f32.mrf.mxu0
  %v2010 = vadd.f32 %v1787, %v2009
  %v2011 = vpop.f32.mrf.mxu0
  %v2012 = vadd.f32 %v1789, %v2011
  %2013 = vmatprep.mubr.bf16.mxu0 %v351
  %2014 = vmatmul.mubr.bf16.gmra.mxu0 %v350
  %v2015 = vpop.f32.mrf.mxu0
  %v2016 = vadd.f32 %v1793, %v2015
  %v2017 = vpop.f32.mrf.mxu0
  %v2018 = vadd.f32 %v1795, %v2017
  %v2019 = vpop.f32.mrf.mxu0
  %v2020 = vadd.f32 %v1797, %v2019
  %v2021 = vpop.f32.mrf.mxu0
  %v2022 = vadd.f32 %v1799, %v2021
  %2023 = vmatprep.mubr.bf16.mxu0 %v358
  %2024 = vmatmul.mubr.bf16.gmra.mxu0 %v357
  %v2025 = vpop.f32.mrf.mxu0
  %v2026 = vadd.f32 %v1803, %v2025
  %v2027 = vpop.f32.mrf.mxu0
  %v2028 = vadd.f32 %v1805, %v2027
  %v2029 = vpop.f32.mrf.mxu0
  %v2030 = vadd.f32 %v1807, %v2029
  %v2031 = vpop.f32.mrf.mxu0
  %v2032 = vadd.f32 %v1809, %v2031
  %2033 = vmatprep.mubr.bf16.mxu0 %v365
  %2034 = vmatmul.mubr.bf16.gmra.mxu0 %v364
  %v2035 = vpop.f32.mrf.mxu0
  %v2036 = vadd.f32 %v1813, %v2035
  %v2037 = vpop.f32.mrf.mxu0
  %v2038 = vadd.f32 %v1815, %v2037
  %v2039 = vpop.f32.mrf.mxu0
  %v2040 = vadd.f32 %v1817, %v2039
  %v2041 = vpop.f32.mrf.mxu0
  %v2042 = vadd.f32 %v1819, %v2041
  %2043 = vmatprep.mubr.bf16.mxu0 %v372
  %2044 = vmatmul.mubr.bf16.gmra.mxu0 %v371
  %v2045 = vpop.f32.mrf.mxu0
  %v2046 = vadd.f32 %v1823, %v2045
  %v2047 = vpop.f32.mrf.mxu0
  %v2048 = vadd.f32 %v1825, %v2047
  %v2049 = vpop.f32.mrf.mxu0
  %v2050 = vadd.f32 %v1827, %v2049
  %v2051 = vpop.f32.mrf.mxu0
  %v2052 = vadd.f32 %v1829, %v2051
  %2053 = vmatprep.mubr.bf16.mxu0 %v379
  %2054 = vmatmul.mubr.bf16.gmra.mxu0 %v378
  %v2055 = vpop.f32.mrf.mxu0
  %v2056 = vadd.f32 %v1833, %v2055
  %v2057 = vpop.f32.mrf.mxu0
  %v2058 = vadd.f32 %v1835, %v2057
  %v2059 = vpop.f32.mrf.mxu0
  %v2060 = vadd.f32 %v1837, %v2059
  %v2061 = vpop.f32.mrf.mxu0
  %v2062 = vadd.f32 %v1839, %v2061
  %2063 = vmatprep.mubr.bf16.mxu0 %v386
  %2064 = vmatmul.mubr.bf16.gmra.mxu0 %v385
  %v2065 = vpop.f32.mrf.mxu0
  %v2066 = vadd.f32 %v1843, %v2065
  %v2067 = vpop.f32.mrf.mxu0
  %v2068 = vadd.f32 %v1845, %v2067
  %v2069 = vpop.f32.mrf.mxu0
  %v2070 = vadd.f32 %v1847, %v2069
  %v2071 = vpop.f32.mrf.mxu0
  %v2072 = vadd.f32 %v1849, %v2071
  %2073 = vmatprep.mubr.bf16.mxu0 %v393
  %2074 = vmatmul.mubr.bf16.gmra.mxu0 %v392
  %v2075 = vpop.f32.mrf.mxu0
  %v2076 = vadd.f32 %v1853, %v2075
  %v2077 = vpop.f32.mrf.mxu0
  %v2078 = vadd.f32 %v1855, %v2077
  %v2079 = vpop.f32.mrf.mxu0
  %v2080 = vadd.f32 %v1857, %v2079
  %v2081 = vpop.f32.mrf.mxu0
  %v2082 = vadd.f32 %v1859, %v2081
  %2083 = vmatprep.mubr.bf16.mxu0 %v400
  %2084 = vmatmul.mubr.bf16.gmra.mxu0 %v399
  %v2085 = vpop.f32.mrf.mxu0
  %v2086 = vadd.f32 %v1863, %v2085
  %v2087 = vpop.f32.mrf.mxu0
  %v2088 = vadd.f32 %v1865, %v2087
  %v2089 = vpop.f32.mrf.mxu0
  %v2090 = vadd.f32 %v1867, %v2089
  %v2091 = vpop.f32.mrf.mxu0
  %v2092 = vadd.f32 %v1869, %v2091
  %2093 = vmatprep.mubr.bf16.mxu0 %v407
  %2094 = vmatmul.mubr.bf16.gmra.mxu0 %v406
  %v2095 = vpop.f32.mrf.mxu0
  %v2096 = vadd.f32 %v1873, %v2095
  %v2097 = vpop.f32.mrf.mxu0
  %v2098 = vadd.f32 %v1875, %v2097
  %v2099 = vpop.f32.mrf.mxu0
  %v2100 = vadd.f32 %v1877, %v2099
  %v2101 = vpop.f32.mrf.mxu0
  %v2102 = vadd.f32 %v1879, %v2101
  %2103 = vmatprep.mubr.bf16.mxu0 %v414
  %2104 = vmatmul.mubr.bf16.gmra.mxu0 %v413
  %v2105 = vpop.f32.mrf.mxu0
  %v2106 = vadd.f32 %v1883, %v2105
  %v2107 = vpop.f32.mrf.mxu0
  %v2108 = vadd.f32 %v1885, %v2107
  %v2109 = vpop.f32.mrf.mxu0
  %v2110 = vadd.f32 %v1887, %v2109
  %v2111 = vpop.f32.mrf.mxu0
  %v2112 = vadd.f32 %v1889, %v2111
  %2113 = vmatprep.mubr.bf16.mxu0 %v421
  %2114 = vmatmul.mubr.bf16.gmra.mxu0 %v420
  %v2115 = vpop.f32.mrf.mxu0
  %v2116 = vadd.f32 %v1893, %v2115
  %v2117 = vpop.f32.mrf.mxu0
  %v2118 = vadd.f32 %v1895, %v2117
  %v2119 = vpop.f32.mrf.mxu0
  %v2120 = vadd.f32 %v1897, %v2119
  %v2121 = vpop.f32.mrf.mxu0
  %v2122 = vadd.f32 %v1899, %v2121
  %2123 = vmatprep.mubr.bf16.mxu0 %v428
  %2124 = vmatmul.mubr.bf16.gmra.mxu0 %v427
  %v2125 = vpop.f32.mrf.mxu0
  %v2126 = vadd.f32 %v1903, %v2125
  %v2127 = vpop.f32.mrf.mxu0
  %v2128 = vadd.f32 %v1905, %v2127
  %v2129 = vpop.f32.mrf.mxu0
  %v2130 = vadd.f32 %v1907, %v2129
  %v2131 = vpop.f32.mrf.mxu0
  %v2132 = vadd.f32 %v1909, %v2131
  %2133 = vdwg.mxu0
  %2134 = vmatprep.subr.bf16.mxu0 %v1395
  %2135 = vmatpush1.bf16.msra.mxu0 %v1394
  %2136 = vmatprep.subr.bf16.mxu0 %v1391
  %2137 = vmatpush1.bf16.msra.mxu0 %v1390
  %2138 = vmatprep.subr.bf16.mxu0 %v1387
  %2139 = vmatpush1.bf16.msra.mxu0 %v1386
  %2140 = vmatprep.subr.bf16.mxu0 %v1383
  %2141 = vmatpush1.bf16.msra.mxu0 %v1382
  %2142 = vmatprep.subr.bf16.mxu0 %v1379
  %2143 = vmatpush1.bf16.msra.mxu0 %v1378
  %2144 = vmatprep.subr.bf16.mxu0 %v1375
  %2145 = vmatpush1.bf16.msra.mxu0 %v1374
  %2146 = vmatprep.subr.bf16.mxu0 %v1371
  %2147 = vmatpush1.bf16.msra.mxu0 %v1370
  %2148 = vmatprep.subr.bf16.mxu0 %v1367
  %2149 = vmatpush1.bf16.msra.mxu0 %v1366
  %2150 = vmatprep.subr.bf16.mxu0 %v1427
  %2151 = vmatpush2.bf16.msra.mxu0 %v1426
  %2152 = vmatprep.subr.bf16.mxu0 %v1423
  %2153 = vmatpush2.bf16.msra.mxu0 %v1422
  %2154 = vmatprep.subr.bf16.mxu0 %v1419
  %2155 = vmatpush2.bf16.msra.mxu0 %v1418
  %2156 = vmatprep.subr.bf16.mxu0 %v1415
  %2157 = vmatpush2.bf16.msra.mxu0 %v1414
  %2158 = vmatprep.subr.bf16.mxu0 %v1411
  %2159 = vmatpush2.bf16.msra.mxu0 %v1410
  %2160 = vmatprep.subr.bf16.mxu0 %v1407
  %2161 = vmatpush2.bf16.msra.mxu0 %v1406
  %2162 = vmatprep.subr.bf16.mxu0 %v1403
  %2163 = vmatpush2.bf16.msra.mxu0 %v1402
  %2164 = vmatprep.subr.bf16.mxu0 %v1399
  %2165 = vmatpush2.bf16.msra.mxu0 %v1398
  %2166 = vmatprep.mubr.bf16.mxu0 %v304
  %2167 = vmatmul.mubr.bf16.gmra.mxu0 %v303
  %v2168 = vpop.f32.mrf.mxu0
  %v2169 = vadd.f32 %v1946, %v2168
  %v2170 = vpop.f32.mrf.mxu0
  %v2171 = vadd.f32 %v1948, %v2170
  %v2172 = vpop.f32.mrf.mxu0
  %v2173 = vadd.f32 %v1950, %v2172
  %v2174 = vpop.f32.mrf.mxu0
  %v2175 = vadd.f32 %v1952, %v2174
  %2176 = vmatprep.mubr.bf16.mxu0 %v311
  %2177 = vmatmul.mubr.bf16.gmra.mxu0 %v310
  %v2178 = vpop.f32.mrf.mxu0
  %v2179 = vadd.f32 %v1956, %v2178
  %v2180 = vpop.f32.mrf.mxu0
  %v2181 = vadd.f32 %v1958, %v2180
  %v2182 = vpop.f32.mrf.mxu0
  %v2183 = vadd.f32 %v1960, %v2182
  %v2184 = vpop.f32.mrf.mxu0
  %v2185 = vadd.f32 %v1962, %v2184
  %2186 = vmatprep.mubr.bf16.mxu0 %v318
  %2187 = vmatmul.mubr.bf16.gmra.mxu0 %v317
  %v2188 = vpop.f32.mrf.mxu0
  %v2189 = vadd.f32 %v1966, %v2188
  %v2190 = vpop.f32.mrf.mxu0
  %v2191 = vadd.f32 %v1968, %v2190
  %v2192 = vpop.f32.mrf.mxu0
  %v2193 = vadd.f32 %v1970, %v2192
  %v2194 = vpop.f32.mrf.mxu0
  %v2195 = vadd.f32 %v1972, %v2194
  %2196 = vmatprep.mubr.bf16.mxu0 %v325
  %2197 = vmatmul.mubr.bf16.gmra.mxu0 %v324
  %v2198 = vpop.f32.mrf.mxu0
  %v2199 = vadd.f32 %v1976, %v2198
  %v2200 = vpop.f32.mrf.mxu0
  %v2201 = vadd.f32 %v1978, %v2200
  %v2202 = vpop.f32.mrf.mxu0
  %v2203 = vadd.f32 %v1980, %v2202
  %v2204 = vpop.f32.mrf.mxu0
  %v2205 = vadd.f32 %v1982, %v2204
  %2206 = vmatprep.mubr.bf16.mxu0 %v332
  %2207 = vmatmul.mubr.bf16.gmra.mxu0 %v331
  %v2208 = vpop.f32.mrf.mxu0
  %v2209 = vadd.f32 %v1986, %v2208
  %v2210 = vpop.f32.mrf.mxu0
  %v2211 = vadd.f32 %v1988, %v2210
  %v2212 = vpop.f32.mrf.mxu0
  %v2213 = vadd.f32 %v1990, %v2212
  %v2214 = vpop.f32.mrf.mxu0
  %v2215 = vadd.f32 %v1992, %v2214
  %2216 = vmatprep.mubr.bf16.mxu0 %v339
  %2217 = vmatmul.mubr.bf16.gmra.mxu0 %v338
  %v2218 = vpop.f32.mrf.mxu0
  %v2219 = vadd.f32 %v1996, %v2218
  %v2220 = vpop.f32.mrf.mxu0
  %v2221 = vadd.f32 %v1998, %v2220
  %v2222 = vpop.f32.mrf.mxu0
  %v2223 = vadd.f32 %v2000, %v2222
  %v2224 = vpop.f32.mrf.mxu0
  %v2225 = vadd.f32 %v2002, %v2224
  %2226 = vmatprep.mubr.bf16.mxu0 %v346
  %2227 = vmatmul.mubr.bf16.gmra.mxu0 %v345
  %v2228 = vpop.f32.mrf.mxu0
  %v2229 = vadd.f32 %v2006, %v2228
  %v2230 = vpop.f32.mrf.mxu0
  %v2231 = vadd.f32 %v2008, %v2230
  %v2232 = vpop.f32.mrf.mxu0
  %v2233 = vadd.f32 %v2010, %v2232
  %v2234 = vpop.f32.mrf.mxu0
  %v2235 = vadd.f32 %v2012, %v2234
  %2236 = vmatprep.mubr.bf16.mxu0 %v353
  %2237 = vmatmul.mubr.bf16.gmra.mxu0 %v352
  %v2238 = vpop.f32.mrf.mxu0
  %v2239 = vadd.f32 %v2016, %v2238
  %v2240 = vpop.f32.mrf.mxu0
  %v2241 = vadd.f32 %v2018, %v2240
  %v2242 = vpop.f32.mrf.mxu0
  %v2243 = vadd.f32 %v2020, %v2242
  %v2244 = vpop.f32.mrf.mxu0
  %v2245 = vadd.f32 %v2022, %v2244
  %2246 = vmatprep.mubr.bf16.mxu0 %v360
  %2247 = vmatmul.mubr.bf16.gmra.mxu0 %v359
  %v2248 = vpop.f32.mrf.mxu0
  %v2249 = vadd.f32 %v2026, %v2248
  %v2250 = vpop.f32.mrf.mxu0
  %v2251 = vadd.f32 %v2028, %v2250
  %v2252 = vpop.f32.mrf.mxu0
  %v2253 = vadd.f32 %v2030, %v2252
  %v2254 = vpop.f32.mrf.mxu0
  %v2255 = vadd.f32 %v2032, %v2254
  %2256 = vmatprep.mubr.bf16.mxu0 %v367
  %2257 = vmatmul.mubr.bf16.gmra.mxu0 %v366
  %v2258 = vpop.f32.mrf.mxu0
  %v2259 = vadd.f32 %v2036, %v2258
  %v2260 = vpop.f32.mrf.mxu0
  %v2261 = vadd.f32 %v2038, %v2260
  %v2262 = vpop.f32.mrf.mxu0
  %v2263 = vadd.f32 %v2040, %v2262
  %v2264 = vpop.f32.mrf.mxu0
  %v2265 = vadd.f32 %v2042, %v2264
  %2266 = vmatprep.mubr.bf16.mxu0 %v374
  %2267 = vmatmul.mubr.bf16.gmra.mxu0 %v373
  %v2268 = vpop.f32.mrf.mxu0
  %v2269 = vadd.f32 %v2046, %v2268
  %v2270 = vpop.f32.mrf.mxu0
  %v2271 = vadd.f32 %v2048, %v2270
  %v2272 = vpop.f32.mrf.mxu0
  %v2273 = vadd.f32 %v2050, %v2272
  %v2274 = vpop.f32.mrf.mxu0
  %v2275 = vadd.f32 %v2052, %v2274
  %2276 = vmatprep.mubr.bf16.mxu0 %v381
  %2277 = vmatmul.mubr.bf16.gmra.mxu0 %v380
  %v2278 = vpop.f32.mrf.mxu0
  %v2279 = vadd.f32 %v2056, %v2278
  %v2280 = vpop.f32.mrf.mxu0
  %v2281 = vadd.f32 %v2058, %v2280
  %v2282 = vpop.f32.mrf.mxu0
  %v2283 = vadd.f32 %v2060, %v2282
  %v2284 = vpop.f32.mrf.mxu0
  %v2285 = vadd.f32 %v2062, %v2284
  %2286 = vmatprep.mubr.bf16.mxu0 %v388
  %2287 = vmatmul.mubr.bf16.gmra.mxu0 %v387
  %v2288 = vpop.f32.mrf.mxu0
  %v2289 = vadd.f32 %v2066, %v2288
  %v2290 = vpop.f32.mrf.mxu0
  %v2291 = vadd.f32 %v2068, %v2290
  %v2292 = vpop.f32.mrf.mxu0
  %v2293 = vadd.f32 %v2070, %v2292
  %v2294 = vpop.f32.mrf.mxu0
  %v2295 = vadd.f32 %v2072, %v2294
  %2296 = vmatprep.mubr.bf16.mxu0 %v395
  %2297 = vmatmul.mubr.bf16.gmra.mxu0 %v394
  %v2298 = vpop.f32.mrf.mxu0
  %v2299 = vadd.f32 %v2076, %v2298
  %v2300 = vpop.f32.mrf.mxu0
  %v2301 = vadd.f32 %v2078, %v2300
  %v2302 = vpop.f32.mrf.mxu0
  %v2303 = vadd.f32 %v2080, %v2302
  %v2304 = vpop.f32.mrf.mxu0
  %v2305 = vadd.f32 %v2082, %v2304
  %2306 = vmatprep.mubr.bf16.mxu0 %v402
  %2307 = vmatmul.mubr.bf16.gmra.mxu0 %v401
  %v2308 = vpop.f32.mrf.mxu0
  %v2309 = vadd.f32 %v2086, %v2308
  %v2310 = vpop.f32.mrf.mxu0
  %v2311 = vadd.f32 %v2088, %v2310
  %v2312 = vpop.f32.mrf.mxu0
  %v2313 = vadd.f32 %v2090, %v2312
  %v2314 = vpop.f32.mrf.mxu0
  %v2315 = vadd.f32 %v2092, %v2314
  %2316 = vmatprep.mubr.bf16.mxu0 %v409
  %2317 = vmatmul.mubr.bf16.gmra.mxu0 %v408
  %v2318 = vpop.f32.mrf.mxu0
  %v2319 = vadd.f32 %v2096, %v2318
  %v2320 = vpop.f32.mrf.mxu0
  %v2321 = vadd.f32 %v2098, %v2320
  %v2322 = vpop.f32.mrf.mxu0
  %v2323 = vadd.f32 %v2100, %v2322
  %v2324 = vpop.f32.mrf.mxu0
  %v2325 = vadd.f32 %v2102, %v2324
  %2326 = vmatprep.mubr.bf16.mxu0 %v416
  %2327 = vmatmul.mubr.bf16.gmra.mxu0 %v415
  %v2328 = vpop.f32.mrf.mxu0
  %v2329 = vadd.f32 %v2106, %v2328
  %v2330 = vpop.f32.mrf.mxu0
  %v2331 = vadd.f32 %v2108, %v2330
  %v2332 = vpop.f32.mrf.mxu0
  %v2333 = vadd.f32 %v2110, %v2332
  %v2334 = vpop.f32.mrf.mxu0
  %v2335 = vadd.f32 %v2112, %v2334
  %2336 = vmatprep.mubr.bf16.mxu0 %v423
  %2337 = vmatmul.mubr.bf16.gmra.mxu0 %v422
  %v2338 = vpop.f32.mrf.mxu0
  %v2339 = vadd.f32 %v2116, %v2338
  %v2340 = vpop.f32.mrf.mxu0
  %v2341 = vadd.f32 %v2118, %v2340
  %v2342 = vpop.f32.mrf.mxu0
  %v2343 = vadd.f32 %v2120, %v2342
  %v2344 = vpop.f32.mrf.mxu0
  %v2345 = vadd.f32 %v2122, %v2344
  %2346 = vmatprep.mubr.bf16.mxu0 %v430
  %2347 = vmatmul.mubr.bf16.gmra.mxu0 %v429
  %v2348 = vpop.f32.mrf.mxu0
  %v2349 = vadd.f32 %v2126, %v2348
  %v2350 = vpop.f32.mrf.mxu0
  %v2351 = vadd.f32 %v2128, %v2350
  %v2352 = vpop.f32.mrf.mxu0
  %v2353 = vadd.f32 %v2130, %v2352
  %v2354 = vpop.f32.mrf.mxu0
  %v2355 = vadd.f32 %v2132, %v2354
  %2356 = vdwg.mxu0
  %2357 = vmatprep.subr.bf16.mxu0 0
  %2358 = vmatpush1.bf16.msra.mxu0 0
  %2359 = vmatprep.subr.bf16.mxu0 0
  %2360 = vmatpush1.bf16.msra.mxu0 0
  %2361 = vmatprep.subr.bf16.mxu0 0
  %2362 = vmatpush1.bf16.msra.mxu0 0
  %2363 = vmatprep.subr.bf16.mxu0 0
  %2364 = vmatpush1.bf16.msra.mxu0 0
  %2365 = vmatprep.subr.bf16.mxu0 0
  %2366 = vmatpush1.bf16.msra.mxu0 0
  %2367 = vmatprep.subr.bf16.mxu0 0
  %2368 = vmatpush1.bf16.msra.mxu0 0
  %2369 = vmatprep.subr.bf16.mxu0 0
  %2370 = vmatpush1.bf16.msra.mxu0 0
  %2371 = vmatprep.subr.bf16.mxu0 %v1431
  %2372 = vmatpush1.bf16.msra.mxu0 %v1430
  %2373 = vmatprep.subr.bf16.mxu0 0
  %2374 = vmatpush2.bf16.msra.mxu0 0
  %2375 = vmatprep.subr.bf16.mxu0 0
  %2376 = vmatpush2.bf16.msra.mxu0 0
  %2377 = vmatprep.subr.bf16.mxu0 0
  %2378 = vmatpush2.bf16.msra.mxu0 0
  %2379 = vmatprep.subr.bf16.mxu0 0
  %2380 = vmatpush2.bf16.msra.mxu0 0
  %2381 = vmatprep.subr.bf16.mxu0 0
  %2382 = vmatpush2.bf16.msra.mxu0 0
  %2383 = vmatprep.subr.bf16.mxu0 0
  %2384 = vmatpush2.bf16.msra.mxu0 0
  %2385 = vmatprep.subr.bf16.mxu0 0
  %2386 = vmatpush2.bf16.msra.mxu0 0
  %2387 = vmatprep.subr.bf16.mxu0 0
  %2388 = vmatpush2.bf16.msra.mxu0 0
  %2389 = vmatprep.mubr.bf16.mxu0 0
  %2390 = vmatmul.mubr.bf16.gmra.mxu0 %v1632
  %v2391 = vpop.f32.mrf.mxu0
  %v2392 = vadd.f32 %v2169, %v2391
  %v2393 = vpop.f32.mrf.mxu0
  %v2394 = vadd.f32 %v2171, %v2393
  %v2395 = vpop.f32.mrf.mxu0
  %v2396 = vadd.f32 %v2173, %v2395
  %v2397 = vpop.f32.mrf.mxu0
  %v2398 = vadd.f32 %v2175, %v2397
  %2399 = vmatprep.mubr.bf16.mxu0 0
  %2400 = vmatmul.mubr.bf16.gmra.mxu0 %v1635
  %v2401 = vpop.f32.mrf.mxu0
  %v2402 = vadd.f32 %v2179, %v2401
  %v2403 = vpop.f32.mrf.mxu0
  %v2404 = vadd.f32 %v2181, %v2403
  %v2405 = vpop.f32.mrf.mxu0
  %v2406 = vadd.f32 %v2183, %v2405
  %v2407 = vpop.f32.mrf.mxu0
  %v2408 = vadd.f32 %v2185, %v2407
  %2409 = vmatprep.mubr.bf16.mxu0 0
  %2410 = vmatmul.mubr.bf16.gmra.mxu0 %v1638
  %v2411 = vpop.f32.mrf.mxu0
  %v2412 = vadd.f32 %v2189, %v2411
  %v2413 = vpop.f32.mrf.mxu0
  %v2414 = vadd.f32 %v2191, %v2413
  %v2415 = vpop.f32.mrf.mxu0
  %v2416 = vadd.f32 %v2193, %v2415
  %v2417 = vpop.f32.mrf.mxu0
  %v2418 = vadd.f32 %v2195, %v2417
  %2419 = vmatprep.mubr.bf16.mxu0 0
  %2420 = vmatmul.mubr.bf16.gmra.mxu0 %v1641
  %v2421 = vpop.f32.mrf.mxu0
  %v2422 = vadd.f32 %v2199, %v2421
  %v2423 = vpop.f32.mrf.mxu0
  %v2424 = vadd.f32 %v2201, %v2423
  %v2425 = vpop.f32.mrf.mxu0
  %v2426 = vadd.f32 %v2203, %v2425
  %v2427 = vpop.f32.mrf.mxu0
  %v2428 = vadd.f32 %v2205, %v2427
  %2429 = vmatprep.mubr.bf16.mxu0 0
  %2430 = vmatmul.mubr.bf16.gmra.mxu0 %v1644
  %v2431 = vpop.f32.mrf.mxu0
  %v2432 = vadd.f32 %v2209, %v2431
  %v2433 = vpop.f32.mrf.mxu0
  %v2434 = vadd.f32 %v2211, %v2433
  %v2435 = vpop.f32.mrf.mxu0
  %v2436 = vadd.f32 %v2213, %v2435
  %v2437 = vpop.f32.mrf.mxu0
  %v2438 = vadd.f32 %v2215, %v2437
  %2439 = vmatprep.mubr.bf16.mxu0 0
  %2440 = vmatmul.mubr.bf16.gmra.mxu0 %v1647
  %v2441 = vpop.f32.mrf.mxu0
  %v2442 = vadd.f32 %v2219, %v2441
  %v2443 = vpop.f32.mrf.mxu0
  %v2444 = vadd.f32 %v2221, %v2443
  %v2445 = vpop.f32.mrf.mxu0
  %v2446 = vadd.f32 %v2223, %v2445
  %v2447 = vpop.f32.mrf.mxu0
  %v2448 = vadd.f32 %v2225, %v2447
  %2449 = vmatprep.mubr.bf16.mxu0 0
  %2450 = vmatmul.mubr.bf16.gmra.mxu0 %v1650
  %v2451 = vpop.f32.mrf.mxu0
  %v2452 = vadd.f32 %v2229, %v2451
  %v2453 = vpop.f32.mrf.mxu0
  %v2454 = vadd.f32 %v2231, %v2453
  %v2455 = vpop.f32.mrf.mxu0
  %v2456 = vadd.f32 %v2233, %v2455
  %v2457 = vpop.f32.mrf.mxu0
  %v2458 = vadd.f32 %v2235, %v2457
  %2459 = vmatprep.mubr.bf16.mxu0 0
  %2460 = vmatmul.mubr.bf16.gmra.mxu0 %v1653
  %v2461 = vpop.f32.mrf.mxu0
  %v2462 = vadd.f32 %v2239, %v2461
  %v2463 = vpop.f32.mrf.mxu0
  %v2464 = vadd.f32 %v2241, %v2463
  %v2465 = vpop.f32.mrf.mxu0
  %v2466 = vadd.f32 %v2243, %v2465
  %v2467 = vpop.f32.mrf.mxu0
  %v2468 = vadd.f32 %v2245, %v2467
  %2469 = vmatprep.mubr.bf16.mxu0 0
  %2470 = vmatmul.mubr.bf16.gmra.mxu0 %v1656
  %v2471 = vpop.f32.mrf.mxu0
  %v2472 = vadd.f32 %v2249, %v2471
  %v2473 = vpop.f32.mrf.mxu0
  %v2474 = vadd.f32 %v2251, %v2473
  %v2475 = vpop.f32.mrf.mxu0
  %v2476 = vadd.f32 %v2253, %v2475
  %v2477 = vpop.f32.mrf.mxu0
  %v2478 = vadd.f32 %v2255, %v2477
  %2479 = vmatprep.mubr.bf16.mxu0 0
  %2480 = vmatmul.mubr.bf16.gmra.mxu0 %v1659
  %v2481 = vpop.f32.mrf.mxu0
  %v2482 = vadd.f32 %v2259, %v2481
  %v2483 = vpop.f32.mrf.mxu0
  %v2484 = vadd.f32 %v2261, %v2483
  %v2485 = vpop.f32.mrf.mxu0
  %v2486 = vadd.f32 %v2263, %v2485
  %v2487 = vpop.f32.mrf.mxu0
  %v2488 = vadd.f32 %v2265, %v2487
  %2489 = vmatprep.mubr.bf16.mxu0 0
  %2490 = vmatmul.mubr.bf16.gmra.mxu0 %v1662
  %v2491 = vpop.f32.mrf.mxu0
  %v2492 = vadd.f32 %v2269, %v2491
  %v2493 = vpop.f32.mrf.mxu0
  %v2494 = vadd.f32 %v2271, %v2493
  %v2495 = vpop.f32.mrf.mxu0
  %v2496 = vadd.f32 %v2273, %v2495
  %v2497 = vpop.f32.mrf.mxu0
  %v2498 = vadd.f32 %v2275, %v2497
  %2499 = vmatprep.mubr.bf16.mxu0 0
  %2500 = vmatmul.mubr.bf16.gmra.mxu0 %v1665
  %v2501 = vpop.f32.mrf.mxu0
  %v2502 = vadd.f32 %v2279, %v2501
  %v2503 = vpop.f32.mrf.mxu0
  %v2504 = vadd.f32 %v2281, %v2503
  %v2505 = vpop.f32.mrf.mxu0
  %v2506 = vadd.f32 %v2283, %v2505
  %v2507 = vpop.f32.mrf.mxu0
  %v2508 = vadd.f32 %v2285, %v2507
  %2509 = vmatprep.mubr.bf16.mxu0 0
  %2510 = vmatmul.mubr.bf16.gmra.mxu0 %v1668
  %v2511 = vpop.f32.mrf.mxu0
  %v2512 = vadd.f32 %v2289, %v2511
  %v2513 = vpop.f32.mrf.mxu0
  %v2514 = vadd.f32 %v2291, %v2513
  %v2515 = vpop.f32.mrf.mxu0
  %v2516 = vadd.f32 %v2293, %v2515
  %v2517 = vpop.f32.mrf.mxu0
  %v2518 = vadd.f32 %v2295, %v2517
  %2519 = vmatprep.mubr.bf16.mxu0 0
  %2520 = vmatmul.mubr.bf16.gmra.mxu0 %v1671
  %v2521 = vpop.f32.mrf.mxu0
  %v2522 = vadd.f32 %v2299, %v2521
  %v2523 = vpop.f32.mrf.mxu0
  %v2524 = vadd.f32 %v2301, %v2523
  %v2525 = vpop.f32.mrf.mxu0
  %v2526 = vadd.f32 %v2303, %v2525
  %v2527 = vpop.f32.mrf.mxu0
  %v2528 = vadd.f32 %v2305, %v2527
  %2529 = vmatprep.mubr.bf16.mxu0 0
  %2530 = vmatmul.mubr.bf16.gmra.mxu0 %v1674
  %v2531 = vpop.f32.mrf.mxu0
  %v2532 = vadd.f32 %v2309, %v2531
  %v2533 = vpop.f32.mrf.mxu0
  %v2534 = vadd.f32 %v2311, %v2533
  %v2535 = vpop.f32.mrf.mxu0
  %v2536 = vadd.f32 %v2313, %v2535
  %v2537 = vpop.f32.mrf.mxu0
  %v2538 = vadd.f32 %v2315, %v2537
  %2539 = vmatprep.mubr.bf16.mxu0 0
  %2540 = vmatmul.mubr.bf16.gmra.mxu0 %v1677
  %v2541 = vpop.f32.mrf.mxu0
  %v2542 = vadd.f32 %v2319, %v2541
  %v2543 = vpop.f32.mrf.mxu0
  %v2544 = vadd.f32 %v2321, %v2543
  %v2545 = vpop.f32.mrf.mxu0
  %v2546 = vadd.f32 %v2323, %v2545
  %v2547 = vpop.f32.mrf.mxu0
  %v2548 = vadd.f32 %v2325, %v2547
  %2549 = vmatprep.mubr.bf16.mxu0 0
  %2550 = vmatmul.mubr.bf16.gmra.mxu0 %v1680
  %v2551 = vpop.f32.mrf.mxu0
  %v2552 = vadd.f32 %v2329, %v2551
  %v2553 = vpop.f32.mrf.mxu0
  %v2554 = vadd.f32 %v2331, %v2553
  %v2555 = vpop.f32.mrf.mxu0
  %v2556 = vadd.f32 %v2333, %v2555
  %v2557 = vpop.f32.mrf.mxu0
  %v2558 = vadd.f32 %v2335, %v2557
  %2559 = vmatprep.mubr.bf16.mxu0 0
  %2560 = vmatmul.mubr.bf16.gmra.mxu0 %v1683
  %v2561 = vpop.f32.mrf.mxu0
  %v2562 = vadd.f32 %v2339, %v2561
  %v2563 = vpop.f32.mrf.mxu0
  %v2564 = vadd.f32 %v2341, %v2563
  %v2565 = vpop.f32.mrf.mxu0
  %v2566 = vadd.f32 %v2343, %v2565
  %v2567 = vpop.f32.mrf.mxu0
  %v2568 = vadd.f32 %v2345, %v2567
  %2569 = vmatprep.mubr.bf16.mxu0 0
  %2570 = vmatmul.mubr.bf16.gmra.mxu0 %v1686
  %v2571 = vpop.f32.mrf.mxu0
  %v2572 = vadd.f32 %v2349, %v2571
  %v2573 = vpop.f32.mrf.mxu0
  %v2574 = vadd.f32 %v2351, %v2573
  %v2575 = vpop.f32.mrf.mxu0
  %v2576 = vadd.f32 %v2353, %v2575
  %v2577 = vpop.f32.mrf.mxu0
  %v2578 = vadd.f32 %v2355, %v2577
  %2579 = vdwg.mxu0
  %2580 = vmatprep.subr.bf16.mxu0 %v1269
  %2581 = vmatpush1.bf16.msra.mxu0 %v1268
  %2582 = vmatprep.subr.bf16.mxu0 %v1265
  %2583 = vmatpush1.bf16.msra.mxu0 %v1264
  %2584 = vmatprep.subr.bf16.mxu0 %v1261
  %2585 = vmatpush1.bf16.msra.mxu0 %v1260
  %2586 = vmatprep.subr.bf16.mxu0 %v1257
  %2587 = vmatpush1.bf16.msra.mxu0 %v1256
  %2588 = vmatprep.subr.bf16.mxu0 %v1253
  %2589 = vmatpush1.bf16.msra.mxu0 %v1252
  %2590 = vmatprep.subr.bf16.mxu0 %v1249
  %2591 = vmatpush1.bf16.msra.mxu0 %v1248
  %2592 = vmatprep.subr.bf16.mxu0 %v1245
  %2593 = vmatpush1.bf16.msra.mxu0 %v1244
  %2594 = vmatprep.subr.bf16.mxu0 %v1241
  %2595 = vmatpush1.bf16.msra.mxu0 %v1240
  %2596 = vmatprep.subr.bf16.mxu0 %v1301
  %2597 = vmatpush2.bf16.msra.mxu0 %v1300
  %2598 = vmatprep.subr.bf16.mxu0 %v1297
  %2599 = vmatpush2.bf16.msra.mxu0 %v1296
  %2600 = vmatprep.subr.bf16.mxu0 %v1293
  %2601 = vmatpush2.bf16.msra.mxu0 %v1292
  %2602 = vmatprep.subr.bf16.mxu0 %v1289
  %2603 = vmatpush2.bf16.msra.mxu0 %v1288
  %2604 = vmatprep.subr.bf16.mxu0 %v1285
  %2605 = vmatpush2.bf16.msra.mxu0 %v1284
  %2606 = vmatprep.subr.bf16.mxu0 %v1281
  %2607 = vmatpush2.bf16.msra.mxu0 %v1280
  %2608 = vmatprep.subr.bf16.mxu0 %v1277
  %2609 = vmatpush2.bf16.msra.mxu0 %v1276
  %2610 = vmatprep.subr.bf16.mxu0 %v1273
  %2611 = vmatpush2.bf16.msra.mxu0 %v1272
  %2612 = vmatprep.mubr.bf16.mxu0 %v300
  %2613 = vmatmul.mubr.bf16.gmra.mxu0 %v299
  %v2614 = vpop.f32.mrf.mxu0
  %v2615 = vadd.f32 %v641, %v2614
  %v2616 = vpop.f32.mrf.mxu0
  %v2617 = vadd.f32 %v645, %v2616
  %v2618 = vpop.f32.mrf.mxu0
  %v2619 = vadd.f32 %v641, %v2618
  %v2620 = vpop.f32.mrf.mxu0
  %v2621 = vadd.f32 %v645, %v2620
  %2622 = vmatprep.mubr.bf16.mxu0 %v307
  %2623 = vmatmul.mubr.bf16.gmra.mxu0 %v306
  %v2624 = vpop.f32.mrf.mxu0
  %v2625 = vadd.f32 %v641, %v2624
  %v2626 = vpop.f32.mrf.mxu0
  %v2627 = vadd.f32 %v645, %v2626
  %v2628 = vpop.f32.mrf.mxu0
  %v2629 = vadd.f32 %v641, %v2628
  %v2630 = vpop.f32.mrf.mxu0
  %v2631 = vadd.f32 %v645, %v2630
  %2632 = vmatprep.mubr.bf16.mxu0 %v314
  %2633 = vmatmul.mubr.bf16.gmra.mxu0 %v313
  %v2634 = vpop.f32.mrf.mxu0
  %v2635 = vadd.f32 %v641, %v2634
  %v2636 = vpop.f32.mrf.mxu0
  %v2637 = vadd.f32 %v645, %v2636
  %v2638 = vpop.f32.mrf.mxu0
  %v2639 = vadd.f32 %v641, %v2638
  %v2640 = vpop.f32.mrf.mxu0
  %v2641 = vadd.f32 %v645, %v2640
  %2642 = vmatprep.mubr.bf16.mxu0 %v321
  %2643 = vmatmul.mubr.bf16.gmra.mxu0 %v320
  %v2644 = vpop.f32.mrf.mxu0
  %v2645 = vadd.f32 %v641, %v2644
  %v2646 = vpop.f32.mrf.mxu0
  %v2647 = vadd.f32 %v645, %v2646
  %v2648 = vpop.f32.mrf.mxu0
  %v2649 = vadd.f32 %v641, %v2648
  %v2650 = vpop.f32.mrf.mxu0
  %v2651 = vadd.f32 %v645, %v2650
  %2652 = vmatprep.mubr.bf16.mxu0 %v328
  %2653 = vmatmul.mubr.bf16.gmra.mxu0 %v327
  %v2654 = vpop.f32.mrf.mxu0
  %v2655 = vadd.f32 %v641, %v2654
  %v2656 = vpop.f32.mrf.mxu0
  %v2657 = vadd.f32 %v645, %v2656
  %v2658 = vpop.f32.mrf.mxu0
  %v2659 = vadd.f32 %v641, %v2658
  %v2660 = vpop.f32.mrf.mxu0
  %v2661 = vadd.f32 %v645, %v2660
  %2662 = vmatprep.mubr.bf16.mxu0 %v335
  %2663 = vmatmul.mubr.bf16.gmra.mxu0 %v334
  %v2664 = vpop.f32.mrf.mxu0
  %v2665 = vadd.f32 %v641, %v2664
  %v2666 = vpop.f32.mrf.mxu0
  %v2667 = vadd.f32 %v645, %v2666
  %v2668 = vpop.f32.mrf.mxu0
  %v2669 = vadd.f32 %v641, %v2668
  %v2670 = vpop.f32.mrf.mxu0
  %v2671 = vadd.f32 %v645, %v2670
  %2672 = vmatprep.mubr.bf16.mxu0 %v342
  %2673 = vmatmul.mubr.bf16.gmra.mxu0 %v341
  %v2674 = vpop.f32.mrf.mxu0
  %v2675 = vadd.f32 %v641, %v2674
  %v2676 = vpop.f32.mrf.mxu0
  %v2677 = vadd.f32 %v645, %v2676
  %v2678 = vpop.f32.mrf.mxu0
  %v2679 = vadd.f32 %v641, %v2678
  %v2680 = vpop.f32.mrf.mxu0
  %v2681 = vadd.f32 %v645, %v2680
  %2682 = vmatprep.mubr.bf16.mxu0 %v349
  %2683 = vmatmul.mubr.bf16.gmra.mxu0 %v348
  %v2684 = vpop.f32.mrf.mxu0
  %v2685 = vadd.f32 %v641, %v2684
  %v2686 = vpop.f32.mrf.mxu0
  %v2687 = vadd.f32 %v645, %v2686
  %v2688 = vpop.f32.mrf.mxu0
  %v2689 = vadd.f32 %v641, %v2688
  %v2690 = vpop.f32.mrf.mxu0
  %v2691 = vadd.f32 %v645, %v2690
  %2692 = vmatprep.mubr.bf16.mxu0 %v356
  %2693 = vmatmul.mubr.bf16.gmra.mxu0 %v355
  %v2694 = vpop.f32.mrf.mxu0
  %v2695 = vadd.f32 %v641, %v2694
  %v2696 = vpop.f32.mrf.mxu0
  %v2697 = vadd.f32 %v645, %v2696
  %v2698 = vpop.f32.mrf.mxu0
  %v2699 = vadd.f32 %v641, %v2698
  %v2700 = vpop.f32.mrf.mxu0
  %v2701 = vadd.f32 %v645, %v2700
  %2702 = vmatprep.mubr.bf16.mxu0 %v363
  %2703 = vmatmul.mubr.bf16.gmra.mxu0 %v362
  %v2704 = vpop.f32.mrf.mxu0
  %v2705 = vadd.f32 %v641, %v2704
  %v2706 = vpop.f32.mrf.mxu0
  %v2707 = vadd.f32 %v645, %v2706
  %v2708 = vpop.f32.mrf.mxu0
  %v2709 = vadd.f32 %v641, %v2708
  %v2710 = vpop.f32.mrf.mxu0
  %v2711 = vadd.f32 %v645, %v2710
  %2712 = vmatprep.mubr.bf16.mxu0 %v370
  %2713 = vmatmul.mubr.bf16.gmra.mxu0 %v369
  %v2714 = vpop.f32.mrf.mxu0
  %v2715 = vadd.f32 %v641, %v2714
  %v2716 = vpop.f32.mrf.mxu0
  %v2717 = vadd.f32 %v645, %v2716
  %v2718 = vpop.f32.mrf.mxu0
  %v2719 = vadd.f32 %v641, %v2718
  %v2720 = vpop.f32.mrf.mxu0
  %v2721 = vadd.f32 %v645, %v2720
  %2722 = vmatprep.mubr.bf16.mxu0 %v377
  %2723 = vmatmul.mubr.bf16.gmra.mxu0 %v376
  %v2724 = vpop.f32.mrf.mxu0
  %v2725 = vadd.f32 %v641, %v2724
  %v2726 = vpop.f32.mrf.mxu0
  %v2727 = vadd.f32 %v645, %v2726
  %v2728 = vpop.f32.mrf.mxu0
  %v2729 = vadd.f32 %v641, %v2728
  %v2730 = vpop.f32.mrf.mxu0
  %v2731 = vadd.f32 %v645, %v2730
  %2732 = vmatprep.mubr.bf16.mxu0 %v384
  %2733 = vmatmul.mubr.bf16.gmra.mxu0 %v383
  %v2734 = vpop.f32.mrf.mxu0
  %v2735 = vadd.f32 %v641, %v2734
  %v2736 = vpop.f32.mrf.mxu0
  %v2737 = vadd.f32 %v645, %v2736
  %v2738 = vpop.f32.mrf.mxu0
  %v2739 = vadd.f32 %v641, %v2738
  %v2740 = vpop.f32.mrf.mxu0
  %v2741 = vadd.f32 %v645, %v2740
  %2742 = vmatprep.mubr.bf16.mxu0 %v391
  %2743 = vmatmul.mubr.bf16.gmra.mxu0 %v390
  %v2744 = vpop.f32.mrf.mxu0
  %v2745 = vadd.f32 %v641, %v2744
  %v2746 = vpop.f32.mrf.mxu0
  %v2747 = vadd.f32 %v645, %v2746
  %v2748 = vpop.f32.mrf.mxu0
  %v2749 = vadd.f32 %v641, %v2748
  %v2750 = vpop.f32.mrf.mxu0
  %v2751 = vadd.f32 %v645, %v2750
  %2752 = vmatprep.mubr.bf16.mxu0 %v398
  %2753 = vmatmul.mubr.bf16.gmra.mxu0 %v397
  %v2754 = vpop.f32.mrf.mxu0
  %v2755 = vadd.f32 %v641, %v2754
  %v2756 = vpop.f32.mrf.mxu0
  %v2757 = vadd.f32 %v645, %v2756
  %v2758 = vpop.f32.mrf.mxu0
  %v2759 = vadd.f32 %v641, %v2758
  %v2760 = vpop.f32.mrf.mxu0
  %v2761 = vadd.f32 %v645, %v2760
  %2762 = vmatprep.mubr.bf16.mxu0 %v405
  %2763 = vmatmul.mubr.bf16.gmra.mxu0 %v404
  %v2764 = vpop.f32.mrf.mxu0
  %v2765 = vadd.f32 %v641, %v2764
  %v2766 = vpop.f32.mrf.mxu0
  %v2767 = vadd.f32 %v645, %v2766
  %v2768 = vpop.f32.mrf.mxu0
  %v2769 = vadd.f32 %v641, %v2768
  %v2770 = vpop.f32.mrf.mxu0
  %v2771 = vadd.f32 %v645, %v2770
  %2772 = vmatprep.mubr.bf16.mxu0 %v412
  %2773 = vmatmul.mubr.bf16.gmra.mxu0 %v411
  %v2774 = vpop.f32.mrf.mxu0
  %v2775 = vadd.f32 %v641, %v2774
  %v2776 = vpop.f32.mrf.mxu0
  %v2777 = vadd.f32 %v645, %v2776
  %v2778 = vpop.f32.mrf.mxu0
  %v2779 = vadd.f32 %v641, %v2778
  %v2780 = vpop.f32.mrf.mxu0
  %v2781 = vadd.f32 %v645, %v2780
  %2782 = vmatprep.mubr.bf16.mxu0 %v419
  %2783 = vmatmul.mubr.bf16.gmra.mxu0 %v418
  %v2784 = vpop.f32.mrf.mxu0
  %v2785 = vadd.f32 %v641, %v2784
  %v2786 = vpop.f32.mrf.mxu0
  %v2787 = vadd.f32 %v645, %v2786
  %v2788 = vpop.f32.mrf.mxu0
  %v2789 = vadd.f32 %v641, %v2788
  %v2790 = vpop.f32.mrf.mxu0
  %v2791 = vadd.f32 %v645, %v2790
  %2792 = vmatprep.mubr.bf16.mxu0 %v426
  %2793 = vmatmul.mubr.bf16.gmra.mxu0 %v425
  %v2794 = vpop.f32.mrf.mxu0
  %v2795 = vadd.f32 %v641, %v2794
  %v2796 = vpop.f32.mrf.mxu0
  %v2797 = vadd.f32 %v645, %v2796
  %v2798 = vpop.f32.mrf.mxu0
  %v2799 = vadd.f32 %v641, %v2798
  %v2800 = vpop.f32.mrf.mxu0
  %v2801 = vadd.f32 %v645, %v2800
  %2802 = vdwg.mxu0
  %2803 = vmatprep.subr.bf16.mxu0 %v1333
  %2804 = vmatpush1.bf16.msra.mxu0 %v1332
  %2805 = vmatprep.subr.bf16.mxu0 %v1329
  %2806 = vmatpush1.bf16.msra.mxu0 %v1328
  %2807 = vmatprep.subr.bf16.mxu0 %v1325
  %2808 = vmatpush1.bf16.msra.mxu0 %v1324
  %2809 = vmatprep.subr.bf16.mxu0 %v1321
  %2810 = vmatpush1.bf16.msra.mxu0 %v1320
  %2811 = vmatprep.subr.bf16.mxu0 %v1317
  %2812 = vmatpush1.bf16.msra.mxu0 %v1316
  %2813 = vmatprep.subr.bf16.mxu0 %v1313
  %2814 = vmatpush1.bf16.msra.mxu0 %v1312
  %2815 = vmatprep.subr.bf16.mxu0 %v1309
  %2816 = vmatpush1.bf16.msra.mxu0 %v1308
  %2817 = vmatprep.subr.bf16.mxu0 %v1305
  %2818 = vmatpush1.bf16.msra.mxu0 %v1304
  %2819 = vmatprep.subr.bf16.mxu0 %v1365
  %2820 = vmatpush2.bf16.msra.mxu0 %v1364
  %2821 = vmatprep.subr.bf16.mxu0 %v1361
  %2822 = vmatpush2.bf16.msra.mxu0 %v1360
  %2823 = vmatprep.subr.bf16.mxu0 %v1357
  %2824 = vmatpush2.bf16.msra.mxu0 %v1356
  %2825 = vmatprep.subr.bf16.mxu0 %v1353
  %2826 = vmatpush2.bf16.msra.mxu0 %v1352
  %2827 = vmatprep.subr.bf16.mxu0 %v1349
  %2828 = vmatpush2.bf16.msra.mxu0 %v1348
  %2829 = vmatprep.subr.bf16.mxu0 %v1345
  %2830 = vmatpush2.bf16.msra.mxu0 %v1344
  %2831 = vmatprep.subr.bf16.mxu0 %v1341
  %2832 = vmatpush2.bf16.msra.mxu0 %v1340
  %2833 = vmatprep.subr.bf16.mxu0 %v1337
  %2834 = vmatpush2.bf16.msra.mxu0 %v1336
  %2835 = vmatprep.mubr.bf16.mxu0 %v302
  %2836 = vmatmul.mubr.bf16.gmra.mxu0 %v301
  %v2837 = vpop.f32.mrf.mxu0
  %v2838 = vadd.f32 %v2615, %v2837
  %v2839 = vpop.f32.mrf.mxu0
  %v2840 = vadd.f32 %v2617, %v2839
  %v2841 = vpop.f32.mrf.mxu0
  %v2842 = vadd.f32 %v2619, %v2841
  %v2843 = vpop.f32.mrf.mxu0
  %v2844 = vadd.f32 %v2621, %v2843
  %2845 = vmatprep.mubr.bf16.mxu0 %v309
  %2846 = vmatmul.mubr.bf16.gmra.mxu0 %v308
  %v2847 = vpop.f32.mrf.mxu0
  %v2848 = vadd.f32 %v2625, %v2847
  %v2849 = vpop.f32.mrf.mxu0
  %v2850 = vadd.f32 %v2627, %v2849
  %v2851 = vpop.f32.mrf.mxu0
  %v2852 = vadd.f32 %v2629, %v2851
  %v2853 = vpop.f32.mrf.mxu0
  %v2854 = vadd.f32 %v2631, %v2853
  %2855 = vmatprep.mubr.bf16.mxu0 %v316
  %2856 = vmatmul.mubr.bf16.gmra.mxu0 %v315
  %v2857 = vpop.f32.mrf.mxu0
  %v2858 = vadd.f32 %v2635, %v2857
  %v2859 = vpop.f32.mrf.mxu0
  %v2860 = vadd.f32 %v2637, %v2859
  %v2861 = vpop.f32.mrf.mxu0
  %v2862 = vadd.f32 %v2639, %v2861
  %v2863 = vpop.f32.mrf.mxu0
  %v2864 = vadd.f32 %v2641, %v2863
  %2865 = vmatprep.mubr.bf16.mxu0 %v323
  %2866 = vmatmul.mubr.bf16.gmra.mxu0 %v322
  %v2867 = vpop.f32.mrf.mxu0
  %v2868 = vadd.f32 %v2645, %v2867
  %v2869 = vpop.f32.mrf.mxu0
  %v2870 = vadd.f32 %v2647, %v2869
  %v2871 = vpop.f32.mrf.mxu0
  %v2872 = vadd.f32 %v2649, %v2871
  %v2873 = vpop.f32.mrf.mxu0
  %v2874 = vadd.f32 %v2651, %v2873
  %2875 = vmatprep.mubr.bf16.mxu0 %v330
  %2876 = vmatmul.mubr.bf16.gmra.mxu0 %v329
  %v2877 = vpop.f32.mrf.mxu0
  %v2878 = vadd.f32 %v2655, %v2877
  %v2879 = vpop.f32.mrf.mxu0
  %v2880 = vadd.f32 %v2657, %v2879
  %v2881 = vpop.f32.mrf.mxu0
  %v2882 = vadd.f32 %v2659, %v2881
  %v2883 = vpop.f32.mrf.mxu0
  %v2884 = vadd.f32 %v2661, %v2883
  %2885 = vmatprep.mubr.bf16.mxu0 %v337
  %2886 = vmatmul.mubr.bf16.gmra.mxu0 %v336
  %v2887 = vpop.f32.mrf.mxu0
  %v2888 = vadd.f32 %v2665, %v2887
  %v2889 = vpop.f32.mrf.mxu0
  %v2890 = vadd.f32 %v2667, %v2889
  %v2891 = vpop.f32.mrf.mxu0
  %v2892 = vadd.f32 %v2669, %v2891
  %v2893 = vpop.f32.mrf.mxu0
  %v2894 = vadd.f32 %v2671, %v2893
  %2895 = vmatprep.mubr.bf16.mxu0 %v344
  %2896 = vmatmul.mubr.bf16.gmra.mxu0 %v343
  %v2897 = vpop.f32.mrf.mxu0
  %v2898 = vadd.f32 %v2675, %v2897
  %v2899 = vpop.f32.mrf.mxu0
  %v2900 = vadd.f32 %v2677, %v2899
  %v2901 = vpop.f32.mrf.mxu0
  %v2902 = vadd.f32 %v2679, %v2901
  %v2903 = vpop.f32.mrf.mxu0
  %v2904 = vadd.f32 %v2681, %v2903
  %2905 = vmatprep.mubr.bf16.mxu0 %v351
  %2906 = vmatmul.mubr.bf16.gmra.mxu0 %v350
  %v2907 = vpop.f32.mrf.mxu0
  %v2908 = vadd.f32 %v2685, %v2907
  %v2909 = vpop.f32.mrf.mxu0
  %v2910 = vadd.f32 %v2687, %v2909
  %v2911 = vpop.f32.mrf.mxu0
  %v2912 = vadd.f32 %v2689, %v2911
  %v2913 = vpop.f32.mrf.mxu0
  %v2914 = vadd.f32 %v2691, %v2913
  %2915 = vmatprep.mubr.bf16.mxu0 %v358
  %2916 = vmatmul.mubr.bf16.gmra.mxu0 %v357
  %v2917 = vpop.f32.mrf.mxu0
  %v2918 = vadd.f32 %v2695, %v2917
  %v2919 = vpop.f32.mrf.mxu0
  %v2920 = vadd.f32 %v2697, %v2919
  %v2921 = vpop.f32.mrf.mxu0
  %v2922 = vadd.f32 %v2699, %v2921
  %v2923 = vpop.f32.mrf.mxu0
  %v2924 = vadd.f32 %v2701, %v2923
  %2925 = vmatprep.mubr.bf16.mxu0 %v365
  %2926 = vmatmul.mubr.bf16.gmra.mxu0 %v364
  %v2927 = vpop.f32.mrf.mxu0
  %v2928 = vadd.f32 %v2705, %v2927
  %v2929 = vpop.f32.mrf.mxu0
  %v2930 = vadd.f32 %v2707, %v2929
  %v2931 = vpop.f32.mrf.mxu0
  %v2932 = vadd.f32 %v2709, %v2931
  %v2933 = vpop.f32.mrf.mxu0
  %v2934 = vadd.f32 %v2711, %v2933
  %2935 = vmatprep.mubr.bf16.mxu0 %v372
  %2936 = vmatmul.mubr.bf16.gmra.mxu0 %v371
  %v2937 = vpop.f32.mrf.mxu0
  %v2938 = vadd.f32 %v2715, %v2937
  %v2939 = vpop.f32.mrf.mxu0
  %v2940 = vadd.f32 %v2717, %v2939
  %v2941 = vpop.f32.mrf.mxu0
  %v2942 = vadd.f32 %v2719, %v2941
  %v2943 = vpop.f32.mrf.mxu0
  %v2944 = vadd.f32 %v2721, %v2943
  %2945 = vmatprep.mubr.bf16.mxu0 %v379
  %2946 = vmatmul.mubr.bf16.gmra.mxu0 %v378
  %v2947 = vpop.f32.mrf.mxu0
  %v2948 = vadd.f32 %v2725, %v2947
  %v2949 = vpop.f32.mrf.mxu0
  %v2950 = vadd.f32 %v2727, %v2949
  %v2951 = vpop.f32.mrf.mxu0
  %v2952 = vadd.f32 %v2729, %v2951
  %v2953 = vpop.f32.mrf.mxu0
  %v2954 = vadd.f32 %v2731, %v2953
  %2955 = vmatprep.mubr.bf16.mxu0 %v386
  %2956 = vmatmul.mubr.bf16.gmra.mxu0 %v385
  %v2957 = vpop.f32.mrf.mxu0
  %v2958 = vadd.f32 %v2735, %v2957
  %v2959 = vpop.f32.mrf.mxu0
  %v2960 = vadd.f32 %v2737, %v2959
  %v2961 = vpop.f32.mrf.mxu0
  %v2962 = vadd.f32 %v2739, %v2961
  %v2963 = vpop.f32.mrf.mxu0
  %v2964 = vadd.f32 %v2741, %v2963
  %2965 = vmatprep.mubr.bf16.mxu0 %v393
  %2966 = vmatmul.mubr.bf16.gmra.mxu0 %v392
  %v2967 = vpop.f32.mrf.mxu0
  %v2968 = vadd.f32 %v2745, %v2967
  %v2969 = vpop.f32.mrf.mxu0
  %v2970 = vadd.f32 %v2747, %v2969
  %v2971 = vpop.f32.mrf.mxu0
  %v2972 = vadd.f32 %v2749, %v2971
  %v2973 = vpop.f32.mrf.mxu0
  %v2974 = vadd.f32 %v2751, %v2973
  %2975 = vmatprep.mubr.bf16.mxu0 %v400
  %2976 = vmatmul.mubr.bf16.gmra.mxu0 %v399
  %v2977 = vpop.f32.mrf.mxu0
  %v2978 = vadd.f32 %v2755, %v2977
  %v2979 = vpop.f32.mrf.mxu0
  %v2980 = vadd.f32 %v2757, %v2979
  %v2981 = vpop.f32.mrf.mxu0
  %v2982 = vadd.f32 %v2759, %v2981
  %v2983 = vpop.f32.mrf.mxu0
  %v2984 = vadd.f32 %v2761, %v2983
  %2985 = vmatprep.mubr.bf16.mxu0 %v407
  %2986 = vmatmul.mubr.bf16.gmra.mxu0 %v406
  %v2987 = vpop.f32.mrf.mxu0
  %v2988 = vadd.f32 %v2765, %v2987
  %v2989 = vpop.f32.mrf.mxu0
  %v2990 = vadd.f32 %v2767, %v2989
  %v2991 = vpop.f32.mrf.mxu0
  %v2992 = vadd.f32 %v2769, %v2991
  %v2993 = vpop.f32.mrf.mxu0
  %v2994 = vadd.f32 %v2771, %v2993
  %2995 = vmatprep.mubr.bf16.mxu0 %v414
  %2996 = vmatmul.mubr.bf16.gmra.mxu0 %v413
  %v2997 = vpop.f32.mrf.mxu0
  %v2998 = vadd.f32 %v2775, %v2997
  %v2999 = vpop.f32.mrf.mxu0
  %v3000 = vadd.f32 %v2777, %v2999
  %v3001 = vpop.f32.mrf.mxu0
  %v3002 = vadd.f32 %v2779, %v3001
  %v3003 = vpop.f32.mrf.mxu0
  %v3004 = vadd.f32 %v2781, %v3003
  %3005 = vmatprep.mubr.bf16.mxu0 %v421
  %3006 = vmatmul.mubr.bf16.gmra.mxu0 %v420
  %v3007 = vpop.f32.mrf.mxu0
  %v3008 = vadd.f32 %v2785, %v3007
  %v3009 = vpop.f32.mrf.mxu0
  %v3010 = vadd.f32 %v2787, %v3009
  %v3011 = vpop.f32.mrf.mxu0
  %v3012 = vadd.f32 %v2789, %v3011
  %v3013 = vpop.f32.mrf.mxu0
  %v3014 = vadd.f32 %v2791, %v3013
  %3015 = vmatprep.mubr.bf16.mxu0 %v428
  %3016 = vmatmul.mubr.bf16.gmra.mxu0 %v427
  %v3017 = vpop.f32.mrf.mxu0
  %v3018 = vadd.f32 %v2795, %v3017
  %v3019 = vpop.f32.mrf.mxu0
  %v3020 = vadd.f32 %v2797, %v3019
  %v3021 = vpop.f32.mrf.mxu0
  %v3022 = vadd.f32 %v2799, %v3021
  %v3023 = vpop.f32.mrf.mxu0
  %v3024 = vadd.f32 %v2801, %v3023
  %3025 = vdwg.mxu0
  %3026 = vmatprep.subr.bf16.mxu0 %v1397
  %3027 = vmatpush1.bf16.msra.mxu0 %v1396
  %3028 = vmatprep.subr.bf16.mxu0 %v1393
  %3029 = vmatpush1.bf16.msra.mxu0 %v1392
  %3030 = vmatprep.subr.bf16.mxu0 %v1389
  %3031 = vmatpush1.bf16.msra.mxu0 %v1388
  %3032 = vmatprep.subr.bf16.mxu0 %v1385
  %3033 = vmatpush1.bf16.msra.mxu0 %v1384
  %3034 = vmatprep.subr.bf16.mxu0 %v1381
  %3035 = vmatpush1.bf16.msra.mxu0 %v1380
  %3036 = vmatprep.subr.bf16.mxu0 %v1377
  %3037 = vmatpush1.bf16.msra.mxu0 %v1376
  %3038 = vmatprep.subr.bf16.mxu0 %v1373
  %3039 = vmatpush1.bf16.msra.mxu0 %v1372
  %3040 = vmatprep.subr.bf16.mxu0 %v1369
  %3041 = vmatpush1.bf16.msra.mxu0 %v1368
  %3042 = vmatprep.subr.bf16.mxu0 %v1429
  %3043 = vmatpush2.bf16.msra.mxu0 %v1428
  %3044 = vmatprep.subr.bf16.mxu0 %v1425
  %3045 = vmatpush2.bf16.msra.mxu0 %v1424
  %3046 = vmatprep.subr.bf16.mxu0 %v1421
  %3047 = vmatpush2.bf16.msra.mxu0 %v1420
  %3048 = vmatprep.subr.bf16.mxu0 %v1417
  %3049 = vmatpush2.bf16.msra.mxu0 %v1416
  %3050 = vmatprep.subr.bf16.mxu0 %v1413
  %3051 = vmatpush2.bf16.msra.mxu0 %v1412
  %3052 = vmatprep.subr.bf16.mxu0 %v1409
  %3053 = vmatpush2.bf16.msra.mxu0 %v1408
  %3054 = vmatprep.subr.bf16.mxu0 %v1405
  %3055 = vmatpush2.bf16.msra.mxu0 %v1404
  %3056 = vmatprep.subr.bf16.mxu0 %v1401
  %3057 = vmatpush2.bf16.msra.mxu0 %v1400
  %3058 = vmatprep.mubr.bf16.mxu0 %v304
  %3059 = vmatmul.mubr.bf16.gmra.mxu0 %v303
  %v3060 = vpop.f32.mrf.mxu0
  %v3061 = vadd.f32 %v2838, %v3060
  %v3062 = vpop.f32.mrf.mxu0
  %v3063 = vadd.f32 %v2840, %v3062
  %v3064 = vpop.f32.mrf.mxu0
  %v3065 = vadd.f32 %v2842, %v3064
  %v3066 = vpop.f32.mrf.mxu0
  %v3067 = vadd.f32 %v2844, %v3066
  %3068 = vmatprep.mubr.bf16.mxu0 %v311
  %3069 = vmatmul.mubr.bf16.gmra.mxu0 %v310
  %v3070 = vpop.f32.mrf.mxu0
  %v3071 = vadd.f32 %v2848, %v3070
  %v3072 = vpop.f32.mrf.mxu0
  %v3073 = vadd.f32 %v2850, %v3072
  %v3074 = vpop.f32.mrf.mxu0
  %v3075 = vadd.f32 %v2852, %v3074
  %v3076 = vpop.f32.mrf.mxu0
  %v3077 = vadd.f32 %v2854, %v3076
  %3078 = vmatprep.mubr.bf16.mxu0 %v318
  %3079 = vmatmul.mubr.bf16.gmra.mxu0 %v317
  %v3080 = vpop.f32.mrf.mxu0
  %v3081 = vadd.f32 %v2858, %v3080
  %v3082 = vpop.f32.mrf.mxu0
  %v3083 = vadd.f32 %v2860, %v3082
  %v3084 = vpop.f32.mrf.mxu0
  %v3085 = vadd.f32 %v2862, %v3084
  %v3086 = vpop.f32.mrf.mxu0
  %v3087 = vadd.f32 %v2864, %v3086
  %3088 = vmatprep.mubr.bf16.mxu0 %v325
  %3089 = vmatmul.mubr.bf16.gmra.mxu0 %v324
  %v3090 = vpop.f32.mrf.mxu0
  %v3091 = vadd.f32 %v2868, %v3090
  %v3092 = vpop.f32.mrf.mxu0
  %v3093 = vadd.f32 %v2870, %v3092
  %v3094 = vpop.f32.mrf.mxu0
  %v3095 = vadd.f32 %v2872, %v3094
  %v3096 = vpop.f32.mrf.mxu0
  %v3097 = vadd.f32 %v2874, %v3096
  %3098 = vmatprep.mubr.bf16.mxu0 %v332
  %3099 = vmatmul.mubr.bf16.gmra.mxu0 %v331
  %v3100 = vpop.f32.mrf.mxu0
  %v3101 = vadd.f32 %v2878, %v3100
  %v3102 = vpop.f32.mrf.mxu0
  %v3103 = vadd.f32 %v2880, %v3102
  %v3104 = vpop.f32.mrf.mxu0
  %v3105 = vadd.f32 %v2882, %v3104
  %v3106 = vpop.f32.mrf.mxu0
  %v3107 = vadd.f32 %v2884, %v3106
  %3108 = vmatprep.mubr.bf16.mxu0 %v339
  %3109 = vmatmul.mubr.bf16.gmra.mxu0 %v338
  %v3110 = vpop.f32.mrf.mxu0
  %v3111 = vadd.f32 %v2888, %v3110
  %v3112 = vpop.f32.mrf.mxu0
  %v3113 = vadd.f32 %v2890, %v3112
  %v3114 = vpop.f32.mrf.mxu0
  %v3115 = vadd.f32 %v2892, %v3114
  %v3116 = vpop.f32.mrf.mxu0
  %v3117 = vadd.f32 %v2894, %v3116
  %3118 = vmatprep.mubr.bf16.mxu0 %v346
  %3119 = vmatmul.mubr.bf16.gmra.mxu0 %v345
  %v3120 = vpop.f32.mrf.mxu0
  %v3121 = vadd.f32 %v2898, %v3120
  %v3122 = vpop.f32.mrf.mxu0
  %v3123 = vadd.f32 %v2900, %v3122
  %v3124 = vpop.f32.mrf.mxu0
  %v3125 = vadd.f32 %v2902, %v3124
  %v3126 = vpop.f32.mrf.mxu0
  %v3127 = vadd.f32 %v2904, %v3126
  %3128 = vmatprep.mubr.bf16.mxu0 %v353
  %3129 = vmatmul.mubr.bf16.gmra.mxu0 %v352
  %v3130 = vpop.f32.mrf.mxu0
  %v3131 = vadd.f32 %v2908, %v3130
  %v3132 = vpop.f32.mrf.mxu0
  %v3133 = vadd.f32 %v2910, %v3132
  %v3134 = vpop.f32.mrf.mxu0
  %v3135 = vadd.f32 %v2912, %v3134
  %v3136 = vpop.f32.mrf.mxu0
  %v3137 = vadd.f32 %v2914, %v3136
  %3138 = vmatprep.mubr.bf16.mxu0 %v360
  %3139 = vmatmul.mubr.bf16.gmra.mxu0 %v359
  %v3140 = vpop.f32.mrf.mxu0
  %v3141 = vadd.f32 %v2918, %v3140
  %v3142 = vpop.f32.mrf.mxu0
  %v3143 = vadd.f32 %v2920, %v3142
  %v3144 = vpop.f32.mrf.mxu0
  %v3145 = vadd.f32 %v2922, %v3144
  %v3146 = vpop.f32.mrf.mxu0
  %v3147 = vadd.f32 %v2924, %v3146
  %3148 = vmatprep.mubr.bf16.mxu0 %v367
  %3149 = vmatmul.mubr.bf16.gmra.mxu0 %v366
  %v3150 = vpop.f32.mrf.mxu0
  %v3151 = vadd.f32 %v2928, %v3150
  %v3152 = vpop.f32.mrf.mxu0
  %v3153 = vadd.f32 %v2930, %v3152
  %v3154 = vpop.f32.mrf.mxu0
  %v3155 = vadd.f32 %v2932, %v3154
  %v3156 = vpop.f32.mrf.mxu0
  %v3157 = vadd.f32 %v2934, %v3156
  %3158 = vmatprep.mubr.bf16.mxu0 %v374
  %3159 = vmatmul.mubr.bf16.gmra.mxu0 %v373
  %v3160 = vpop.f32.mrf.mxu0
  %v3161 = vadd.f32 %v2938, %v3160
  %v3162 = vpop.f32.mrf.mxu0
  %v3163 = vadd.f32 %v2940, %v3162
  %v3164 = vpop.f32.mrf.mxu0
  %v3165 = vadd.f32 %v2942, %v3164
  %v3166 = vpop.f32.mrf.mxu0
  %v3167 = vadd.f32 %v2944, %v3166
  %3168 = vmatprep.mubr.bf16.mxu0 %v381
  %3169 = vmatmul.mubr.bf16.gmra.mxu0 %v380
  %v3170 = vpop.f32.mrf.mxu0
  %v3171 = vadd.f32 %v2948, %v3170
  %v3172 = vpop.f32.mrf.mxu0
  %v3173 = vadd.f32 %v2950, %v3172
  %v3174 = vpop.f32.mrf.mxu0
  %v3175 = vadd.f32 %v2952, %v3174
  %v3176 = vpop.f32.mrf.mxu0
  %v3177 = vadd.f32 %v2954, %v3176
  %3178 = vmatprep.mubr.bf16.mxu0 %v388
  %3179 = vmatmul.mubr.bf16.gmra.mxu0 %v387
  %v3180 = vpop.f32.mrf.mxu0
  %v3181 = vadd.f32 %v2958, %v3180
  %v3182 = vpop.f32.mrf.mxu0
  %v3183 = vadd.f32 %v2960, %v3182
  %v3184 = vpop.f32.mrf.mxu0
  %v3185 = vadd.f32 %v2962, %v3184
  %v3186 = vpop.f32.mrf.mxu0
  %v3187 = vadd.f32 %v2964, %v3186
  %3188 = vmatprep.mubr.bf16.mxu0 %v395
  %3189 = vmatmul.mubr.bf16.gmra.mxu0 %v394
  %v3190 = vpop.f32.mrf.mxu0
  %v3191 = vadd.f32 %v2968, %v3190
  %v3192 = vpop.f32.mrf.mxu0
  %v3193 = vadd.f32 %v2970, %v3192
  %v3194 = vpop.f32.mrf.mxu0
  %v3195 = vadd.f32 %v2972, %v3194
  %v3196 = vpop.f32.mrf.mxu0
  %v3197 = vadd.f32 %v2974, %v3196
  %3198 = vmatprep.mubr.bf16.mxu0 %v402
  %3199 = vmatmul.mubr.bf16.gmra.mxu0 %v401
  %v3200 = vpop.f32.mrf.mxu0
  %v3201 = vadd.f32 %v2978, %v3200
  %v3202 = vpop.f32.mrf.mxu0
  %v3203 = vadd.f32 %v2980, %v3202
  %v3204 = vpop.f32.mrf.mxu0
  %v3205 = vadd.f32 %v2982, %v3204
  %v3206 = vpop.f32.mrf.mxu0
  %v3207 = vadd.f32 %v2984, %v3206
  %3208 = vmatprep.mubr.bf16.mxu0 %v409
  %3209 = vmatmul.mubr.bf16.gmra.mxu0 %v408
  %v3210 = vpop.f32.mrf.mxu0
  %v3211 = vadd.f32 %v2988, %v3210
  %v3212 = vpop.f32.mrf.mxu0
  %v3213 = vadd.f32 %v2990, %v3212
  %v3214 = vpop.f32.mrf.mxu0
  %v3215 = vadd.f32 %v2992, %v3214
  %v3216 = vpop.f32.mrf.mxu0
  %v3217 = vadd.f32 %v2994, %v3216
  %3218 = vmatprep.mubr.bf16.mxu0 %v416
  %3219 = vmatmul.mubr.bf16.gmra.mxu0 %v415
  %v3220 = vpop.f32.mrf.mxu0
  %v3221 = vadd.f32 %v2998, %v3220
  %v3222 = vpop.f32.mrf.mxu0
  %v3223 = vadd.f32 %v3000, %v3222
  %v3224 = vpop.f32.mrf.mxu0
  %v3225 = vadd.f32 %v3002, %v3224
  %v3226 = vpop.f32.mrf.mxu0
  %v3227 = vadd.f32 %v3004, %v3226
  %3228 = vmatprep.mubr.bf16.mxu0 %v423
  %3229 = vmatmul.mubr.bf16.gmra.mxu0 %v422
  %v3230 = vpop.f32.mrf.mxu0
  %v3231 = vadd.f32 %v3008, %v3230
  %v3232 = vpop.f32.mrf.mxu0
  %v3233 = vadd.f32 %v3010, %v3232
  %v3234 = vpop.f32.mrf.mxu0
  %v3235 = vadd.f32 %v3012, %v3234
  %v3236 = vpop.f32.mrf.mxu0
  %v3237 = vadd.f32 %v3014, %v3236
  %3238 = vmatprep.mubr.bf16.mxu0 %v430
  %3239 = vmatmul.mubr.bf16.gmra.mxu0 %v429
  %v3240 = vpop.f32.mrf.mxu0
  %v3241 = vadd.f32 %v3018, %v3240
  %v3242 = vpop.f32.mrf.mxu0
  %v3243 = vadd.f32 %v3020, %v3242
  %v3244 = vpop.f32.mrf.mxu0
  %v3245 = vadd.f32 %v3022, %v3244
  %v3246 = vpop.f32.mrf.mxu0
  %v3247 = vadd.f32 %v3024, %v3246
  %3248 = vdwg.mxu0
  %3249 = vmatprep.subr.bf16.mxu0 0
  %3250 = vmatpush1.bf16.msra.mxu0 0
  %3251 = vmatprep.subr.bf16.mxu0 0
  %3252 = vmatpush1.bf16.msra.mxu0 0
  %3253 = vmatprep.subr.bf16.mxu0 0
  %3254 = vmatpush1.bf16.msra.mxu0 0
  %3255 = vmatprep.subr.bf16.mxu0 0
  %3256 = vmatpush1.bf16.msra.mxu0 0
  %3257 = vmatprep.subr.bf16.mxu0 0
  %3258 = vmatpush1.bf16.msra.mxu0 0
  %3259 = vmatprep.subr.bf16.mxu0 0
  %3260 = vmatpush1.bf16.msra.mxu0 0
  %3261 = vmatprep.subr.bf16.mxu0 0
  %3262 = vmatpush1.bf16.msra.mxu0 0
  %3263 = vmatprep.subr.bf16.mxu0 %v1433
  %3264 = vmatpush1.bf16.msra.mxu0 %v1432
  %3265 = vmatprep.subr.bf16.mxu0 0
  %3266 = vmatpush2.bf16.msra.mxu0 0
  %3267 = vmatprep.subr.bf16.mxu0 0
  %3268 = vmatpush2.bf16.msra.mxu0 0
  %3269 = vmatprep.subr.bf16.mxu0 0
  %3270 = vmatpush2.bf16.msra.mxu0 0
  %3271 = vmatprep.subr.bf16.mxu0 0
  %3272 = vmatpush2.bf16.msra.mxu0 0
  %3273 = vmatprep.subr.bf16.mxu0 0
  %3274 = vmatpush2.bf16.msra.mxu0 0
  %3275 = vmatprep.subr.bf16.mxu0 0
  %3276 = vmatpush2.bf16.msra.mxu0 0
  %3277 = vmatprep.subr.bf16.mxu0 0
  %3278 = vmatpush2.bf16.msra.mxu0 0
  %3279 = vmatprep.subr.bf16.mxu0 0
  %3280 = vmatpush2.bf16.msra.mxu0 0
  %3281 = vmatprep.mubr.bf16.mxu0 0
  %3282 = vmatmul.mubr.bf16.gmra.mxu0 %v1632
  %v3283 = vpop.f32.mrf.mxu0
  %v3284 = vadd.f32 %v3061, %v3283
  %v3285 = vpop.f32.mrf.mxu0
  %v3286 = vadd.f32 %v3063, %v3285
  %v3287 = vpop.f32.mrf.mxu0
  %v3288 = vadd.f32 %v3065, %v3287
  %v3289 = vpop.f32.mrf.mxu0
  %v3290 = vadd.f32 %v3067, %v3289
  %3291 = vmatprep.mubr.bf16.mxu0 0
  %3292 = vmatmul.mubr.bf16.gmra.mxu0 %v1635
  %v3293 = vpop.f32.mrf.mxu0
  %v3294 = vadd.f32 %v3071, %v3293
  %v3295 = vpop.f32.mrf.mxu0
  %v3296 = vadd.f32 %v3073, %v3295
  %v3297 = vpop.f32.mrf.mxu0
  %v3298 = vadd.f32 %v3075, %v3297
  %v3299 = vpop.f32.mrf.mxu0
  %v3300 = vadd.f32 %v3077, %v3299
  %3301 = vmatprep.mubr.bf16.mxu0 0
  %3302 = vmatmul.mubr.bf16.gmra.mxu0 %v1638
  %v3303 = vpop.f32.mrf.mxu0
  %v3304 = vadd.f32 %v3081, %v3303
  %v3305 = vpop.f32.mrf.mxu0
  %v3306 = vadd.f32 %v3083, %v3305
  %v3307 = vpop.f32.mrf.mxu0
  %v3308 = vadd.f32 %v3085, %v3307
  %v3309 = vpop.f32.mrf.mxu0
  %v3310 = vadd.f32 %v3087, %v3309
  %3311 = vmatprep.mubr.bf16.mxu0 0
  %3312 = vmatmul.mubr.bf16.gmra.mxu0 %v1641
  %v3313 = vpop.f32.mrf.mxu0
  %v3314 = vadd.f32 %v3091, %v3313
  %v3315 = vpop.f32.mrf.mxu0
  %v3316 = vadd.f32 %v3093, %v3315
  %v3317 = vpop.f32.mrf.mxu0
  %v3318 = vadd.f32 %v3095, %v3317
  %v3319 = vpop.f32.mrf.mxu0
  %v3320 = vadd.f32 %v3097, %v3319
  %3321 = vmatprep.mubr.bf16.mxu0 0
  %3322 = vmatmul.mubr.bf16.gmra.mxu0 %v1644
  %v3323 = vpop.f32.mrf.mxu0
  %v3324 = vadd.f32 %v3101, %v3323
  %v3325 = vpop.f32.mrf.mxu0
  %v3326 = vadd.f32 %v3103, %v3325
  %v3327 = vpop.f32.mrf.mxu0
  %v3328 = vadd.f32 %v3105, %v3327
  %v3329 = vpop.f32.mrf.mxu0
  %v3330 = vadd.f32 %v3107, %v3329
  %3331 = vmatprep.mubr.bf16.mxu0 0
  %3332 = vmatmul.mubr.bf16.gmra.mxu0 %v1647
  %v3333 = vpop.f32.mrf.mxu0
  %v3334 = vadd.f32 %v3111, %v3333
  %v3335 = vpop.f32.mrf.mxu0
  %v3336 = vadd.f32 %v3113, %v3335
  %v3337 = vpop.f32.mrf.mxu0
  %v3338 = vadd.f32 %v3115, %v3337
  %v3339 = vpop.f32.mrf.mxu0
  %v3340 = vadd.f32 %v3117, %v3339
  %3341 = vmatprep.mubr.bf16.mxu0 0
  %3342 = vmatmul.mubr.bf16.gmra.mxu0 %v1650
  %v3343 = vpop.f32.mrf.mxu0
  %v3344 = vadd.f32 %v3121, %v3343
  %v3345 = vpop.f32.mrf.mxu0
  %v3346 = vadd.f32 %v3123, %v3345
  %v3347 = vpop.f32.mrf.mxu0
  %v3348 = vadd.f32 %v3125, %v3347
  %v3349 = vpop.f32.mrf.mxu0
  %v3350 = vadd.f32 %v3127, %v3349
  %3351 = vmatprep.mubr.bf16.mxu0 0
  %3352 = vmatmul.mubr.bf16.gmra.mxu0 %v1653
  %v3353 = vpop.f32.mrf.mxu0
  %v3354 = vadd.f32 %v3131, %v3353
  %v3355 = vpop.f32.mrf.mxu0
  %v3356 = vadd.f32 %v3133, %v3355
  %v3357 = vpop.f32.mrf.mxu0
  %v3358 = vadd.f32 %v3135, %v3357
  %v3359 = vpop.f32.mrf.mxu0
  %v3360 = vadd.f32 %v3137, %v3359
  %3361 = vmatprep.mubr.bf16.mxu0 0
  %3362 = vmatmul.mubr.bf16.gmra.mxu0 %v1656
  %v3363 = vpop.f32.mrf.mxu0
  %v3364 = vadd.f32 %v3141, %v3363
  %v3365 = vpop.f32.mrf.mxu0
  %v3366 = vadd.f32 %v3143, %v3365
  %v3367 = vpop.f32.mrf.mxu0
  %v3368 = vadd.f32 %v3145, %v3367
  %v3369 = vpop.f32.mrf.mxu0
  %v3370 = vadd.f32 %v3147, %v3369
  %3371 = vmatprep.mubr.bf16.mxu0 0
  %3372 = vmatmul.mubr.bf16.gmra.mxu0 %v1659
  %v3373 = vpop.f32.mrf.mxu0
  %v3374 = vadd.f32 %v3151, %v3373
  %v3375 = vpop.f32.mrf.mxu0
  %v3376 = vadd.f32 %v3153, %v3375
  %v3377 = vpop.f32.mrf.mxu0
  %v3378 = vadd.f32 %v3155, %v3377
  %v3379 = vpop.f32.mrf.mxu0
  %v3380 = vadd.f32 %v3157, %v3379
  %3381 = vmatprep.mubr.bf16.mxu0 0
  %3382 = vmatmul.mubr.bf16.gmra.mxu0 %v1662
  %v3383 = vpop.f32.mrf.mxu0
  %v3384 = vadd.f32 %v3161, %v3383
  %v3385 = vpop.f32.mrf.mxu0
  %v3386 = vadd.f32 %v3163, %v3385
  %v3387 = vpop.f32.mrf.mxu0
  %v3388 = vadd.f32 %v3165, %v3387
  %v3389 = vpop.f32.mrf.mxu0
  %v3390 = vadd.f32 %v3167, %v3389
  %3391 = vmatprep.mubr.bf16.mxu0 0
  %3392 = vmatmul.mubr.bf16.gmra.mxu0 %v1665
  %v3393 = vpop.f32.mrf.mxu0
  %v3394 = vadd.f32 %v3171, %v3393
  %v3395 = vpop.f32.mrf.mxu0
  %v3396 = vadd.f32 %v3173, %v3395
  %v3397 = vpop.f32.mrf.mxu0
  %v3398 = vadd.f32 %v3175, %v3397
  %v3399 = vpop.f32.mrf.mxu0
  %v3400 = vadd.f32 %v3177, %v3399
  %3401 = vmatprep.mubr.bf16.mxu0 0
  %3402 = vmatmul.mubr.bf16.gmra.mxu0 %v1668
  %v3403 = vpop.f32.mrf.mxu0
  %v3404 = vadd.f32 %v3181, %v3403
  %v3405 = vpop.f32.mrf.mxu0
  %v3406 = vadd.f32 %v3183, %v3405
  %v3407 = vpop.f32.mrf.mxu0
  %v3408 = vadd.f32 %v3185, %v3407
  %v3409 = vpop.f32.mrf.mxu0
  %v3410 = vadd.f32 %v3187, %v3409
  %3411 = vmatprep.mubr.bf16.mxu0 0
  %3412 = vmatmul.mubr.bf16.gmra.mxu0 %v1671
  %v3413 = vpop.f32.mrf.mxu0
  %v3414 = vadd.f32 %v3191, %v3413
  %v3415 = vpop.f32.mrf.mxu0
  %v3416 = vadd.f32 %v3193, %v3415
  %v3417 = vpop.f32.mrf.mxu0
  %v3418 = vadd.f32 %v3195, %v3417
  %v3419 = vpop.f32.mrf.mxu0
  %v3420 = vadd.f32 %v3197, %v3419
  %3421 = vmatprep.mubr.bf16.mxu0 0
  %3422 = vmatmul.mubr.bf16.gmra.mxu0 %v1674
  %v3423 = vpop.f32.mrf.mxu0
  %v3424 = vadd.f32 %v3201, %v3423
  %v3425 = vpop.f32.mrf.mxu0
  %v3426 = vadd.f32 %v3203, %v3425
  %v3427 = vpop.f32.mrf.mxu0
  %v3428 = vadd.f32 %v3205, %v3427
  %v3429 = vpop.f32.mrf.mxu0
  %v3430 = vadd.f32 %v3207, %v3429
  %3431 = vmatprep.mubr.bf16.mxu0 0
  %3432 = vmatmul.mubr.bf16.gmra.mxu0 %v1677
  %v3433 = vpop.f32.mrf.mxu0
  %v3434 = vadd.f32 %v3211, %v3433
  %v3435 = vpop.f32.mrf.mxu0
  %v3436 = vadd.f32 %v3213, %v3435
  %v3437 = vpop.f32.mrf.mxu0
  %v3438 = vadd.f32 %v3215, %v3437
  %v3439 = vpop.f32.mrf.mxu0
  %v3440 = vadd.f32 %v3217, %v3439
  %3441 = vmatprep.mubr.bf16.mxu0 0
  %3442 = vmatmul.mubr.bf16.gmra.mxu0 %v1680
  %v3443 = vpop.f32.mrf.mxu0
  %v3444 = vadd.f32 %v3221, %v3443
  %v3445 = vpop.f32.mrf.mxu0
  %v3446 = vadd.f32 %v3223, %v3445
  %v3447 = vpop.f32.mrf.mxu0
  %v3448 = vadd.f32 %v3225, %v3447
  %v3449 = vpop.f32.mrf.mxu0
  %v3450 = vadd.f32 %v3227, %v3449
  %3451 = vmatprep.mubr.bf16.mxu0 0
  %3452 = vmatmul.mubr.bf16.gmra.mxu0 %v1683
  %v3453 = vpop.f32.mrf.mxu0
  %v3454 = vadd.f32 %v3231, %v3453
  %v3455 = vpop.f32.mrf.mxu0
  %v3456 = vadd.f32 %v3233, %v3455
  %v3457 = vpop.f32.mrf.mxu0
  %v3458 = vadd.f32 %v3235, %v3457
  %v3459 = vpop.f32.mrf.mxu0
  %v3460 = vadd.f32 %v3237, %v3459
  %3461 = vmatprep.mubr.bf16.mxu0 0
  %3462 = vmatmul.mubr.bf16.gmra.mxu0 %v1686
  %v3463 = vpop.f32.mrf.mxu0
  %v3464 = vadd.f32 %v3241, %v3463
  %v3465 = vpop.f32.mrf.mxu0
  %v3466 = vadd.f32 %v3243, %v3465
  %v3467 = vpop.f32.mrf.mxu0
  %v3468 = vadd.f32 %v3245, %v3467
  %v3469 = vpop.f32.mrf.mxu0
  %v3470 = vadd.f32 %v3247, %v3469
  %3471 = vdwg.mxu0
  %v3472 = vmax.f32 %v2392, 0.0
  %v3473 = vmax.f32 %v2394, 0.0
  %v3474 = vmax.f32 %v3284, 0.0
  %v3475 = vmax.f32 %v3286, 0.0
  %v3476 = vmax.f32 %v2396, 0.0
  %v3477 = vmax.f32 %v2398, 0.0
  %v3478 = vmax.f32 %v3288, 0.0
  %v3479 = vmax.f32 %v3290, 0.0
  %v3480 = vmax.f32 %v2402, 0.0
  %v3481 = vmax.f32 %v2404, 0.0
  %v3482 = vmax.f32 %v3294, 0.0
  %v3483 = vmax.f32 %v3296, 0.0
  %v3484 = vmax.f32 %v2406, 0.0
  %v3485 = vmax.f32 %v2408, 0.0
  %v3486 = vmax.f32 %v3298, 0.0
  %v3487 = vmax.f32 %v3300, 0.0
  %v3488 = vmax.f32 %v2412, 0.0
  %v3489 = vmax.f32 %v2414, 0.0
  %v3490 = vmax.f32 %v3304, 0.0
  %v3491 = vmax.f32 %v3306, 0.0
  %v3492 = vmax.f32 %v2416, 0.0
  %v3493 = vmax.f32 %v2418, 0.0
  %v3494 = vmax.f32 %v3308, 0.0
  %v3495 = vmax.f32 %v3310, 0.0
  %v3496 = vmax.f32 %v2422, 0.0
  %v3497 = vmax.f32 %v2424, 0.0
  %v3498 = vmax.f32 %v3314, 0.0
  %v3499 = vmax.f32 %v3316, 0.0
  %v3500 = vmax.f32 %v2426, 0.0
  %v3501 = vmax.f32 %v2428, 0.0
  %v3502 = vmax.f32 %v3318, 0.0
  %v3503 = vmax.f32 %v3320, 0.0
  %v3504 = vmax.f32 %v2432, 0.0
  %v3505 = vmax.f32 %v2434, 0.0
  %v3506 = vmax.f32 %v3324, 0.0
  %v3507 = vmax.f32 %v3326, 0.0
  %v3508 = vmax.f32 %v2436, 0.0
  %v3509 = vmax.f32 %v2438, 0.0
  %v3510 = vmax.f32 %v3328, 0.0
  %v3511 = vmax.f32 %v3330, 0.0
  %v3512 = vmax.f32 %v2442, 0.0
  %v3513 = vmax.f32 %v2444, 0.0
  %v3514 = vmax.f32 %v3334, 0.0
  %v3515 = vmax.f32 %v3336, 0.0
  %v3516 = vmax.f32 %v2446, 0.0
  %v3517 = vmax.f32 %v2448, 0.0
  %v3518 = vmax.f32 %v3338, 0.0
  %v3519 = vmax.f32 %v3340, 0.0
  %v3520 = vmax.f32 %v2452, 0.0
  %v3521 = vmax.f32 %v2454, 0.0
  %v3522 = vmax.f32 %v3344, 0.0
  %v3523 = vmax.f32 %v3346, 0.0
  %v3524 = vmax.f32 %v2456, 0.0
  %v3525 = vmax.f32 %v2458, 0.0
  %v3526 = vmax.f32 %v3348, 0.0
  %v3527 = vmax.f32 %v3350, 0.0
  %v3528 = vmax.f32 %v2462, 0.0
  %v3529 = vmax.f32 %v2464, 0.0
  %v3530 = vmax.f32 %v3354, 0.0
  %v3531 = vmax.f32 %v3356, 0.0
  %v3532 = vmax.f32 %v2466, 0.0
  %v3533 = vmax.f32 %v2468, 0.0
  %v3534 = vmax.f32 %v3358, 0.0
  %v3535 = vmax.f32 %v3360, 0.0
  %v3536 = vmax.f32 %v2472, 0.0
  %v3537 = vmax.f32 %v2474, 0.0
  %v3538 = vmax.f32 %v3364, 0.0
  %v3539 = vmax.f32 %v3366, 0.0
  %v3540 = vmax.f32 %v2476, 0.0
  %v3541 = vmax.f32 %v2478, 0.0
  %v3542 = vmax.f32 %v3368, 0.0
  %v3543 = vmax.f32 %v3370, 0.0
  %v3544 = vmax.f32 %v2482, 0.0
  %v3545 = vmax.f32 %v2484, 0.0
  %v3546 = vmax.f32 %v3374, 0.0
  %v3547 = vmax.f32 %v3376, 0.0
  %v3548 = vmax.f32 %v2486, 0.0
  %v3549 = vmax.f32 %v2488, 0.0
  %v3550 = vmax.f32 %v3378, 0.0
  %v3551 = vmax.f32 %v3380, 0.0
  %v3552 = vmax.f32 %v2492, 0.0
  %v3553 = vmax.f32 %v2494, 0.0
  %v3554 = vmax.f32 %v3384, 0.0
  %v3555 = vmax.f32 %v3386, 0.0
  %v3556 = vmax.f32 %v2496, 0.0
  %v3557 = vmax.f32 %v2498, 0.0
  %v3558 = vmax.f32 %v3388, 0.0
  %v3559 = vmax.f32 %v3390, 0.0
  %v3560 = vmax.f32 %v2502, 0.0
  %v3561 = vmax.f32 %v2504, 0.0
  %v3562 = vmax.f32 %v3394, 0.0
  %v3563 = vmax.f32 %v3396, 0.0
  %v3564 = vmax.f32 %v2506, 0.0
  %v3565 = vmax.f32 %v2508, 0.0
  %v3566 = vmax.f32 %v3398, 0.0
  %v3567 = vmax.f32 %v3400, 0.0
  %v3568 = vmax.f32 %v2512, 0.0
  %v3569 = vmax.f32 %v2514, 0.0
  %v3570 = vmax.f32 %v3404, 0.0
  %v3571 = vmax.f32 %v3406, 0.0
  %v3572 = vmax.f32 %v2516, 0.0
  %v3573 = vmax.f32 %v2518, 0.0
  %v3574 = vmax.f32 %v3408, 0.0
  %v3575 = vmax.f32 %v3410, 0.0
  %v3576 = vmax.f32 %v2522, 0.0
  %v3577 = vmax.f32 %v2524, 0.0
  %v3578 = vmax.f32 %v3414, 0.0
  %v3579 = vmax.f32 %v3416, 0.0
  %v3580 = vmax.f32 %v2526, 0.0
  %v3581 = vmax.f32 %v2528, 0.0
  %v3582 = vmax.f32 %v3418, 0.0
  %v3583 = vmax.f32 %v3420, 0.0
  %v3584 = vmax.f32 %v2532, 0.0
  %v3585 = vmax.f32 %v2534, 0.0
  %v3586 = vmax.f32 %v3424, 0.0
  %v3587 = vmax.f32 %v3426, 0.0
  %v3588 = vmax.f32 %v2536, 0.0
  %v3589 = vmax.f32 %v2538, 0.0
  %v3590 = vmax.f32 %v3428, 0.0
  %v3591 = vmax.f32 %v3430, 0.0
  %v3592 = vmax.f32 %v2542, 0.0
  %v3593 = vmax.f32 %v2544, 0.0
  %v3594 = vmax.f32 %v3434, 0.0
  %v3595 = vmax.f32 %v3436, 0.0
  %v3596 = vmax.f32 %v2546, 0.0
  %v3597 = vmax.f32 %v2548, 0.0
  %v3598 = vmax.f32 %v3438, 0.0
  %v3599 = vmax.f32 %v3440, 0.0
  %v3600 = vmax.f32 %v2552, 0.0
  %v3601 = vmax.f32 %v2554, 0.0
  %v3602 = vmax.f32 %v3444, 0.0
  %v3603 = vmax.f32 %v3446, 0.0
  %v3604 = vmax.f32 %v2556, 0.0
  %v3605 = vmax.f32 %v2558, 0.0
  %v3606 = vmax.f32 %v3448, 0.0
  %v3607 = vmax.f32 %v3450, 0.0
  %v3608 = vmax.f32 %v2562, 0.0
  %v3609 = vmax.f32 %v2564, 0.0
  %v3610 = vmax.f32 %v3454, 0.0
  %v3611 = vmax.f32 %v3456, 0.0
  %v3612 = vmax.f32 %v2566, 0.0
  %v3613 = vmax.f32 %v2568, 0.0
  %v3614 = vmax.f32 %v3458, 0.0
  %v3615 = vmax.f32 %v3460, 0.0
  %v3616 = vmax.f32 %v2572, 0.0
  %v3617 = vmax.f32 %v2574, 0.0
  %v3618 = vmax.f32 %v3464, 0.0
  %v3619 = vmax.f32 %v3466, 0.0
  %v3620 = vmax.f32 %v2576, 0.0
  %v3621 = vmax.f32 %v2578, 0.0
  %v3622 = vmax.f32 %v3468, 0.0
  %v3623 = vmax.f32 %v3470, 0.0
  %v3624 = vpack.c.bf16 %v3476, %v3472
  %v3625 = vpack.c.bf16 %v3477, %v3473
  %v3626 = vpack.c.bf16 %v3478, %v3474
  %v3627 = vpack.c.bf16 %v3479, %v3475
  %v3628 = vpack.c.bf16 %v3484, %v3480
  %v3629 = vpack.c.bf16 %v3485, %v3481
  %v3630 = vpack.c.bf16 %v3486, %v3482
  %v3631 = vpack.c.bf16 %v3487, %v3483
  %v3632 = vpack.c.bf16 %v3492, %v3488
  %v3633 = vpack.c.bf16 %v3493, %v3489
  %v3634 = vpack.c.bf16 %v3494, %v3490
  %v3635 = vpack.c.bf16 %v3495, %v3491
  %v3636 = vpack.c.bf16 %v3500, %v3496
  %v3637 = vpack.c.bf16 %v3501, %v3497
  %v3638 = vpack.c.bf16 %v3502, %v3498
  %v3639 = vpack.c.bf16 %v3503, %v3499
  %v3640 = vpack.c.bf16 %v3508, %v3504
  %v3641 = vpack.c.bf16 %v3509, %v3505
  %v3642 = vpack.c.bf16 %v3510, %v3506
  %v3643 = vpack.c.bf16 %v3511, %v3507
  %v3644 = vpack.c.bf16 %v3516, %v3512
  %v3645 = vpack.c.bf16 %v3517, %v3513
  %v3646 = vpack.c.bf16 %v3518, %v3514
  %v3647 = vpack.c.bf16 %v3519, %v3515
  %v3648 = vpack.c.bf16 %v3524, %v3520
  %v3649 = vpack.c.bf16 %v3525, %v3521
  %v3650 = vpack.c.bf16 %v3526, %v3522
  %v3651 = vpack.c.bf16 %v3527, %v3523
  %v3652 = vpack.c.bf16 %v3532, %v3528
  %v3653 = vpack.c.bf16 %v3533, %v3529
  %v3654 = vpack.c.bf16 %v3534, %v3530
  %v3655 = vpack.c.bf16 %v3535, %v3531
  %v3656 = vpack.c.bf16 %v3540, %v3536
  %v3657 = vpack.c.bf16 %v3541, %v3537
  %v3658 = vpack.c.bf16 %v3542, %v3538
  %v3659 = vpack.c.bf16 %v3543, %v3539
  %v3660 = vpack.c.bf16 %v3548, %v3544
  %v3661 = vpack.c.bf16 %v3549, %v3545
  %v3662 = vpack.c.bf16 %v3550, %v3546
  %v3663 = vpack.c.bf16 %v3551, %v3547
  %v3664 = vpack.c.bf16 %v3556, %v3552
  %v3665 = vpack.c.bf16 %v3557, %v3553
  %v3666 = vpack.c.bf16 %v3558, %v3554
  %v3667 = vpack.c.bf16 %v3559, %v3555
  %v3668 = vpack.c.bf16 %v3564, %v3560
  %v3669 = vpack.c.bf16 %v3565, %v3561
  %v3670 = vpack.c.bf16 %v3566, %v3562
  %v3671 = vpack.c.bf16 %v3567, %v3563
  %v3672 = vpack.c.bf16 %v3572, %v3568
  %v3673 = vpack.c.bf16 %v3573, %v3569
  %v3674 = vpack.c.bf16 %v3574, %v3570
  %v3675 = vpack.c.bf16 %v3575, %v3571
  %v3676 = vpack.c.bf16 %v3580, %v3576
  %v3677 = vpack.c.bf16 %v3581, %v3577
  %v3678 = vpack.c.bf16 %v3582, %v3578
  %v3679 = vpack.c.bf16 %v3583, %v3579
  %v3680 = vpack.c.bf16 %v3588, %v3584
  %v3681 = vpack.c.bf16 %v3589, %v3585
  %v3682 = vpack.c.bf16 %v3590, %v3586
  %v3683 = vpack.c.bf16 %v3591, %v3587
  %v3684 = vpack.c.bf16 %v3596, %v3592
  %v3685 = vpack.c.bf16 %v3597, %v3593
  %v3686 = vpack.c.bf16 %v3598, %v3594
  %v3687 = vpack.c.bf16 %v3599, %v3595
  %v3688 = vpack.c.bf16 %v3604, %v3600
  %v3689 = vpack.c.bf16 %v3605, %v3601
  %v3690 = vpack.c.bf16 %v3606, %v3602
  %v3691 = vpack.c.bf16 %v3607, %v3603
  %v3692 = vpack.c.bf16 %v3612, %v3608
  %v3693 = vpack.c.bf16 %v3613, %v3609
  %v3694 = vpack.c.bf16 %v3614, %v3610
  %v3695 = vpack.c.bf16 %v3615, %v3611
  %v3696 = vpack.c.bf16 %v3620, %v3616
  %v3697 = vpack.c.bf16 %v3621, %v3617
  %v3698 = vpack.c.bf16 %v3622, %v3618
  %v3699 = vpack.c.bf16 %v3623, %v3619
  %v3700 = vld [vmem:[%s3] sm:$0xff]
  %v3701 = vld [vmem:[%s3 + $0x8] sm:$0xff]
  %v3702 = vld [vmem:[%s3 + $0x10] sm:$0xff]
  %v3703 = vld [vmem:[%s3 + $0x18] sm:$0xff]
  %v3704 = vld [vmem:[%s3 + $0x20] sm:$0xff]
  %v3705 = vld [vmem:[%s3 + $0x28] sm:$0xff]
  %v3706 = vld [vmem:[%s3 + $0x30] sm:$0xff]
  %v3707 = vld [vmem:[%s3 + $0x38] sm:$0xff]
  %v3708 = vld [vmem:[%s3 + $0x40] sm:$0xff]
  %v3709 = vld [vmem:[%s3 + $0x48] sm:$0xff]
  %v3710 = vld [vmem:[%s3 + $0x50] sm:$0xff]
  %v3711 = vld [vmem:[%s3 + $0x58] sm:$0xff]
  %v3712 = vld [vmem:[%s3 + $0x60] sm:$0xff]
  %v3713 = vld [vmem:[%s3 + $0x68] sm:$0xff]
  %v3714 = vld [vmem:[%s3 + $0x70] sm:$0xff]
  %v3715 = vld [vmem:[%s3 + $0x78] sm:$0xff]
  %v3716 = vld [vmem:[%s3 + $0x80] sm:$0xff]
  %v3717 = vld [vmem:[%s3 + $0x88] sm:$0xff]
  %v3718 = vld [vmem:[%s3 + $0x90] sm:$0xff]
  %v3719 = vld [vmem:[%s3 + $0x98] sm:$0xff]
  %v3720 = vld [vmem:[%s3 + $0xa0] sm:$0xff]
  %v3721 = vld [vmem:[%s3 + $0xa8] sm:$0xff]
  %v3722 = vld [vmem:[%s3 + $0xb0] sm:$0xff]
  %v3723 = vld [vmem:[%s3 + $0xb8] sm:$0xff]
  %v3724 = vld [vmem:[%s3 + $0xc0] sm:$0xff]
  %v3725 = vld [vmem:[%s3 + $0xc8] sm:$0xff]
  %v3726 = vld [vmem:[%s3 + $0xd0] sm:$0xff]
  %v3727 = vld [vmem:[%s3 + $0xd8] sm:$0xff]
  %v3728 = vld [vmem:[%s3 + $0xe0] sm:$0xff]
  %v3729 = vld [vmem:[%s3 + $0xe8] sm:$0xff]
  %v3730 = vld [vmem:[%s3 + $0xf0] sm:$0xff]
  %v3731 = vld [vmem:[%s3 + $0xf8] sm:$0xff]
  %v3732 = vld [vmem:[%s3 + $0x100] sm:$0xff]
  %v3733 = vld [vmem:[%s3 + $0x108] sm:$0xff]
  %v3734 = vld [vmem:[%s3 + $0x110] sm:$0xff]
  %v3735 = vld [vmem:[%s3 + $0x118] sm:$0xff]
  %v3736 = vld [vmem:[%s3 + $0x120] sm:$0xff]
  %v3737 = vld [vmem:[%s3 + $0x128] sm:$0xff]
  %v3738 = vld [vmem:[%s3 + $0x130] sm:$0xff]
  %v3739 = vld [vmem:[%s3 + $0x138] sm:$0xff]
  %v3740 = vld [vmem:[%s3 + $0x140] sm:$0xff]
  %v3741 = vld [vmem:[%s3 + $0x148] sm:$0xff]
  %v3742 = vld [vmem:[%s3 + $0x150] sm:$0xff]
  %v3743 = vld [vmem:[%s3 + $0x158] sm:$0xff]
  %v3744 = vld [vmem:[%s3 + $0x160] sm:$0xff]
  %v3745 = vld [vmem:[%s3 + $0x168] sm:$0xff]
  %v3746 = vld [vmem:[%s3 + $0x170] sm:$0xff]
  %v3747 = vld [vmem:[%s3 + $0x178] sm:$0xff]
  %v3748 = vld [vmem:[%s3 + $0x180] sm:$0xff]
  %v3749 = vld [vmem:[%s3 + $0x188] sm:$0xff]
  %v3750 = vld [vmem:[%s3 + $0x190] sm:$0xff]
  %v3751 = vld [vmem:[%s3 + $0x198] sm:$0xff]
  %v3752 = vld [vmem:[%s3 + $0x1a0] sm:$0xff]
  %v3753 = vld [vmem:[%s3 + $0x1a8] sm:$0xff]
  %v3754 = vld [vmem:[%s3 + $0x1b0] sm:$0xff]
  %v3755 = vld [vmem:[%s3 + $0x1b8] sm:$0xff]
  %v3756 = vld [vmem:[%s3 + $0x1c0] sm:$0xff]
  %v3757 = vld [vmem:[%s3 + $0x1c8] sm:$0xff]
  %v3758 = vld [vmem:[%s3 + $0x1d0] sm:$0xff]
  %v3759 = vld [vmem:[%s3 + $0x1d8] sm:$0xff]
  %v3760 = vld [vmem:[%s3 + $0x1e0] sm:$0xff]
  %v3761 = vld [vmem:[%s3 + $0x1e8] sm:$0xff]
  %v3762 = vld [vmem:[%s3 + $0x1f0] sm:$0xff]
  %v3763 = vld [vmem:[%s3 + $0x1f8] sm:$0xff]
  %v3764 = vld [vmem:[%s4] sm:$0x3]
  %v3766 = vlaneseq
  %v3767 = vshrl.u32 %v3766, 7
  %v3768 = vsub.s32 0, %v3767
  %v3769 = vrot.slane %v3764, %v3768
  %v3770 = vlaneseq
  %v3771 = vshrl.u32 %v3770, 7
  %v3772 = vsub.s32 1, %v3771
  %v3773 = vrot.slane %v3764, %v3772
  %v3840 = vunpack.c.l.b16 %v3700
  %v3841 = vunpack.c.h.b16 %v3700
  %v3842 = vunpack.c.l.b16 %v3701
  %v3843 = vunpack.c.h.b16 %v3701
  %v3844 = vunpack.c.l.b16 %v3702
  %v3845 = vunpack.c.h.b16 %v3702
  %v3846 = vunpack.c.l.b16 %v3703
  %v3847 = vunpack.c.h.b16 %v3703
  %v3848 = vunpack.c.l.b16 %v3704
  %v3849 = vunpack.c.h.b16 %v3704
  %v3850 = vunpack.c.l.b16 %v3705
  %v3851 = vunpack.c.h.b16 %v3705
  %v3852 = vunpack.c.l.b16 %v3706
  %v3853 = vunpack.c.h.b16 %v3706
  %v3854 = vunpack.c.l.b16 %v3707
  %v3855 = vunpack.c.h.b16 %v3707
  %v3856 = vunpack.c.l.b16 %v3708
  %v3857 = vunpack.c.h.b16 %v3708
  %v3858 = vunpack.c.l.b16 %v3709
  %v3859 = vunpack.c.h.b16 %v3709
  %v3860 = vunpack.c.l.b16 %v3710
  %v3861 = vunpack.c.h.b16 %v3710
  %v3862 = vunpack.c.l.b16 %v3711
  %v3863 = vunpack.c.h.b16 %v3711
  %v3864 = vunpack.c.l.b16 %v3712
  %v3865 = vunpack.c.h.b16 %v3712
  %v3866 = vunpack.c.l.b16 %v3713
  %v3867 = vunpack.c.h.b16 %v3713
  %v3868 = vunpack.c.l.b16 %v3714
  %v3869 = vunpack.c.h.b16 %v3714
  %v3870 = vunpack.c.l.b16 %v3715
  %v3871 = vunpack.c.h.b16 %v3715
  %v3872 = vunpack.c.l.b16 %v3716
  %v3873 = vunpack.c.h.b16 %v3716
  %v3874 = vunpack.c.l.b16 %v3717
  %v3875 = vunpack.c.h.b16 %v3717
  %v3876 = vunpack.c.l.b16 %v3718
  %v3877 = vunpack.c.h.b16 %v3718
  %v3878 = vunpack.c.l.b16 %v3719
  %v3879 = vunpack.c.h.b16 %v3719
  %v3880 = vunpack.c.l.b16 %v3720
  %v3881 = vunpack.c.h.b16 %v3720
  %v3882 = vunpack.c.l.b16 %v3721
  %v3883 = vunpack.c.h.b16 %v3721
  %v3884 = vunpack.c.l.b16 %v3722
  %v3885 = vunpack.c.h.b16 %v3722
  %v3886 = vunpack.c.l.b16 %v3723
  %v3887 = vunpack.c.h.b16 %v3723
  %v3888 = vunpack.c.l.b16 %v3724
  %v3889 = vunpack.c.h.b16 %v3724
  %v3890 = vunpack.c.l.b16 %v3725
  %v3891 = vunpack.c.h.b16 %v3725
  %v3892 = vunpack.c.l.b16 %v3726
  %v3893 = vunpack.c.h.b16 %v3726
  %v3894 = vunpack.c.l.b16 %v3727
  %v3895 = vunpack.c.h.b16 %v3727
  %v3896 = vunpack.c.l.b16 %v3728
  %v3897 = vunpack.c.h.b16 %v3728
  %v3898 = vunpack.c.l.b16 %v3729
  %v3899 = vunpack.c.h.b16 %v3729
  %v3900 = vunpack.c.l.b16 %v3730
  %v3901 = vunpack.c.h.b16 %v3730
  %v3902 = vunpack.c.l.b16 %v3731
  %v3903 = vunpack.c.h.b16 %v3731
  %v3904 = vunpack.c.l.b16 %v3732
  %v3905 = vunpack.c.h.b16 %v3732
  %v3906 = vunpack.c.l.b16 %v3733
  %v3907 = vunpack.c.h.b16 %v3733
  %v3908 = vunpack.c.l.b16 %v3734
  %v3909 = vunpack.c.h.b16 %v3734
  %v3910 = vunpack.c.l.b16 %v3735
  %v3911 = vunpack.c.h.b16 %v3735
  %v3912 = vunpack.c.l.b16 %v3736
  %v3913 = vunpack.c.h.b16 %v3736
  %v3914 = vunpack.c.l.b16 %v3737
  %v3915 = vunpack.c.h.b16 %v3737
  %v3916 = vunpack.c.l.b16 %v3738
  %v3917 = vunpack.c.h.b16 %v3738
  %v3918 = vunpack.c.l.b16 %v3739
  %v3919 = vunpack.c.h.b16 %v3739
  %v3920 = vunpack.c.l.b16 %v3740
  %v3921 = vunpack.c.h.b16 %v3740
  %v3922 = vunpack.c.l.b16 %v3741
  %v3923 = vunpack.c.h.b16 %v3741
  %v3924 = vunpack.c.l.b16 %v3742
  %v3925 = vunpack.c.h.b16 %v3742
  %v3926 = vunpack.c.l.b16 %v3743
  %v3927 = vunpack.c.h.b16 %v3743
  %v3928 = vunpack.c.l.b16 %v3744
  %v3929 = vunpack.c.h.b16 %v3744
  %v3930 = vunpack.c.l.b16 %v3745
  %v3931 = vunpack.c.h.b16 %v3745
  %v3932 = vunpack.c.l.b16 %v3746
  %v3933 = vunpack.c.h.b16 %v3746
  %v3934 = vunpack.c.l.b16 %v3747
  %v3935 = vunpack.c.h.b16 %v3747
  %v3936 = vunpack.c.l.b16 %v3748
  %v3937 = vunpack.c.h.b16 %v3748
  %v3938 = vunpack.c.l.b16 %v3749
  %v3939 = vunpack.c.h.b16 %v3749
  %v3940 = vunpack.c.l.b16 %v3750
  %v3941 = vunpack.c.h.b16 %v3750
  %v3942 = vunpack.c.l.b16 %v3751
  %v3943 = vunpack.c.h.b16 %v3751
  %v3944 = vunpack.c.l.b16 %v3752
  %v3945 = vunpack.c.h.b16 %v3752
  %v3946 = vunpack.c.l.b16 %v3753
  %v3947 = vunpack.c.h.b16 %v3753
  %v3948 = vunpack.c.l.b16 %v3754
  %v3949 = vunpack.c.h.b16 %v3754
  %v3950 = vunpack.c.l.b16 %v3755
  %v3951 = vunpack.c.h.b16 %v3755
  %v3952 = vunpack.c.l.b16 %v3756
  %v3953 = vunpack.c.h.b16 %v3756
  %v3954 = vunpack.c.l.b16 %v3757
  %v3955 = vunpack.c.h.b16 %v3757
  %v3956 = vunpack.c.l.b16 %v3758
  %v3957 = vunpack.c.h.b16 %v3758
  %v3958 = vunpack.c.l.b16 %v3759
  %v3959 = vunpack.c.h.b16 %v3759
  %v3960 = vunpack.c.l.b16 %v3760
  %v3961 = vunpack.c.h.b16 %v3760
  %v3962 = vunpack.c.l.b16 %v3761
  %v3963 = vunpack.c.h.b16 %v3761
  %v3964 = vunpack.c.l.b16 %v3762
  %v3965 = vunpack.c.h.b16 %v3762
  %v3966 = vunpack.c.l.b16 %v3763
  %v3967 = vunpack.c.h.b16 %v3763
  %v3968 = vpack.c.b16 %v3842, %v3840
  %v3969 = vpack.c.b16 %v3843, %v3841
  %v3970 = vpack.c.b16 %v3846, %v3844
  %v3971 = vpack.c.b16 %v3847, %v3845
  %v3972 = vpack.c.b16 %v3850, %v3848
  %v3973 = vpack.c.b16 %v3851, %v3849
  %v3974 = vpack.c.b16 %v3854, %v3852
  %v3975 = vpack.c.b16 %v3855, %v3853
  %v3976 = vpack.c.b16 %v3858, %v3856
  %v3977 = vpack.c.b16 %v3859, %v3857
  %v3978 = vpack.c.b16 %v3862, %v3860
  %v3979 = vpack.c.b16 %v3863, %v3861
  %v3980 = vpack.c.b16 %v3866, %v3864
  %v3981 = vpack.c.b16 %v3867, %v3865
  %v3982 = vpack.c.b16 %v3870, %v3868
  %v3983 = vpack.c.b16 %v3871, %v3869
  %v3984 = vpack.c.b16 %v3874, %v3872
  %v3985 = vpack.c.b16 %v3875, %v3873
  %v3986 = vpack.c.b16 %v3878, %v3876
  %v3987 = vpack.c.b16 %v3879, %v3877
  %v3988 = vpack.c.b16 %v3882, %v3880
  %v3989 = vpack.c.b16 %v3883, %v3881
  %v3990 = vpack.c.b16 %v3886, %v3884
  %v3991 = vpack.c.b16 %v3887, %v3885
  %v3992 = vpack.c.b16 %v3890, %v3888
  %v3993 = vpack.c.b16 %v3891, %v3889
  %v3994 = vpack.c.b16 %v3894, %v3892
  %v3995 = vpack.c.b16 %v3895, %v3893
  %v3996 = vpack.c.b16 %v3898, %v3896
  %v3997 = vpack.c.b16 %v3899, %v3897
  %v3998 = vpack.c.b16 %v3902, %v3900
  %v3999 = vpack.c.b16 %v3903, %v3901
  %v4000 = vpack.c.b16 %v3906, %v3904
  %v4001 = vpack.c.b16 %v3907, %v3905
  %v4002 = vpack.c.b16 %v3910, %v3908
  %v4003 = vpack.c.b16 %v3911, %v3909
  %v4004 = vpack.c.b16 %v3914, %v3912
  %v4005 = vpack.c.b16 %v3915, %v3913
  %v4006 = vpack.c.b16 %v3918, %v3916
  %v4007 = vpack.c.b16 %v3919, %v3917
  %v4008 = vpack.c.b16 %v3922, %v3920
  %v4009 = vpack.c.b16 %v3923, %v3921
  %v4010 = vpack.c.b16 %v3926, %v3924
  %v4011 = vpack.c.b16 %v3927, %v3925
  %v4012 = vpack.c.b16 %v3930, %v3928
  %v4013 = vpack.c.b16 %v3931, %v3929
  %v4014 = vpack.c.b16 %v3934, %v3932
  %v4015 = vpack.c.b16 %v3935, %v3933
  %v4016 = vpack.c.b16 %v3938, %v3936
  %v4017 = vpack.c.b16 %v3939, %v3937
  %v4018 = vpack.c.b16 %v3942, %v3940
  %v4019 = vpack.c.b16 %v3943, %v3941
  %v4020 = vpack.c.b16 %v3946, %v3944
  %v4021 = vpack.c.b16 %v3947, %v3945
  %v4022 = vpack.c.b16 %v3950, %v3948
  %v4023 = vpack.c.b16 %v3951, %v3949
  %v4024 = vpack.c.b16 %v3954, %v3952
  %v4025 = vpack.c.b16 %v3955, %v3953
  %v4026 = vpack.c.b16 %v3958, %v3956
  %v4027 = vpack.c.b16 %v3959, %v3957
  %v4028 = vpack.c.b16 %v3962, %v3960
  %v4029 = vpack.c.b16 %v3963, %v3961
  %v4030 = vpack.c.b16 %v3966, %v3964
  %v4031 = vpack.c.b16 %v3967, %v3965
  %4096 = vmatprep.subr.bf16.mxu0 %v3983
  %4097 = vmatpush1.bf16.msra.mxu0 %v3982
  %4098 = vmatprep.subr.bf16.mxu0 %v3981
  %4099 = vmatpush1.bf16.msra.mxu0 %v3980
  %4100 = vmatprep.subr.bf16.mxu0 %v3979
  %4101 = vmatpush1.bf16.msra.mxu0 %v3978
  %4102 = vmatprep.subr.bf16.mxu0 %v3977
  %4103 = vmatpush1.bf16.msra.mxu0 %v3976
  %4104 = vmatprep.subr.bf16.mxu0 %v3975
  %4105 = vmatpush1.bf16.msra.mxu0 %v3974
  %4106 = vmatprep.subr.bf16.mxu0 %v3973
  %4107 = vmatpush1.bf16.msra.mxu0 %v3972
  %4108 = vmatprep.subr.bf16.mxu0 %v3971
  %4109 = vmatpush1.bf16.msra.mxu0 %v3970
  %4110 = vmatprep.subr.bf16.mxu0 %v3969
  %4111 = vmatpush1.bf16.msra.mxu0 %v3968
  %4112 = vmatprep.subr.bf16.mxu0 %v3999
  %4113 = vmatpush2.bf16.msra.mxu0 %v3998
  %4114 = vmatprep.subr.bf16.mxu0 %v3997
  %4115 = vmatpush2.bf16.msra.mxu0 %v3996
  %4116 = vmatprep.subr.bf16.mxu0 %v3995
  %4117 = vmatpush2.bf16.msra.mxu0 %v3994
  %4118 = vmatprep.subr.bf16.mxu0 %v3993
  %4119 = vmatpush2.bf16.msra.mxu0 %v3992
  %4120 = vmatprep.subr.bf16.mxu0 %v3991
  %4121 = vmatpush2.bf16.msra.mxu0 %v3990
  %4122 = vmatprep.subr.bf16.mxu0 %v3989
  %4123 = vmatpush2.bf16.msra.mxu0 %v3988
  %4124 = vmatprep.subr.bf16.mxu0 %v3987
  %4125 = vmatpush2.bf16.msra.mxu0 %v3986
  %4126 = vmatprep.subr.bf16.mxu0 %v3985
  %4127 = vmatpush2.bf16.msra.mxu0 %v3984
  %4128 = vmatprep.mubr.bf16.mxu0 %v3625
  %4129 = vmatmul.mubr.bf16.gmra.mxu0 %v3624
  %v4130 = vpop.f32.mrf.mxu0
  %v4131 = vadd.f32 %v3769, %v4130
  %v4132 = vpop.f32.mrf.mxu0
  %v4133 = vadd.f32 %v3773, %v4132
  %v4134 = vpop.f32.mrf.mxu0
  %v4135 = vadd.f32 %v3769, %v4134
  %v4136 = vpop.f32.mrf.mxu0
  %v4137 = vadd.f32 %v3773, %v4136
  %4138 = vmatprep.mubr.bf16.mxu0 %v3629
  %4139 = vmatmul.mubr.bf16.gmra.mxu0 %v3628
  %v4140 = vpop.f32.mrf.mxu0
  %v4141 = vadd.f32 %v3769, %v4140
  %v4142 = vpop.f32.mrf.mxu0
  %v4143 = vadd.f32 %v3773, %v4142
  %v4144 = vpop.f32.mrf.mxu0
  %v4145 = vadd.f32 %v3769, %v4144
  %v4146 = vpop.f32.mrf.mxu0
  %v4147 = vadd.f32 %v3773, %v4146
  %4148 = vmatprep.mubr.bf16.mxu0 %v3633
  %4149 = vmatmul.mubr.bf16.gmra.mxu0 %v3632
  %v4150 = vpop.f32.mrf.mxu0
  %v4151 = vadd.f32 %v3769, %v4150
  %v4152 = vpop.f32.mrf.mxu0
  %v4153 = vadd.f32 %v3773, %v4152
  %v4154 = vpop.f32.mrf.mxu0
  %v4155 = vadd.f32 %v3769, %v4154
  %v4156 = vpop.f32.mrf.mxu0
  %v4157 = vadd.f32 %v3773, %v4156
  %4158 = vmatprep.mubr.bf16.mxu0 %v3637
  %4159 = vmatmul.mubr.bf16.gmra.mxu0 %v3636
  %v4160 = vpop.f32.mrf.mxu0
  %v4161 = vadd.f32 %v3769, %v4160
  %v4162 = vpop.f32.mrf.mxu0
  %v4163 = vadd.f32 %v3773, %v4162
  %v4164 = vpop.f32.mrf.mxu0
  %v4165 = vadd.f32 %v3769, %v4164
  %v4166 = vpop.f32.mrf.mxu0
  %v4167 = vadd.f32 %v3773, %v4166
  %4168 = vmatprep.mubr.bf16.mxu0 %v3641
  %4169 = vmatmul.mubr.bf16.gmra.mxu0 %v3640
  %v4170 = vpop.f32.mrf.mxu0
  %v4171 = vadd.f32 %v3769, %v4170
  %v4172 = vpop.f32.mrf.mxu0
  %v4173 = vadd.f32 %v3773, %v4172
  %v4174 = vpop.f32.mrf.mxu0
  %v4175 = vadd.f32 %v3769, %v4174
  %v4176 = vpop.f32.mrf.mxu0
  %v4177 = vadd.f32 %v3773, %v4176
  %4178 = vmatprep.mubr.bf16.mxu0 %v3645
  %4179 = vmatmul.mubr.bf16.gmra.mxu0 %v3644
  %v4180 = vpop.f32.mrf.mxu0
  %v4181 = vadd.f32 %v3769, %v4180
  %v4182 = vpop.f32.mrf.mxu0
  %v4183 = vadd.f32 %v3773, %v4182
  %v4184 = vpop.f32.mrf.mxu0
  %v4185 = vadd.f32 %v3769, %v4184
  %v4186 = vpop.f32.mrf.mxu0
  %v4187 = vadd.f32 %v3773, %v4186
  %4188 = vmatprep.mubr.bf16.mxu0 %v3649
  %4189 = vmatmul.mubr.bf16.gmra.mxu0 %v3648
  %v4190 = vpop.f32.mrf.mxu0
  %v4191 = vadd.f32 %v3769, %v4190
  %v4192 = vpop.f32.mrf.mxu0
  %v4193 = vadd.f32 %v3773, %v4192
  %v4194 = vpop.f32.mrf.mxu0
  %v4195 = vadd.f32 %v3769, %v4194
  %v4196 = vpop.f32.mrf.mxu0
  %v4197 = vadd.f32 %v3773, %v4196
  %4198 = vmatprep.mubr.bf16.mxu0 %v3653
  %4199 = vmatmul.mubr.bf16.gmra.mxu0 %v3652
  %v4200 = vpop.f32.mrf.mxu0
  %v4201 = vadd.f32 %v3769, %v4200
  %v4202 = vpop.f32.mrf.mxu0
  %v4203 = vadd.f32 %v3773, %v4202
  %v4204 = vpop.f32.mrf.mxu0
  %v4205 = vadd.f32 %v3769, %v4204
  %v4206 = vpop.f32.mrf.mxu0
  %v4207 = vadd.f32 %v3773, %v4206
  %4208 = vmatprep.mubr.bf16.mxu0 %v3657
  %4209 = vmatmul.mubr.bf16.gmra.mxu0 %v3656
  %v4210 = vpop.f32.mrf.mxu0
  %v4211 = vadd.f32 %v3769, %v4210
  %v4212 = vpop.f32.mrf.mxu0
  %v4213 = vadd.f32 %v3773, %v4212
  %v4214 = vpop.f32.mrf.mxu0
  %v4215 = vadd.f32 %v3769, %v4214
  %v4216 = vpop.f32.mrf.mxu0
  %v4217 = vadd.f32 %v3773, %v4216
  %4218 = vmatprep.mubr.bf16.mxu0 %v3661
  %4219 = vmatmul.mubr.bf16.gmra.mxu0 %v3660
  %v4220 = vpop.f32.mrf.mxu0
  %v4221 = vadd.f32 %v3769, %v4220
  %v4222 = vpop.f32.mrf.mxu0
  %v4223 = vadd.f32 %v3773, %v4222
  %v4224 = vpop.f32.mrf.mxu0
  %v4225 = vadd.f32 %v3769, %v4224
  %v4226 = vpop.f32.mrf.mxu0
  %v4227 = vadd.f32 %v3773, %v4226
  %4228 = vmatprep.mubr.bf16.mxu0 %v3665
  %4229 = vmatmul.mubr.bf16.gmra.mxu0 %v3664
  %v4230 = vpop.f32.mrf.mxu0
  %v4231 = vadd.f32 %v3769, %v4230
  %v4232 = vpop.f32.mrf.mxu0
  %v4233 = vadd.f32 %v3773, %v4232
  %v4234 = vpop.f32.mrf.mxu0
  %v4235 = vadd.f32 %v3769, %v4234
  %v4236 = vpop.f32.mrf.mxu0
  %v4237 = vadd.f32 %v3773, %v4236
  %4238 = vmatprep.mubr.bf16.mxu0 %v3669
  %4239 = vmatmul.mubr.bf16.gmra.mxu0 %v3668
  %v4240 = vpop.f32.mrf.mxu0
  %v4241 = vadd.f32 %v3769, %v4240
  %v4242 = vpop.f32.mrf.mxu0
  %v4243 = vadd.f32 %v3773, %v4242
  %v4244 = vpop.f32.mrf.mxu0
  %v4245 = vadd.f32 %v3769, %v4244
  %v4246 = vpop.f32.mrf.mxu0
  %v4247 = vadd.f32 %v3773, %v4246
  %4248 = vmatprep.mubr.bf16.mxu0 %v3673
  %4249 = vmatmul.mubr.bf16.gmra.mxu0 %v3672
  %v4250 = vpop.f32.mrf.mxu0
  %v4251 = vadd.f32 %v3769, %v4250
  %v4252 = vpop.f32.mrf.mxu0
  %v4253 = vadd.f32 %v3773, %v4252
  %v4254 = vpop.f32.mrf.mxu0
  %v4255 = vadd.f32 %v3769, %v4254
  %v4256 = vpop.f32.mrf.mxu0
  %v4257 = vadd.f32 %v3773, %v4256
  %4258 = vmatprep.mubr.bf16.mxu0 %v3677
  %4259 = vmatmul.mubr.bf16.gmra.mxu0 %v3676
  %v4260 = vpop.f32.mrf.mxu0
  %v4261 = vadd.f32 %v3769, %v4260
  %v4262 = vpop.f32.mrf.mxu0
  %v4263 = vadd.f32 %v3773, %v4262
  %v4264 = vpop.f32.mrf.mxu0
  %v4265 = vadd.f32 %v3769, %v4264
  %v4266 = vpop.f32.mrf.mxu0
  %v4267 = vadd.f32 %v3773, %v4266
  %4268 = vmatprep.mubr.bf16.mxu0 %v3681
  %4269 = vmatmul.mubr.bf16.gmra.mxu0 %v3680
  %v4270 = vpop.f32.mrf.mxu0
  %v4271 = vadd.f32 %v3769, %v4270
  %v4272 = vpop.f32.mrf.mxu0
  %v4273 = vadd.f32 %v3773, %v4272
  %v4274 = vpop.f32.mrf.mxu0
  %v4275 = vadd.f32 %v3769, %v4274
  %v4276 = vpop.f32.mrf.mxu0
  %v4277 = vadd.f32 %v3773, %v4276
  %4278 = vmatprep.mubr.bf16.mxu0 %v3685
  %4279 = vmatmul.mubr.bf16.gmra.mxu0 %v3684
  %v4280 = vpop.f32.mrf.mxu0
  %v4281 = vadd.f32 %v3769, %v4280
  %v4282 = vpop.f32.mrf.mxu0
  %v4283 = vadd.f32 %v3773, %v4282
  %v4284 = vpop.f32.mrf.mxu0
  %v4285 = vadd.f32 %v3769, %v4284
  %v4286 = vpop.f32.mrf.mxu0
  %v4287 = vadd.f32 %v3773, %v4286
  %4288 = vmatprep.mubr.bf16.mxu0 %v3689
  %4289 = vmatmul.mubr.bf16.gmra.mxu0 %v3688
  %v4290 = vpop.f32.mrf.mxu0
  %v4291 = vadd.f32 %v3769, %v4290
  %v4292 = vpop.f32.mrf.mxu0
  %v4293 = vadd.f32 %v3773, %v4292
  %v4294 = vpop.f32.mrf.mxu0
  %v4295 = vadd.f32 %v3769, %v4294
  %v4296 = vpop.f32.mrf.mxu0
  %v4297 = vadd.f32 %v3773, %v4296
  %4298 = vmatprep.mubr.bf16.mxu0 %v3693
  %4299 = vmatmul.mubr.bf16.gmra.mxu0 %v3692
  %v4300 = vpop.f32.mrf.mxu0
  %v4301 = vadd.f32 %v3769, %v4300
  %v4302 = vpop.f32.mrf.mxu0
  %v4303 = vadd.f32 %v3773, %v4302
  %v4304 = vpop.f32.mrf.mxu0
  %v4305 = vadd.f32 %v3769, %v4304
  %v4306 = vpop.f32.mrf.mxu0
  %v4307 = vadd.f32 %v3773, %v4306
  %4308 = vmatprep.mubr.bf16.mxu0 %v3697
  %4309 = vmatmul.mubr.bf16.gmra.mxu0 %v3696
  %v4310 = vpop.f32.mrf.mxu0
  %v4311 = vadd.f32 %v3769, %v4310
  %v4312 = vpop.f32.mrf.mxu0
  %v4313 = vadd.f32 %v3773, %v4312
  %v4314 = vpop.f32.mrf.mxu0
  %v4315 = vadd.f32 %v3769, %v4314
  %v4316 = vpop.f32.mrf.mxu0
  %v4317 = vadd.f32 %v3773, %v4316
  %4318 = vdwg.mxu0
  %4319 = vmatprep.subr.bf16.mxu0 %v4015
  %4320 = vmatpush1.bf16.msra.mxu0 %v4014
  %4321 = vmatprep.subr.bf16.mxu0 %v4013
  %4322 = vmatpush1.bf16.msra.mxu0 %v4012
  %4323 = vmatprep.subr.bf16.mxu0 %v4011
  %4324 = vmatpush1.bf16.msra.mxu0 %v4010
  %4325 = vmatprep.subr.bf16.mxu0 %v4009
  %4326 = vmatpush1.bf16.msra.mxu0 %v4008
  %4327 = vmatprep.subr.bf16.mxu0 %v4007
  %4328 = vmatpush1.bf16.msra.mxu0 %v4006
  %4329 = vmatprep.subr.bf16.mxu0 %v4005
  %4330 = vmatpush1.bf16.msra.mxu0 %v4004
  %4331 = vmatprep.subr.bf16.mxu0 %v4003
  %4332 = vmatpush1.bf16.msra.mxu0 %v4002
  %4333 = vmatprep.subr.bf16.mxu0 %v4001
  %4334 = vmatpush1.bf16.msra.mxu0 %v4000
  %4335 = vmatprep.subr.bf16.mxu0 %v4031
  %4336 = vmatpush2.bf16.msra.mxu0 %v4030
  %4337 = vmatprep.subr.bf16.mxu0 %v4029
  %4338 = vmatpush2.bf16.msra.mxu0 %v4028
  %4339 = vmatprep.subr.bf16.mxu0 %v4027
  %4340 = vmatpush2.bf16.msra.mxu0 %v4026
  %4341 = vmatprep.subr.bf16.mxu0 %v4025
  %4342 = vmatpush2.bf16.msra.mxu0 %v4024
  %4343 = vmatprep.subr.bf16.mxu0 %v4023
  %4344 = vmatpush2.bf16.msra.mxu0 %v4022
  %4345 = vmatprep.subr.bf16.mxu0 %v4021
  %4346 = vmatpush2.bf16.msra.mxu0 %v4020
  %4347 = vmatprep.subr.bf16.mxu0 %v4019
  %4348 = vmatpush2.bf16.msra.mxu0 %v4018
  %4349 = vmatprep.subr.bf16.mxu0 %v4017
  %4350 = vmatpush2.bf16.msra.mxu0 %v4016
  %4351 = vmatprep.mubr.bf16.mxu0 %v3627
  %4352 = vmatmul.mubr.bf16.gmra.mxu0 %v3626
  %v4353 = vpop.f32.mrf.mxu0
  %v4354 = vadd.f32 %v4131, %v4353
  %v4355 = vpop.f32.mrf.mxu0
  %v4356 = vadd.f32 %v4133, %v4355
  %v4357 = vpop.f32.mrf.mxu0
  %v4358 = vadd.f32 %v4135, %v4357
  %v4359 = vpop.f32.mrf.mxu0
  %v4360 = vadd.f32 %v4137, %v4359
  %4361 = vmatprep.mubr.bf16.mxu0 %v3631
  %4362 = vmatmul.mubr.bf16.gmra.mxu0 %v3630
  %v4363 = vpop.f32.mrf.mxu0
  %v4364 = vadd.f32 %v4141, %v4363
  %v4365 = vpop.f32.mrf.mxu0
  %v4366 = vadd.f32 %v4143, %v4365
  %v4367 = vpop.f32.mrf.mxu0
  %v4368 = vadd.f32 %v4145, %v4367
  %v4369 = vpop.f32.mrf.mxu0
  %v4370 = vadd.f32 %v4147, %v4369
  %4371 = vmatprep.mubr.bf16.mxu0 %v3635
  %4372 = vmatmul.mubr.bf16.gmra.mxu0 %v3634
  %v4373 = vpop.f32.mrf.mxu0
  %v4374 = vadd.f32 %v4151, %v4373
  %v4375 = vpop.f32.mrf.mxu0
  %v4376 = vadd.f32 %v4153, %v4375
  %v4377 = vpop.f32.mrf.mxu0
  %v4378 = vadd.f32 %v4155, %v4377
  %v4379 = vpop.f32.mrf.mxu0
  %v4380 = vadd.f32 %v4157, %v4379
  %4381 = vmatprep.mubr.bf16.mxu0 %v3639
  %4382 = vmatmul.mubr.bf16.gmra.mxu0 %v3638
  %v4383 = vpop.f32.mrf.mxu0
  %v4384 = vadd.f32 %v4161, %v4383
  %v4385 = vpop.f32.mrf.mxu0
  %v4386 = vadd.f32 %v4163, %v4385
  %v4387 = vpop.f32.mrf.mxu0
  %v4388 = vadd.f32 %v4165, %v4387
  %v4389 = vpop.f32.mrf.mxu0
  %v4390 = vadd.f32 %v4167, %v4389
  %4391 = vmatprep.mubr.bf16.mxu0 %v3643
  %4392 = vmatmul.mubr.bf16.gmra.mxu0 %v3642
  %v4393 = vpop.f32.mrf.mxu0
  %v4394 = vadd.f32 %v4171, %v4393
  %v4395 = vpop.f32.mrf.mxu0
  %v4396 = vadd.f32 %v4173, %v4395
  %v4397 = vpop.f32.mrf.mxu0
  %v4398 = vadd.f32 %v4175, %v4397
  %v4399 = vpop.f32.mrf.mxu0
  %v4400 = vadd.f32 %v4177, %v4399
  %4401 = vmatprep.mubr.bf16.mxu0 %v3647
  %4402 = vmatmul.mubr.bf16.gmra.mxu0 %v3646
  %v4403 = vpop.f32.mrf.mxu0
  %v4404 = vadd.f32 %v4181, %v4403
  %v4405 = vpop.f32.mrf.mxu0
  %v4406 = vadd.f32 %v4183, %v4405
  %v4407 = vpop.f32.mrf.mxu0
  %v4408 = vadd.f32 %v4185, %v4407
  %v4409 = vpop.f32.mrf.mxu0
  %v4410 = vadd.f32 %v4187, %v4409
  %4411 = vmatprep.mubr.bf16.mxu0 %v3651
  %4412 = vmatmul.mubr.bf16.gmra.mxu0 %v3650
  %v4413 = vpop.f32.mrf.mxu0
  %v4414 = vadd.f32 %v4191, %v4413
  %v4415 = vpop.f32.mrf.mxu0
  %v4416 = vadd.f32 %v4193, %v4415
  %v4417 = vpop.f32.mrf.mxu0
  %v4418 = vadd.f32 %v4195, %v4417
  %v4419 = vpop.f32.mrf.mxu0
  %v4420 = vadd.f32 %v4197, %v4419
  %4421 = vmatprep.mubr.bf16.mxu0 %v3655
  %4422 = vmatmul.mubr.bf16.gmra.mxu0 %v3654
  %v4423 = vpop.f32.mrf.mxu0
  %v4424 = vadd.f32 %v4201, %v4423
  %v4425 = vpop.f32.mrf.mxu0
  %v4426 = vadd.f32 %v4203, %v4425
  %v4427 = vpop.f32.mrf.mxu0
  %v4428 = vadd.f32 %v4205, %v4427
  %v4429 = vpop.f32.mrf.mxu0
  %v4430 = vadd.f32 %v4207, %v4429
  %4431 = vmatprep.mubr.bf16.mxu0 %v3659
  %4432 = vmatmul.mubr.bf16.gmra.mxu0 %v3658
  %v4433 = vpop.f32.mrf.mxu0
  %v4434 = vadd.f32 %v4211, %v4433
  %v4435 = vpop.f32.mrf.mxu0
  %v4436 = vadd.f32 %v4213, %v4435
  %v4437 = vpop.f32.mrf.mxu0
  %v4438 = vadd.f32 %v4215, %v4437
  %v4439 = vpop.f32.mrf.mxu0
  %v4440 = vadd.f32 %v4217, %v4439
  %4441 = vmatprep.mubr.bf16.mxu0 %v3663
  %4442 = vmatmul.mubr.bf16.gmra.mxu0 %v3662
  %v4443 = vpop.f32.mrf.mxu0
  %v4444 = vadd.f32 %v4221, %v4443
  %v4445 = vpop.f32.mrf.mxu0
  %v4446 = vadd.f32 %v4223, %v4445
  %v4447 = vpop.f32.mrf.mxu0
  %v4448 = vadd.f32 %v4225, %v4447
  %v4449 = vpop.f32.mrf.mxu0
  %v4450 = vadd.f32 %v4227, %v4449
  %4451 = vmatprep.mubr.bf16.mxu0 %v3667
  %4452 = vmatmul.mubr.bf16.gmra.mxu0 %v3666
  %v4453 = vpop.f32.mrf.mxu0
  %v4454 = vadd.f32 %v4231, %v4453
  %v4455 = vpop.f32.mrf.mxu0
  %v4456 = vadd.f32 %v4233, %v4455
  %v4457 = vpop.f32.mrf.mxu0
  %v4458 = vadd.f32 %v4235, %v4457
  %v4459 = vpop.f32.mrf.mxu0
  %v4460 = vadd.f32 %v4237, %v4459
  %4461 = vmatprep.mubr.bf16.mxu0 %v3671
  %4462 = vmatmul.mubr.bf16.gmra.mxu0 %v3670
  %v4463 = vpop.f32.mrf.mxu0
  %v4464 = vadd.f32 %v4241, %v4463
  %v4465 = vpop.f32.mrf.mxu0
  %v4466 = vadd.f32 %v4243, %v4465
  %v4467 = vpop.f32.mrf.mxu0
  %v4468 = vadd.f32 %v4245, %v4467
  %v4469 = vpop.f32.mrf.mxu0
  %v4470 = vadd.f32 %v4247, %v4469
  %4471 = vmatprep.mubr.bf16.mxu0 %v3675
  %4472 = vmatmul.mubr.bf16.gmra.mxu0 %v3674
  %v4473 = vpop.f32.mrf.mxu0
  %v4474 = vadd.f32 %v4251, %v4473
  %v4475 = vpop.f32.mrf.mxu0
  %v4476 = vadd.f32 %v4253, %v4475
  %v4477 = vpop.f32.mrf.mxu0
  %v4478 = vadd.f32 %v4255, %v4477
  %v4479 = vpop.f32.mrf.mxu0
  %v4480 = vadd.f32 %v4257, %v4479
  %4481 = vmatprep.mubr.bf16.mxu0 %v3679
  %4482 = vmatmul.mubr.bf16.gmra.mxu0 %v3678
  %v4483 = vpop.f32.mrf.mxu0
  %v4484 = vadd.f32 %v4261, %v4483
  %v4485 = vpop.f32.mrf.mxu0
  %v4486 = vadd.f32 %v4263, %v4485
  %v4487 = vpop.f32.mrf.mxu0
  %v4488 = vadd.f32 %v4265, %v4487
  %v4489 = vpop.f32.mrf.mxu0
  %v4490 = vadd.f32 %v4267, %v4489
  %4491 = vmatprep.mubr.bf16.mxu0 %v3683
  %4492 = vmatmul.mubr.bf16.gmra.mxu0 %v3682
  %v4493 = vpop.f32.mrf.mxu0
  %v4494 = vadd.f32 %v4271, %v4493
  %v4495 = vpop.f32.mrf.mxu0
  %v4496 = vadd.f32 %v4273, %v4495
  %v4497 = vpop.f32.mrf.mxu0
  %v4498 = vadd.f32 %v4275, %v4497
  %v4499 = vpop.f32.mrf.mxu0
  %v4500 = vadd.f32 %v4277, %v4499
  %4501 = vmatprep.mubr.bf16.mxu0 %v3687
  %4502 = vmatmul.mubr.bf16.gmra.mxu0 %v3686
  %v4503 = vpop.f32.mrf.mxu0
  %v4504 = vadd.f32 %v4281, %v4503
  %v4505 = vpop.f32.mrf.mxu0
  %v4506 = vadd.f32 %v4283, %v4505
  %v4507 = vpop.f32.mrf.mxu0
  %v4508 = vadd.f32 %v4285, %v4507
  %v4509 = vpop.f32.mrf.mxu0
  %v4510 = vadd.f32 %v4287, %v4509
  %4511 = vmatprep.mubr.bf16.mxu0 %v3691
  %4512 = vmatmul.mubr.bf16.gmra.mxu0 %v3690
  %v4513 = vpop.f32.mrf.mxu0
  %v4514 = vadd.f32 %v4291, %v4513
  %v4515 = vpop.f32.mrf.mxu0
  %v4516 = vadd.f32 %v4293, %v4515
  %v4517 = vpop.f32.mrf.mxu0
  %v4518 = vadd.f32 %v4295, %v4517
  %v4519 = vpop.f32.mrf.mxu0
  %v4520 = vadd.f32 %v4297, %v4519
  %4521 = vmatprep.mubr.bf16.mxu0 %v3695
  %4522 = vmatmul.mubr.bf16.gmra.mxu0 %v3694
  %v4523 = vpop.f32.mrf.mxu0
  %v4524 = vadd.f32 %v4301, %v4523
  %v4525 = vpop.f32.mrf.mxu0
  %v4526 = vadd.f32 %v4303, %v4525
  %v4527 = vpop.f32.mrf.mxu0
  %v4528 = vadd.f32 %v4305, %v4527
  %v4529 = vpop.f32.mrf.mxu0
  %v4530 = vadd.f32 %v4307, %v4529
  %4531 = vmatprep.mubr.bf16.mxu0 %v3699
  %4532 = vmatmul.mubr.bf16.gmra.mxu0 %v3698
  %v4533 = vpop.f32.mrf.mxu0
  %v4534 = vadd.f32 %v4311, %v4533
  %v4535 = vpop.f32.mrf.mxu0
  %v4536 = vadd.f32 %v4313, %v4535
  %v4537 = vpop.f32.mrf.mxu0
  %v4538 = vadd.f32 %v4315, %v4537
  %v4539 = vpop.f32.mrf.mxu0
  %v4540 = vadd.f32 %v4317, %v4539
  %4541 = vdwg.mxu0
  %v4542 = vmax.f32 %v4354, 0.0
  %v4543 = vmax.f32 %v4356, 0.0
  %v4544 = vmax.f32 %v4358, 0.0
  %v4545 = vmax.f32 %v4360, 0.0
  %v4546 = vmax.f32 %v4364, 0.0
  %v4547 = vmax.f32 %v4366, 0.0
  %v4548 = vmax.f32 %v4368, 0.0
  %v4549 = vmax.f32 %v4370, 0.0
  %v4550 = vmax.f32 %v4374, 0.0
  %v4551 = vmax.f32 %v4376, 0.0
  %v4552 = vmax.f32 %v4378, 0.0
  %v4553 = vmax.f32 %v4380, 0.0
  %v4554 = vmax.f32 %v4384, 0.0
  %v4555 = vmax.f32 %v4386, 0.0
  %v4556 = vmax.f32 %v4388, 0.0
  %v4557 = vmax.f32 %v4390, 0.0
  %v4558 = vmax.f32 %v4394, 0.0
  %v4559 = vmax.f32 %v4396, 0.0
  %v4560 = vmax.f32 %v4398, 0.0
  %v4561 = vmax.f32 %v4400, 0.0
  %v4562 = vmax.f32 %v4404, 0.0
  %v4563 = vmax.f32 %v4406, 0.0
  %v4564 = vmax.f32 %v4408, 0.0
  %v4565 = vmax.f32 %v4410, 0.0
  %v4566 = vmax.f32 %v4414, 0.0
  %v4567 = vmax.f32 %v4416, 0.0
  %v4568 = vmax.f32 %v4418, 0.0
  %v4569 = vmax.f32 %v4420, 0.0
  %v4570 = vmax.f32 %v4424, 0.0
  %v4571 = vmax.f32 %v4426, 0.0
  %v4572 = vmax.f32 %v4428, 0.0
  %v4573 = vmax.f32 %v4430, 0.0
  %v4574 = vmax.f32 %v4434, 0.0
  %v4575 = vmax.f32 %v4436, 0.0
  %v4576 = vmax.f32 %v4438, 0.0
  %v4577 = vmax.f32 %v4440, 0.0
  %v4578 = vmax.f32 %v4444, 0.0
  %v4579 = vmax.f32 %v4446, 0.0
  %v4580 = vmax.f32 %v4448, 0.0
  %v4581 = vmax.f32 %v4450, 0.0
  %v4582 = vmax.f32 %v4454, 0.0
  %v4583 = vmax.f32 %v4456, 0.0
  %v4584 = vmax.f32 %v4458, 0.0
  %v4585 = vmax.f32 %v4460, 0.0
  %v4586 = vmax.f32 %v4464, 0.0
  %v4587 = vmax.f32 %v4466, 0.0
  %v4588 = vmax.f32 %v4468, 0.0
  %v4589 = vmax.f32 %v4470, 0.0
  %v4590 = vmax.f32 %v4474, 0.0
  %v4591 = vmax.f32 %v4476, 0.0
  %v4592 = vmax.f32 %v4478, 0.0
  %v4593 = vmax.f32 %v4480, 0.0
  %v4594 = vmax.f32 %v4484, 0.0
  %v4595 = vmax.f32 %v4486, 0.0
  %v4596 = vmax.f32 %v4488, 0.0
  %v4597 = vmax.f32 %v4490, 0.0
  %v4598 = vmax.f32 %v4494, 0.0
  %v4599 = vmax.f32 %v4496, 0.0
  %v4600 = vmax.f32 %v4498, 0.0
  %v4601 = vmax.f32 %v4500, 0.0
  %v4602 = vmax.f32 %v4504, 0.0
  %v4603 = vmax.f32 %v4506, 0.0
  %v4604 = vmax.f32 %v4508, 0.0
  %v4605 = vmax.f32 %v4510, 0.0
  %v4606 = vmax.f32 %v4514, 0.0
  %v4607 = vmax.f32 %v4516, 0.0
  %v4608 = vmax.f32 %v4518, 0.0
  %v4609 = vmax.f32 %v4520, 0.0
  %v4610 = vmax.f32 %v4524, 0.0
  %v4611 = vmax.f32 %v4526, 0.0
  %v4612 = vmax.f32 %v4528, 0.0
  %v4613 = vmax.f32 %v4530, 0.0
  %v4614 = vmax.f32 %v4534, 0.0
  %v4615 = vmax.f32 %v4536, 0.0
  %v4616 = vmax.f32 %v4538, 0.0
  %v4617 = vmax.f32 %v4540, 0.0
  %v4618 = vpack.c.bf16 %v4544, %v4542
  %v4619 = vpack.c.bf16 %v4545, %v4543
  %v4620 = vpack.c.bf16 %v4548, %v4546
  %v4621 = vpack.c.bf16 %v4549, %v4547
  %v4622 = vpack.c.bf16 %v4552, %v4550
  %v4623 = vpack.c.bf16 %v4553, %v4551
  %v4624 = vpack.c.bf16 %v4556, %v4554
  %v4625 = vpack.c.bf16 %v4557, %v4555
  %v4626 = vpack.c.bf16 %v4560, %v4558
  %v4627 = vpack.c.bf16 %v4561, %v4559
  %v4628 = vpack.c.bf16 %v4564, %v4562
  %v4629 = vpack.c.bf16 %v4565, %v4563
  %v4630 = vpack.c.bf16 %v4568, %v4566
  %v4631 = vpack.c.bf16 %v4569, %v4567
  %v4632 = vpack.c.bf16 %v4572, %v4570
  %v4633 = vpack.c.bf16 %v4573, %v4571
  %v4634 = vpack.c.bf16 %v4576, %v4574
  %v4635 = vpack.c.bf16 %v4577, %v4575
  %v4636 = vpack.c.bf16 %v4580, %v4578
  %v4637 = vpack.c.bf16 %v4581, %v4579
  %v4638 = vpack.c.bf16 %v4584, %v4582
  %v4639 = vpack.c.bf16 %v4585, %v4583
  %v4640 = vpack.c.bf16 %v4588, %v4586
  %v4641 = vpack.c.bf16 %v4589, %v4587
  %v4642 = vpack.c.bf16 %v4592, %v4590
  %v4643 = vpack.c.bf16 %v4593, %v4591
  %v4644 = vpack.c.bf16 %v4596, %v4594
  %v4645 = vpack.c.bf16 %v4597, %v4595
  %v4646 = vpack.c.bf16 %v4600, %v4598
  %v4647 = vpack.c.bf16 %v4601, %v4599
  %v4648 = vpack.c.bf16 %v4604, %v4602
  %v4649 = vpack.c.bf16 %v4605, %v4603
  %v4650 = vpack.c.bf16 %v4608, %v4606
  %v4651 = vpack.c.bf16 %v4609, %v4607
  %v4652 = vpack.c.bf16 %v4612, %v4610
  %v4653 = vpack.c.bf16 %v4613, %v4611
  %v4654 = vpack.c.bf16 %v4616, %v4614
  %v4655 = vpack.c.bf16 %v4617, %v4615
  %v4656 = vld [vmem:[%s5] sm:$0xf]
  %v4657 = vld [vmem:[%s5 + $0x4] sm:$0xf]
  %v4658 = vld [vmem:[%s5 + $0x8] sm:$0xf]
  %v4659 = vld [vmem:[%s5 + $0xc] sm:$0xf]
  %v4660 = vld [vmem:[%s5 + $0x10] sm:$0xf]
  %v4661 = vld [vmem:[%s5 + $0x14] sm:$0xf]
  %v4662 = vld [vmem:[%s5 + $0x18] sm:$0xf]
  %v4663 = vld [vmem:[%s5 + $0x1c] sm:$0xf]
  %v4664 = vld [vmem:[%s5 + $0x20] sm:$0xf]
  %v4665 = vld [vmem:[%s5 + $0x24] sm:$0xf]
  %v4666 = vld [vmem:[%s5 + $0x28] sm:$0xf]
  %v4667 = vld [vmem:[%s5 + $0x2c] sm:$0xf]
  %v4668 = vld [vmem:[%s5 + $0x30] sm:$0xf]
  %v4669 = vld [vmem:[%s5 + $0x34] sm:$0xf]
  %v4670 = vld [vmem:[%s5 + $0x38] sm:$0xf]
  %v4671 = vld [vmem:[%s5 + $0x3c] sm:$0xf]
  %v4672 = vld [vmem:[%s5 + $0x40] sm:$0xf]
  %v4673 = vld [vmem:[%s5 + $0x44] sm:$0xf]
  %v4674 = vld [vmem:[%s5 + $0x48] sm:$0xf]
  %v4675 = vld [vmem:[%s5 + $0x4c] sm:$0xf]
  %v4676 = vld [vmem:[%s5 + $0x50] sm:$0xf]
  %v4677 = vld [vmem:[%s5 + $0x54] sm:$0xf]
  %v4678 = vld [vmem:[%s5 + $0x58] sm:$0xf]
  %v4679 = vld [vmem:[%s5 + $0x5c] sm:$0xf]
  %v4680 = vld [vmem:[%s5 + $0x60] sm:$0xf]
  %v4681 = vld [vmem:[%s5 + $0x64] sm:$0xf]
  %v4682 = vld [vmem:[%s5 + $0x68] sm:$0xf]
  %v4683 = vld [vmem:[%s5 + $0x6c] sm:$0xf]
  %v4684 = vld [vmem:[%s5 + $0x70] sm:$0xf]
  %v4685 = vld [vmem:[%s5 + $0x74] sm:$0xf]
  %v4686 = vld [vmem:[%s5 + $0x78] sm:$0xf]
  %v4687 = vld [vmem:[%s5 + $0x7c] sm:$0xf]
  %v4688 = vld [vmem:[%s6] sm:$0x1]
  %v4690 = vlaneseq
  %v4691 = vshrl.u32 %v4690, 7
  %v4692 = vsub.s32 0, %v4691
  %v4693 = vrot.slane %v4688, %v4692
  %v4727 = vunpack.c.l.b16 %v4656
  %v4728 = vunpack.c.l.b16 %v4657
  %v4729 = vunpack.c.l.b16 %v4658
  %v4730 = vunpack.c.l.b16 %v4659
  %v4731 = vunpack.c.l.b16 %v4660
  %v4732 = vunpack.c.l.b16 %v4661
  %v4733 = vunpack.c.l.b16 %v4662
  %v4734 = vunpack.c.l.b16 %v4663
  %v4735 = vunpack.c.l.b16 %v4664
  %v4736 = vunpack.c.l.b16 %v4665
  %v4737 = vunpack.c.l.b16 %v4666
  %v4738 = vunpack.c.l.b16 %v4667
  %v4739 = vunpack.c.l.b16 %v4668
  %v4740 = vunpack.c.l.b16 %v4669
  %v4741 = vunpack.c.l.b16 %v4670
  %v4742 = vunpack.c.l.b16 %v4671
  %v4743 = vunpack.c.l.b16 %v4672
  %v4744 = vunpack.c.l.b16 %v4673
  %v4745 = vunpack.c.l.b16 %v4674
  %v4746 = vunpack.c.l.b16 %v4675
  %v4747 = vunpack.c.l.b16 %v4676
  %v4748 = vunpack.c.l.b16 %v4677
  %v4749 = vunpack.c.l.b16 %v4678
  %v4750 = vunpack.c.l.b16 %v4679
  %v4751 = vunpack.c.l.b16 %v4680
  %v4752 = vunpack.c.l.b16 %v4681
  %v4753 = vunpack.c.l.b16 %v4682
  %v4754 = vunpack.c.l.b16 %v4683
  %v4755 = vunpack.c.l.b16 %v4684
  %v4756 = vunpack.c.l.b16 %v4685
  %v4757 = vunpack.c.l.b16 %v4686
  %v4758 = vunpack.c.l.b16 %v4687
  %v4759 = vpack.c.b16 %v4728, %v4727
  %v4760 = vpack.c.b16 %v4730, %v4729
  %v4761 = vpack.c.b16 %v4732, %v4731
  %v4762 = vpack.c.b16 %v4734, %v4733
  %v4763 = vpack.c.b16 %v4736, %v4735
  %v4764 = vpack.c.b16 %v4738, %v4737
  %v4765 = vpack.c.b16 %v4740, %v4739
  %v4766 = vpack.c.b16 %v4742, %v4741
  %v4767 = vpack.c.b16 %v4744, %v4743
  %v4768 = vpack.c.b16 %v4746, %v4745
  %v4769 = vpack.c.b16 %v4748, %v4747
  %v4770 = vpack.c.b16 %v4750, %v4749
  %v4771 = vpack.c.b16 %v4752, %v4751
  %v4772 = vpack.c.b16 %v4754, %v4753
  %v4773 = vpack.c.b16 %v4756, %v4755
  %v4774 = vpack.c.b16 %v4758, %v4757
  %4791 = vmatprep.subr.bf16.mxu0 0
  %4792 = vmatpush1.bf16.msra.mxu0 %v4766
  %4793 = vmatprep.subr.bf16.mxu0 0
  %4794 = vmatpush1.bf16.msra.mxu0 %v4765
  %4795 = vmatprep.subr.bf16.mxu0 0
  %4796 = vmatpush1.bf16.msra.mxu0 %v4764
  %4797 = vmatprep.subr.bf16.mxu0 0
  %4798 = vmatpush1.bf16.msra.mxu0 %v4763
  %4799 = vmatprep.subr.bf16.mxu0 0
  %4800 = vmatpush1.bf16.msra.mxu0 %v4762
  %4801 = vmatprep.subr.bf16.mxu0 0
  %4802 = vmatpush1.bf16.msra.mxu0 %v4761
  %4803 = vmatprep.subr.bf16.mxu0 0
  %4804 = vmatpush1.bf16.msra.mxu0 %v4760
  %4805 = vmatprep.subr.bf16.mxu0 0
  %4806 = vmatpush1.bf16.msra.mxu0 %v4759
  %4807 = vmatprep.subr.bf16.mxu0 0
  %4808 = vmatpush2.bf16.msra.mxu0 %v4774
  %4809 = vmatprep.subr.bf16.mxu0 0
  %4810 = vmatpush2.bf16.msra.mxu0 %v4773
  %4811 = vmatprep.subr.bf16.mxu0 0
  %4812 = vmatpush2.bf16.msra.mxu0 %v4772
  %4813 = vmatprep.subr.bf16.mxu0 0
  %4814 = vmatpush2.bf16.msra.mxu0 %v4771
  %4815 = vmatprep.subr.bf16.mxu0 0
  %4816 = vmatpush2.bf16.msra.mxu0 %v4770
  %4817 = vmatprep.subr.bf16.mxu0 0
  %4818 = vmatpush2.bf16.msra.mxu0 %v4769
  %4819 = vmatprep.subr.bf16.mxu0 0
  %4820 = vmatpush2.bf16.msra.mxu0 %v4768
  %4821 = vmatprep.subr.bf16.mxu0 0
  %4822 = vmatpush2.bf16.msra.mxu0 %v4767
  %4823 = vmatprep.mubr.bf16.mxu0 %v4619
  %4824 = vmatmul.mubr.bf16.gmra.mxu0 %v4618
  %v4825 = vpop.f32.mrf.mxu0
  %v4826 = vadd.f32 %v4693, %v4825
  %v4827 = vpop.f32.mrf.mxu0
  %v4828 = vpop.f32.mrf.mxu0
  %v4829 = vadd.f32 %v4693, %v4828
  %v4830 = vpop.f32.mrf.mxu0
  %4831 = vmatprep.mubr.bf16.mxu0 %v4621
  %4832 = vmatmul.mubr.bf16.gmra.mxu0 %v4620
  %v4833 = vpop.f32.mrf.mxu0
  %v4834 = vadd.f32 %v4693, %v4833
  %v4835 = vpop.f32.mrf.mxu0
  %v4836 = vpop.f32.mrf.mxu0
  %v4837 = vadd.f32 %v4693, %v4836
  %v4838 = vpop.f32.mrf.mxu0
  %4839 = vmatprep.mubr.bf16.mxu0 %v4623
  %4840 = vmatmul.mubr.bf16.gmra.mxu0 %v4622
  %v4841 = vpop.f32.mrf.mxu0
  %v4842 = vadd.f32 %v4693, %v4841
  %v4843 = vpop.f32.mrf.mxu0
  %v4844 = vpop.f32.mrf.mxu0
  %v4845 = vadd.f32 %v4693, %v4844
  %v4846 = vpop.f32.mrf.mxu0
  %4847 = vmatprep.mubr.bf16.mxu0 %v4625
  %4848 = vmatmul.mubr.bf16.gmra.mxu0 %v4624
  %v4849 = vpop.f32.mrf.mxu0
  %v4850 = vadd.f32 %v4693, %v4849
  %v4851 = vpop.f32.mrf.mxu0
  %v4852 = vpop.f32.mrf.mxu0
  %v4853 = vadd.f32 %v4693, %v4852
  %v4854 = vpop.f32.mrf.mxu0
  %4855 = vmatprep.mubr.bf16.mxu0 %v4627
  %4856 = vmatmul.mubr.bf16.gmra.mxu0 %v4626
  %v4857 = vpop.f32.mrf.mxu0
  %v4858 = vadd.f32 %v4693, %v4857
  %v4859 = vpop.f32.mrf.mxu0
  %v4860 = vpop.f32.mrf.mxu0
  %v4861 = vadd.f32 %v4693, %v4860
  %v4862 = vpop.f32.mrf.mxu0
  %4863 = vmatprep.mubr.bf16.mxu0 %v4629
  %4864 = vmatmul.mubr.bf16.gmra.mxu0 %v4628
  %v4865 = vpop.f32.mrf.mxu0
  %v4866 = vadd.f32 %v4693, %v4865
  %v4867 = vpop.f32.mrf.mxu0
  %v4868 = vpop.f32.mrf.mxu0
  %v4869 = vadd.f32 %v4693, %v4868
  %v4870 = vpop.f32.mrf.mxu0
  %4871 = vmatprep.mubr.bf16.mxu0 %v4631
  %4872 = vmatmul.mubr.bf16.gmra.mxu0 %v4630
  %v4873 = vpop.f32.mrf.mxu0
  %v4874 = vadd.f32 %v4693, %v4873
  %v4875 = vpop.f32.mrf.mxu0
  %v4876 = vpop.f32.mrf.mxu0
  %v4877 = vadd.f32 %v4693, %v4876
  %v4878 = vpop.f32.mrf.mxu0
  %4879 = vmatprep.mubr.bf16.mxu0 %v4633
  %4880 = vmatmul.mubr.bf16.gmra.mxu0 %v4632
  %v4881 = vpop.f32.mrf.mxu0
  %v4882 = vadd.f32 %v4693, %v4881
  %v4883 = vpop.f32.mrf.mxu0
  %v4884 = vpop.f32.mrf.mxu0
  %v4885 = vadd.f32 %v4693, %v4884
  %v4886 = vpop.f32.mrf.mxu0
  %4887 = vmatprep.mubr.bf16.mxu0 %v4635
  %4888 = vmatmul.mubr.bf16.gmra.mxu0 %v4634
  %v4889 = vpop.f32.mrf.mxu0
  %v4890 = vadd.f32 %v4693, %v4889
  %v4891 = vpop.f32.mrf.mxu0
  %v4892 = vpop.f32.mrf.mxu0
  %v4893 = vadd.f32 %v4693, %v4892
  %v4894 = vpop.f32.mrf.mxu0
  %4895 = vmatprep.mubr.bf16.mxu0 %v4637
  %4896 = vmatmul.mubr.bf16.gmra.mxu0 %v4636
  %v4897 = vpop.f32.mrf.mxu0
  %v4898 = vadd.f32 %v4693, %v4897
  %v4899 = vpop.f32.mrf.mxu0
  %v4900 = vpop.f32.mrf.mxu0
  %v4901 = vadd.f32 %v4693, %v4900
  %v4902 = vpop.f32.mrf.mxu0
  %4903 = vmatprep.mubr.bf16.mxu0 %v4639
  %4904 = vmatmul.mubr.bf16.gmra.mxu0 %v4638
  %v4905 = vpop.f32.mrf.mxu0
  %v4906 = vadd.f32 %v4693, %v4905
  %v4907 = vpop.f32.mrf.mxu0
  %v4908 = vpop.f32.mrf.mxu0
  %v4909 = vadd.f32 %v4693, %v4908
  %v4910 = vpop.f32.mrf.mxu0
  %4911 = vmatprep.mubr.bf16.mxu0 %v4641
  %4912 = vmatmul.mubr.bf16.gmra.mxu0 %v4640
  %v4913 = vpop.f32.mrf.mxu0
  %v4914 = vadd.f32 %v4693, %v4913
  %v4915 = vpop.f32.mrf.mxu0
  %v4916 = vpop.f32.mrf.mxu0
  %v4917 = vadd.f32 %v4693, %v4916
  %v4918 = vpop.f32.mrf.mxu0
  %4919 = vmatprep.mubr.bf16.mxu0 %v4643
  %4920 = vmatmul.mubr.bf16.gmra.mxu0 %v4642
  %v4921 = vpop.f32.mrf.mxu0
  %v4922 = vadd.f32 %v4693, %v4921
  %v4923 = vpop.f32.mrf.mxu0
  %v4924 = vpop.f32.mrf.mxu0
  %v4925 = vadd.f32 %v4693, %v4924
  %v4926 = vpop.f32.mrf.mxu0
  %4927 = vmatprep.mubr.bf16.mxu0 %v4645
  %4928 = vmatmul.mubr.bf16.gmra.mxu0 %v4644
  %v4929 = vpop.f32.mrf.mxu0
  %v4930 = vadd.f32 %v4693, %v4929
  %v4931 = vpop.f32.mrf.mxu0
  %v4932 = vpop.f32.mrf.mxu0
  %v4933 = vadd.f32 %v4693, %v4932
  %v4934 = vpop.f32.mrf.mxu0
  %4935 = vmatprep.mubr.bf16.mxu0 %v4647
  %4936 = vmatmul.mubr.bf16.gmra.mxu0 %v4646
  %v4937 = vpop.f32.mrf.mxu0
  %v4938 = vadd.f32 %v4693, %v4937
  %v4939 = vpop.f32.mrf.mxu0
  %v4940 = vpop.f32.mrf.mxu0
  %v4941 = vadd.f32 %v4693, %v4940
  %v4942 = vpop.f32.mrf.mxu0
  %4943 = vmatprep.mubr.bf16.mxu0 %v4649
  %4944 = vmatmul.mubr.bf16.gmra.mxu0 %v4648
  %v4945 = vpop.f32.mrf.mxu0
  %v4946 = vadd.f32 %v4693, %v4945
  %v4947 = vpop.f32.mrf.mxu0
  %v4948 = vpop.f32.mrf.mxu0
  %v4949 = vadd.f32 %v4693, %v4948
  %v4950 = vpop.f32.mrf.mxu0
  %4951 = vmatprep.mubr.bf16.mxu0 %v4651
  %4952 = vmatmul.mubr.bf16.gmra.mxu0 %v4650
  %v4953 = vpop.f32.mrf.mxu0
  %v4954 = vadd.f32 %v4693, %v4953
  %v4955 = vpop.f32.mrf.mxu0
  %v4956 = vpop.f32.mrf.mxu0
  %v4957 = vadd.f32 %v4693, %v4956
  %v4958 = vpop.f32.mrf.mxu0
  %4959 = vmatprep.mubr.bf16.mxu0 %v4653
  %4960 = vmatmul.mubr.bf16.gmra.mxu0 %v4652
  %v4961 = vpop.f32.mrf.mxu0
  %v4962 = vadd.f32 %v4693, %v4961
  %v4963 = vpop.f32.mrf.mxu0
  %v4964 = vpop.f32.mrf.mxu0
  %v4965 = vadd.f32 %v4693, %v4964
  %v4966 = vpop.f32.mrf.mxu0
  %4967 = vmatprep.mubr.bf16.mxu0 %v4655
  %4968 = vmatmul.mubr.bf16.gmra.mxu0 %v4654
  %v4969 = vpop.f32.mrf.mxu0
  %v4970 = vadd.f32 %v4693, %v4969
  %v4971 = vpop.f32.mrf.mxu0
  %v4972 = vpop.f32.mrf.mxu0
  %v4973 = vadd.f32 %v4693, %v4972
  %v4974 = vpop.f32.mrf.mxu0
  %4975 = vdwg.mxu0
  %v4976 = vmax.f32 %v4826, 0.0
  %v4977 = vmax.f32 %v4829, 0.0
  %v4978 = vmax.f32 %v4834, 0.0
  %v4979 = vmax.f32 %v4837, 0.0
  %v4980 = vmax.f32 %v4842, 0.0
  %v4981 = vmax.f32 %v4845, 0.0
  %v4982 = vmax.f32 %v4850, 0.0
  %v4983 = vmax.f32 %v4853, 0.0
  %v4984 = vmax.f32 %v4858, 0.0
  %v4985 = vmax.f32 %v4861, 0.0
  %v4986 = vmax.f32 %v4866, 0.0
  %v4987 = vmax.f32 %v4869, 0.0
  %v4988 = vmax.f32 %v4874, 0.0
  %v4989 = vmax.f32 %v4877, 0.0
  %v4990 = vmax.f32 %v4882, 0.0
  %v4991 = vmax.f32 %v4885, 0.0
  %v4992 = vmax.f32 %v4890, 0.0
  %v4993 = vmax.f32 %v4893, 0.0
  %v4994 = vmax.f32 %v4898, 0.0
  %v4995 = vmax.f32 %v4901, 0.0
  %v4996 = vmax.f32 %v4906, 0.0
  %v4997 = vmax.f32 %v4909, 0.0
  %v4998 = vmax.f32 %v4914, 0.0
  %v4999 = vmax.f32 %v4917, 0.0
  %v5000 = vmax.f32 %v4922, 0.0
  %v5001 = vmax.f32 %v4925, 0.0
  %v5002 = vmax.f32 %v4930, 0.0
  %v5003 = vmax.f32 %v4933, 0.0
  %v5004 = vmax.f32 %v4938, 0.0
  %v5005 = vmax.f32 %v4941, 0.0
  %v5006 = vmax.f32 %v4946, 0.0
  %v5007 = vmax.f32 %v4949, 0.0
  %v5008 = vmax.f32 %v4954, 0.0
  %v5009 = vmax.f32 %v4957, 0.0
  %v5010 = vmax.f32 %v4962, 0.0
  %v5011 = vmax.f32 %v4965, 0.0
  %v5012 = vmax.f32 %v4970, 0.0
  %v5013 = vmax.f32 %v4973, 0.0
  %v5014 = vpack.c.bf16 %v4977, %v4976
  %v5015 = vpack.c.bf16 %v4979, %v4978
  %v5016 = vpack.c.bf16 %v4981, %v4980
  %v5017 = vpack.c.bf16 %v4983, %v4982
  %v5018 = vpack.c.bf16 %v4985, %v4984
  %v5019 = vpack.c.bf16 %v4987, %v4986
  %v5020 = vpack.c.bf16 %v4989, %v4988
  %v5021 = vpack.c.bf16 %v4991, %v4990
  %v5022 = vpack.c.bf16 %v4993, %v4992
  %v5023 = vpack.c.bf16 %v4995, %v4994
  %v5024 = vpack.c.bf16 %v4997, %v4996
  %v5025 = vpack.c.bf16 %v4999, %v4998
  %v5026 = vpack.c.bf16 %v5001, %v5000
  %v5027 = vpack.c.bf16 %v5003, %v5002
  %v5028 = vpack.c.bf16 %v5005, %v5004
  %v5029 = vpack.c.bf16 %v5007, %v5006
  %v5030 = vpack.c.bf16 %v5009, %v5008
  %v5031 = vpack.c.bf16 %v5011, %v5010
  %v5032 = vpack.c.bf16 %v5013, %v5012
  %v5033 = vld [vmem:[%s7] sm:$0xf]
  %v5034 = vld [vmem:[%s7 + $0x4] sm:$0xf]
  %v5035 = vld [vmem:[%s7 + $0x8] sm:$0xf]
  %v5036 = vld [vmem:[%s7 + $0xc] sm:$0xf]
  %v5037 = vld [vmem:[%s7 + $0x10] sm:$0xf]
  %v5038 = vld [vmem:[%s7 + $0x14] sm:$0xf]
  %v5039 = vld [vmem:[%s7 + $0x18] sm:$0xf]
  %v5040 = vld [vmem:[%s7 + $0x1c] sm:$0xf]
  %v5041 = vld [vmem:[%s7 + $0x20] sm:$0xf]
  %v5042 = vld [vmem:[%s7 + $0x24] sm:$0xf]
  %v5043 = vld [vmem:[%s7 + $0x28] sm:$0xf]
  %v5044 = vld [vmem:[%s7 + $0x2c] sm:$0xf]
  %v5045 = vld [vmem:[%s7 + $0x30] sm:$0xf]
  %v5046 = vld [vmem:[%s7 + $0x34] sm:$0xf]
  %v5047 = vld [vmem:[%s7 + $0x38] sm:$0xf]
  %v5048 = vld [vmem:[%s7 + $0x3c] sm:$0xf]
  %v5049 = vld [vmem:[%s8] sm:$0x1]
  %v5051 = vlaneseq
  %v5052 = vshrl.u32 %v5051, 7
  %v5053 = vsub.s32 0, %v5052
  %v5054 = vrot.slane %v5049, %v5053
  %v5072 = vunpack.c.l.b16 %v5033
  %v5073 = vunpack.c.l.b16 %v5034
  %v5074 = vunpack.c.l.b16 %v5035
  %v5075 = vunpack.c.l.b16 %v5036
  %v5076 = vunpack.c.l.b16 %v5037
  %v5077 = vunpack.c.l.b16 %v5038
  %v5078 = vunpack.c.l.b16 %v5039
  %v5079 = vunpack.c.l.b16 %v5040
  %v5080 = vunpack.c.l.b16 %v5041
  %v5081 = vunpack.c.l.b16 %v5042
  %v5082 = vunpack.c.l.b16 %v5043
  %v5083 = vunpack.c.l.b16 %v5044
  %v5084 = vunpack.c.l.b16 %v5045
  %v5085 = vunpack.c.l.b16 %v5046
  %v5086 = vunpack.c.l.b16 %v5047
  %v5087 = vunpack.c.l.b16 %v5048
  %v5088 = vpack.c.b16 %v5073, %v5072
  %v5089 = vpack.c.b16 %v5075, %v5074
  %v5090 = vpack.c.b16 %v5077, %v5076
  %v5091 = vpack.c.b16 %v5079, %v5078
  %v5092 = vpack.c.b16 %v5081, %v5080
  %v5093 = vpack.c.b16 %v5083, %v5082
  %v5094 = vpack.c.b16 %v5085, %v5084
  %v5095 = vpack.c.b16 %v5087, %v5086
  %5104 = vmatprep.subr.bf16.mxu0 0
  %5105 = vmatpush1.bf16.msra.mxu0 %v5095
  %5106 = vmatprep.subr.bf16.mxu0 0
  %5107 = vmatpush1.bf16.msra.mxu0 %v5094
  %5108 = vmatprep.subr.bf16.mxu0 0
  %5109 = vmatpush1.bf16.msra.mxu0 %v5093
  %5110 = vmatprep.subr.bf16.mxu0 0
  %5111 = vmatpush1.bf16.msra.mxu0 %v5092
  %5112 = vmatprep.subr.bf16.mxu0 0
  %5113 = vmatpush1.bf16.msra.mxu0 %v5091
  %5114 = vmatprep.subr.bf16.mxu0 0
  %5115 = vmatpush1.bf16.msra.mxu0 %v5090
  %5116 = vmatprep.subr.bf16.mxu0 0
  %5117 = vmatpush1.bf16.msra.mxu0 %v5089
  %5118 = vmatprep.subr.bf16.mxu0 0
  %5119 = vmatpush1.bf16.msra.mxu0 %v5088
  %5120 = vmatprep.subr.bf16.mxu0 0
  %5121 = vmatpush2.bf16.msra.mxu0 0
  %5122 = vmatprep.subr.bf16.mxu0 0
  %5123 = vmatpush2.bf16.msra.mxu0 0
  %5124 = vmatprep.subr.bf16.mxu0 0
  %5125 = vmatpush2.bf16.msra.mxu0 0
  %5126 = vmatprep.subr.bf16.mxu0 0
  %5127 = vmatpush2.bf16.msra.mxu0 0
  %5128 = vmatprep.subr.bf16.mxu0 0
  %5129 = vmatpush2.bf16.msra.mxu0 0
  %5130 = vmatprep.subr.bf16.mxu0 0
  %5131 = vmatpush2.bf16.msra.mxu0 0
  %5132 = vmatprep.subr.bf16.mxu0 0
  %5133 = vmatpush2.bf16.msra.mxu0 0
  %5134 = vmatprep.subr.bf16.mxu0 0
  %5135 = vmatpush2.bf16.msra.mxu0 0
  %5136 = vmatprep.mubr.bf16.mxu0 0
  %5137 = vmatmul.mubr.bf16.gmra.mxu0 %v5014
  %v5138 = vpop.f32.mrf.mxu0
  %v5139 = vadd.f32 %v5054, %v5138
  %v5140 = vpop.f32.mrf.mxu0
  %v5141 = vpop.f32.mrf.mxu0
  %v5142 = vadd.f32 %v5054, %v5141
  %v5143 = vpop.f32.mrf.mxu0
  %5144 = vmatprep.mubr.bf16.mxu0 0
  %5145 = vmatmul.mubr.bf16.gmra.mxu0 %v5015
  %v5146 = vpop.f32.mrf.mxu0
  %v5147 = vadd.f32 %v5054, %v5146
  %v5148 = vpop.f32.mrf.mxu0
  %v5149 = vpop.f32.mrf.mxu0
  %v5150 = vadd.f32 %v5054, %v5149
  %v5151 = vpop.f32.mrf.mxu0
  %5152 = vmatprep.mubr.bf16.mxu0 0
  %5153 = vmatmul.mubr.bf16.gmra.mxu0 %v5016
  %v5154 = vpop.f32.mrf.mxu0
  %v5155 = vadd.f32 %v5054, %v5154
  %v5156 = vpop.f32.mrf.mxu0
  %v5157 = vpop.f32.mrf.mxu0
  %v5158 = vadd.f32 %v5054, %v5157
  %v5159 = vpop.f32.mrf.mxu0
  %5160 = vmatprep.mubr.bf16.mxu0 0
  %5161 = vmatmul.mubr.bf16.gmra.mxu0 %v5017
  %v5162 = vpop.f32.mrf.mxu0
  %v5163 = vadd.f32 %v5054, %v5162
  %v5164 = vpop.f32.mrf.mxu0
  %v5165 = vpop.f32.mrf.mxu0
  %v5166 = vadd.f32 %v5054, %v5165
  %v5167 = vpop.f32.mrf.mxu0
  %5168 = vmatprep.mubr.bf16.mxu0 0
  %5169 = vmatmul.mubr.bf16.gmra.mxu0 %v5018
  %v5170 = vpop.f32.mrf.mxu0
  %v5171 = vadd.f32 %v5054, %v5170
  %v5172 = vpop.f32.mrf.mxu0
  %v5173 = vpop.f32.mrf.mxu0
  %v5174 = vadd.f32 %v5054, %v5173
  %v5175 = vpop.f32.mrf.mxu0
  %5176 = vmatprep.mubr.bf16.mxu0 0
  %5177 = vmatmul.mubr.bf16.gmra.mxu0 %v5019
  %v5178 = vpop.f32.mrf.mxu0
  %v5179 = vadd.f32 %v5054, %v5178
  %v5180 = vpop.f32.mrf.mxu0
  %v5181 = vpop.f32.mrf.mxu0
  %v5182 = vadd.f32 %v5054, %v5181
  %v5183 = vpop.f32.mrf.mxu0
  %5184 = vmatprep.mubr.bf16.mxu0 0
  %5185 = vmatmul.mubr.bf16.gmra.mxu0 %v5020
  %v5186 = vpop.f32.mrf.mxu0
  %v5187 = vadd.f32 %v5054, %v5186
  %v5188 = vpop.f32.mrf.mxu0
  %v5189 = vpop.f32.mrf.mxu0
  %v5190 = vadd.f32 %v5054, %v5189
  %v5191 = vpop.f32.mrf.mxu0
  %5192 = vmatprep.mubr.bf16.mxu0 0
  %5193 = vmatmul.mubr.bf16.gmra.mxu0 %v5021
  %v5194 = vpop.f32.mrf.mxu0
  %v5195 = vadd.f32 %v5054, %v5194
  %v5196 = vpop.f32.mrf.mxu0
  %v5197 = vpop.f32.mrf.mxu0
  %v5198 = vadd.f32 %v5054, %v5197
  %v5199 = vpop.f32.mrf.mxu0
  %5200 = vmatprep.mubr.bf16.mxu0 0
  %5201 = vmatmul.mubr.bf16.gmra.mxu0 %v5022
  %v5202 = vpop.f32.mrf.mxu0
  %v5203 = vadd.f32 %v5054, %v5202
  %v5204 = vpop.f32.mrf.mxu0
  %v5205 = vpop.f32.mrf.mxu0
  %v5206 = vadd.f32 %v5054, %v5205
  %v5207 = vpop.f32.mrf.mxu0
  %5208 = vmatprep.mubr.bf16.mxu0 0
  %5209 = vmatmul.mubr.bf16.gmra.mxu0 %v5023
  %v5210 = vpop.f32.mrf.mxu0
  %v5211 = vadd.f32 %v5054, %v5210
  %v5212 = vpop.f32.mrf.mxu0
  %v5213 = vpop.f32.mrf.mxu0
  %v5214 = vadd.f32 %v5054, %v5213
  %v5215 = vpop.f32.mrf.mxu0
  %5216 = vmatprep.mubr.bf16.mxu0 0
  %5217 = vmatmul.mubr.bf16.gmra.mxu0 %v5024
  %v5218 = vpop.f32.mrf.mxu0
  %v5219 = vadd.f32 %v5054, %v5218
  %v5220 = vpop.f32.mrf.mxu0
  %v5221 = vpop.f32.mrf.mxu0
  %v5222 = vadd.f32 %v5054, %v5221
  %v5223 = vpop.f32.mrf.mxu0
  %5224 = vmatprep.mubr.bf16.mxu0 0
  %5225 = vmatmul.mubr.bf16.gmra.mxu0 %v5025
  %v5226 = vpop.f32.mrf.mxu0
  %v5227 = vadd.f32 %v5054, %v5226
  %v5228 = vpop.f32.mrf.mxu0
  %v5229 = vpop.f32.mrf.mxu0
  %v5230 = vadd.f32 %v5054, %v5229
  %v5231 = vpop.f32.mrf.mxu0
  %5232 = vmatprep.mubr.bf16.mxu0 0
  %5233 = vmatmul.mubr.bf16.gmra.mxu0 %v5026
  %v5234 = vpop.f32.mrf.mxu0
  %v5235 = vadd.f32 %v5054, %v5234
  %v5236 = vpop.f32.mrf.mxu0
  %v5237 = vpop.f32.mrf.mxu0
  %v5238 = vadd.f32 %v5054, %v5237
  %v5239 = vpop.f32.mrf.mxu0
  %5240 = vmatprep.mubr.bf16.mxu0 0
  %5241 = vmatmul.mubr.bf16.gmra.mxu0 %v5027
  %v5242 = vpop.f32.mrf.mxu0
  %v5243 = vadd.f32 %v5054, %v5242
  %v5244 = vpop.f32.mrf.mxu0
  %v5245 = vpop.f32.mrf.mxu0
  %v5246 = vadd.f32 %v5054, %v5245
  %v5247 = vpop.f32.mrf.mxu0
  %5248 = vmatprep.mubr.bf16.mxu0 0
  %5249 = vmatmul.mubr.bf16.gmra.mxu0 %v5028
  %v5250 = vpop.f32.mrf.mxu0
  %v5251 = vadd.f32 %v5054, %v5250
  %v5252 = vpop.f32.mrf.mxu0
  %v5253 = vpop.f32.mrf.mxu0
  %v5254 = vadd.f32 %v5054, %v5253
  %v5255 = vpop.f32.mrf.mxu0
  %5256 = vmatprep.mubr.bf16.mxu0 0
  %5257 = vmatmul.mubr.bf16.gmra.mxu0 %v5029
  %v5258 = vpop.f32.mrf.mxu0
  %v5259 = vadd.f32 %v5054, %v5258
  %v5260 = vpop.f32.mrf.mxu0
  %v5261 = vpop.f32.mrf.mxu0
  %v5262 = vadd.f32 %v5054, %v5261
  %v5263 = vpop.f32.mrf.mxu0
  %5264 = vmatprep.mubr.bf16.mxu0 0
  %5265 = vmatmul.mubr.bf16.gmra.mxu0 %v5030
  %v5266 = vpop.f32.mrf.mxu0
  %v5267 = vadd.f32 %v5054, %v5266
  %v5268 = vpop.f32.mrf.mxu0
  %v5269 = vpop.f32.mrf.mxu0
  %v5270 = vadd.f32 %v5054, %v5269
  %v5271 = vpop.f32.mrf.mxu0
  %5272 = vmatprep.mubr.bf16.mxu0 0
  %5273 = vmatmul.mubr.bf16.gmra.mxu0 %v5031
  %v5274 = vpop.f32.mrf.mxu0
  %v5275 = vadd.f32 %v5054, %v5274
  %v5276 = vpop.f32.mrf.mxu0
  %v5277 = vpop.f32.mrf.mxu0
  %v5278 = vadd.f32 %v5054, %v5277
  %v5279 = vpop.f32.mrf.mxu0
  %5280 = vmatprep.mubr.bf16.mxu0 0
  %5281 = vmatmul.mubr.bf16.gmra.mxu0 %v5032
  %v5282 = vpop.f32.mrf.mxu0
  %v5283 = vadd.f32 %v5054, %v5282
  %v5284 = vpop.f32.mrf.mxu0
  %v5285 = vpop.f32.mrf.mxu0
  %v5286 = vadd.f32 %v5054, %v5285
  %v5287 = vpop.f32.mrf.mxu0
  %5288 = vdwg.mxu0
  %5289 = vst [vmem:[%s9] sm:$0xff] %v5139
  %5290 = vst [vmem:[%s9 + $0x8] sm:$0xff] %v5142
  %5291 = vst [vmem:[%s9 + $0x10] sm:$0xff] %v5147
  %5292 = vst [vmem:[%s9 + $0x18] sm:$0xff] %v5150
  %5293 = vst [vmem:[%s9 + $0x20] sm:$0xff] %v5155
  %5294 = vst [vmem:[%s9 + $0x28] sm:$0xff] %v5158
  %5295 = vst [vmem:[%s9 + $0x30] sm:$0xff] %v5163
  %5296 = vst [vmem:[%s9 + $0x38] sm:$0xff] %v5166
  %5297 = vst [vmem:[%s9 + $0x40] sm:$0xff] %v5171
  %5298 = vst [vmem:[%s9 + $0x48] sm:$0xff] %v5174
  %5299 = vst [vmem:[%s9 + $0x50] sm:$0xff] %v5179
  %5300 = vst [vmem:[%s9 + $0x58] sm:$0xff] %v5182
  %5301 = vst [vmem:[%s9 + $0x60] sm:$0xff] %v5187
  %5302 = vst [vmem:[%s9 + $0x68] sm:$0xff] %v5190
  %5303 = vst [vmem:[%s9 + $0x70] sm:$0xff] %v5195
  %5304 = vst [vmem:[%s9 + $0x78] sm:$0xff] %v5198
  %5305 = vst [vmem:[%s9 + $0x80] sm:$0xff] %v5203
  %5306 = vst [vmem:[%s9 + $0x88] sm:$0xff] %v5206
  %5307 = vst [vmem:[%s9 + $0x90] sm:$0xff] %v5211
  %5308 = vst [vmem:[%s9 + $0x98] sm:$0xff] %v5214
  %5309 = vst [vmem:[%s9 + $0xa0] sm:$0xff] %v5219
  %5310 = vst [vmem:[%s9 + $0xa8] sm:$0xff] %v5222
  %5311 = vst [vmem:[%s9 + $0xb0] sm:$0xff] %v5227
  %5312 = vst [vmem:[%s9 + $0xb8] sm:$0xff] %v5230
  %5313 = vst [vmem:[%s9 + $0xc0] sm:$0xff] %v5235
  %5314 = vst [vmem:[%s9 + $0xc8] sm:$0xff] %v5238
  %5315 = vst [vmem:[%s9 + $0xd0] sm:$0xff] %v5243
  %5316 = vst [vmem:[%s9 + $0xd8] sm:$0xff] %v5246
  %5317 = vst [vmem:[%s9 + $0xe0] sm:$0xff] %v5251
  %5318 = vst [vmem:[%s9 + $0xe8] sm:$0xff] %v5254
  %5319 = vst [vmem:[%s9 + $0xf0] sm:$0xff] %v5259
  %5320 = vst [vmem:[%s9 + $0xf8] sm:$0xff] %v5262
  %5321 = vst [vmem:[%s9 + $0x100] sm:$0xff] %v5267
  %5322 = vst [vmem:[%s9 + $0x108] sm:$0xff] %v5270
  %5323 = vst [vmem:[%s9 + $0x110] sm:$0xff] %v5275
  %5324 = vst [vmem:[%s9 + $0x118] sm:$0xff] %v5278
  %5325 = vst [vmem:[%s9 + $0x120] sm:$0xff] %v5283
  %5326 = vst [vmem:[%s9 + $0x128] sm:$0xff] %v5286
  // Predicated region
  $region38: #{_forward_impl.1} parent=0 // pred_check
    _
  $region39: #{_forward_impl.1} parent=0 // pred_check_branch
    %5328 = sbr.rel (0) target = $region41
  $region40: #{_forward_impl.1} parent=0 // pred_region
    _
  $region41: #{_forward_impl.1} parent=0 // pred_fallthru
    _
  // Predicated region
  $region42: #{_forward_impl.1} parent=0 // pred_check
    _
  $region43: #{_forward_impl.1} parent=0 // pred_check_branch
    %5330 = sbr.rel (0) target = $region45
  $region44: #{_forward_impl.1} parent=0 // pred_region
    _
  $region45: #{_forward_impl.1} parent=0 // pred_fallthru
    _

</llo_original>
